<compile_context>
chip_gen: v5e
topology: v5e:2x2
jax: 0.10.0
libtpu: 0.0.40
codegen_flags: <defaults>
</compile_context>

<pallas_src>
import functools

import jax
import jax.numpy as jnp
from jax import lax
from jax.experimental import pallas as pl
from jax.experimental.pallas import tpu as pltpu


def _round_up(a, b):
    return (a + b - 1) // b * b


def _char_encoder_kernel(x_ref, w_ref, b_ref, g_ref, bt_ref, o_ref,
                         *, L, K, num_groups, eps):
    # x_ref  : (Lp, C, Nb)  padded input block (position, channel, word)   f32
    # w_ref  : (K, C, C)    conv weight, w_ref[k] = W[:, :, k] (out, in)
    # b_ref  : (C, 1)       conv bias
    # g_ref  : (C, 1)       GroupNorm gamma
    # bt_ref : (C, 1)       GroupNorm beta
    # o_ref  : (C, Nb)      pooled output (lane-dense)
    C, Nb = o_ref.shape
    G = num_groups
    cpg = C // G

    # Conv weights: K tiny (C, C) slices, loaded once per block.
    w = [w_ref[k] for k in range(K)]

    # Running per-channel statistics of the *bias-free* conv output u (bias folded later).
    csum = jnp.zeros((C, Nb), jnp.float32)                 # sum_l u
    csq = jnp.zeros((C, Nb), jnp.float32)                  # sum_l u^2
    umax = jnp.full((C, Nb), -jnp.inf, jnp.float32)        # max_l u
    umin = jnp.full((C, Nb), jnp.inf, jnp.float32)         # min_l u

    # ---- Conv1d as K shifted wide matmuls per output position (static unroll) ----
    for l in range(L):
        u = jnp.dot(w[0], x_ref[l], preferred_element_type=jnp.float32)
        for k in range(1, K):
            u = u + jnp.dot(w[k], x_ref[l + k],
                            preferred_element_type=jnp.float32)
        csum = csum + u
        csq = csq + u * u
        umax = jnp.maximum(umax, u)
        umin = jnp.minimum(umin, u)

    # ---- GroupNorm stats (bias folded in algebraically), all groups at once ----
    b3 = b_ref[...].reshape(G, cpg, 1)
    g3 = g_ref[...].reshape(G, cpg, 1)
    bt3 = bt_ref[...].reshape(G, cpg, 1)
    csum3 = csum.reshape(G, cpg, Nb)
    csq3 = csq.reshape(G, cpg, Nb)
    umax3 = umax.reshape(G, cpg, Nb)
    umin3 = umin.reshape(G, cpg, Nb)

    Lf = float(L)
    zsum = csum3 + Lf * b3                                  # sum_l (u + b)
    zsq = csq3 + 2.0 * b3 * csum3 + Lf * (b3 * b3)          # sum_l (u + b)^2

    inv_cnt = 1.0 / float(cpg * L)
    gsum = jnp.sum(zsum, axis=1, keepdims=True)             # (G, 1, Nb)
    gsq = jnp.sum(zsq, axis=1, keepdims=True)               # (G, 1, Nb)
    mean = gsum * inv_cnt
    var = jnp.maximum(gsq * inv_cnt - mean * mean, 0.0)     # biased var (torch GN)
    rs = lax.rsqrt(var + eps)

    # ---- Fold GroupNorm affine + conv bias into one per-channel scale/shift ----
    # y_l = gamma*(u + b - mean)*rs + beta = a*u + d
    a = g3 * rs                                             # (G, cpg, Nb)
    d = a * (b3 - mean) + bt3                               # (G, cpg, Nb)

    # ---- ReLU + MaxPool1d(L) without materializing (C, L, Nb) ----
    pooled = jnp.where(a >= 0.0, a * umax3 + d, a * umin3 + d)
    o_ref[...] = jnp.maximum(pooled, 0.0).reshape(C, Nb)


def char_level_encoder(x, conv_w, conv_b, gamma, beta,
                       *, char_emb_size, max_w_len, kernel_size=5, padding=2,
                       eps=1e-5, block_words=256):
    """Pallas implementation of CharLevelEncoder.forward.

    x        : any shape that views to (-1, char_emb_size, max_w_len)
    conv_w   : (C, C, K)  -- PyTorch Conv1d weight layout (out, in, k)
    conv_b   : (C,)
    gamma    : (C,)  GroupNorm weight
    beta     : (C,)  GroupNorm bias
    returns  : (N, C, 1)
    """
    C, L, K = char_emb_size, max_w_len, kernel_size
    assert C % 16 == 0, "GroupNorm groups = C // 16 requires C % 16 == 0"
    assert 2 * padding == K - 1, "kernel assumes 'same' conv output length"
    G = C // 16
    Lp = L + 2 * padding

    x3 = jnp.asarray(x, jnp.float32).reshape(-1, C, L)      # x.view(-1, C, L)
    N = x3.shape[0]
    Nb = min(_round_up(block_words, 128), _round_up(N, 128))  # lane-dim block, mult of 128
    Np = _round_up(N, Nb)

    # Pad the word count to Np (zero words -> garbage outputs, sliced off below), pad L
    # for the conv, and lay out as (Lp, C, Np): words on lanes.
    # TODO(synk): the pad+transpose is one extra XLA HBM pass; could be folded into a
    # manual in-kernel DMA if this ever becomes HBM-bound.
    xpad = jnp.pad(x3, ((0, Np - N), (0, 0), (padding, padding)))   # (Np, C, Lp)
    xT = jnp.transpose(xpad, (2, 1, 0))                             # (Lp, C, Np)

    w_k = jnp.transpose(jnp.asarray(conv_w, jnp.float32), (2, 0, 1))  # (K, C, C)
    b2 = jnp.asarray(conv_b, jnp.float32).reshape(C, 1)
    g2 = jnp.asarray(gamma, jnp.float32).reshape(C, 1)
    bt2 = jnp.asarray(beta, jnp.float32).reshape(C, 1)

    kernel = functools.partial(_char_encoder_kernel,
                               L=L, K=K, num_groups=G, eps=eps)

    out = pl.pallas_call(
        kernel,
        out_shape=jax.ShapeDtypeStruct((C, Np), jnp.float32),
        grid_spec=pltpu.PrefetchScalarGridSpec(
            num_scalar_prefetch=0,
            grid=(Np // Nb,),
            in_specs=[
                pl.BlockSpec((Lp, C, Nb), lambda n: (0, 0, n)),   # input block
                pl.BlockSpec((K, C, C), lambda n: (0, 0, 0)),     # conv weight (resident)
                pl.BlockSpec((C, 1), lambda n: (0, 0)),           # conv bias
                pl.BlockSpec((C, 1), lambda n: (0, 0)),           # gamma
                pl.BlockSpec((C, 1), lambda n: (0, 0)),           # beta
            ],
            out_specs=pl.BlockSpec((C, Nb), lambda n: (0, n)),    # lane-dense output
        ),
        compiler_params=pltpu.CompilerParams(
            dimension_semantics=("parallel",)),
    )(xT, w_k, b2, g2, bt2)

    # (C, Np) -> (N, C, 1), dropping padding words.
    return jnp.transpose(out[:, :N])[:, :, None]


def _reference(x, conv_w, conv_b, gamma, beta, *, C, L, K, padding, eps=1e-5):
    """Pure-JAX reference mirroring the PyTorch forward."""
    x3 = x.reshape(-1, C, L)
    N = x3.shape[0]
    xp = jnp.pad(x3, ((0, 0), (0, 0), (padding, padding)))
    out = jnp.broadcast_to(conv_b[None, :, None], (N, C, L))
    for k in range(K):
        out = out + jnp.einsum('oi,nil->nol', conv_w[:, :, k], xp[:, :, k:k + L])
    G = C // 16
    og = out.reshape(N, G, C // G, L)
    m = og.mean(axis=(2, 3), keepdims=True)
    v = og.var(axis=(2, 3), keepdims=True)
    on = ((og - m) / jnp.sqrt(v + eps)).reshape(N, C, L)
    on = on * gamma[None, :, None] + beta[None, :, None]
    on = jnp.maximum(on, 0.0)
    return on.max(axis=2, keepdims=True)


if __name__ == "__main__":
    char_emb_size = 32   # must be divisible by 16 (GroupNorm groups = C // 16)
    max_w_len = 16
    kernel_size = 5
    padding = 2

    key = jax.random.PRNGKey(0)
    kx, kw, kb, kg, kbe = jax.random.split(key, 5)

    # input: (batch=2, words=4, C=32, L=16) -> views to (8, 32, 16)
    x = jax.random.normal(kx, (2, 4, char_emb_size, max_w_len), jnp.float32)

    # deterministic synthetic parameters (PyTorch shapes)
    conv_w = 0.1 * jax.random.normal(
        kw, (char_emb_size, char_emb_size, kernel_size), jnp.float32)
    conv_b = 0.1 * jax.random.normal(kb, (char_emb_size,), jnp.float32)
    gamma = 1.0 + 0.1 * jax.random.normal(kg, (char_emb_size,), jnp.float32)
    beta = 0.1 * jax.random.normal(kbe, (char_emb_size,), jnp.float32)

    out = char_level_encoder(
        x, conv_w, conv_b, gamma, beta,
        char_emb_size=char_emb_size, max_w_len=max_w_len,
        kernel_size=kernel_size, padding=padding)
    out = jax.block_until_ready(out)

    ref = _reference(x, conv_w, conv_b, gamma, beta,
                     C=char_emb_size, L=max_w_len, K=kernel_size,
                     padding=padding)

    assert out.shape == (8, char_emb_size, 1), out.shape
    assert jnp.allclose(out, ref, atol=1e-4, rtol=1e-4), \
        float(jnp.max(jnp.abs(out - ref)))
    print("KERNEL_OK")
</pallas_src>

<mosaic_0001>
module attributes {stable_mosaic.version = 11 : i64} {
  func.func @_char_encoder_kernel(%arg0: i32, %arg1: memref<20x32x128xf32, #tpu.memory_space<vmem>>, %arg2: memref<5x32x32xf32, #tpu.memory_space<vmem>>, %arg3: memref<32x1xf32, #tpu.memory_space<vmem>>, %arg4: memref<32x1xf32, #tpu.memory_space<vmem>>, %arg5: memref<32x1xf32, #tpu.memory_space<vmem>>, %arg6: memref<32x128xf32, #tpu.memory_space<vmem>>) attributes {dimension_semantics = [#tpu.dimension_semantics<parallel>], iteration_bounds = array<i64: 1>, scalar_prefetch = 0 : i64, scratch_operands = 0 : i64, tpu.core_type = #tpu.core_type<tc>, window_params = [{transform_indices = @transform_0, window_bounds = array<i64: 20, 32, 128>}, {pipeline_mode = #tpu.pipeline_mode<synchronous>, transform_indices = @transform_1, window_bounds = array<i64: 5, 32, 32>}, {pipeline_mode = #tpu.pipeline_mode<synchronous>, transform_indices = @transform_2, window_bounds = array<i64: 32, 1>}, {pipeline_mode = #tpu.pipeline_mode<synchronous>, transform_indices = @transform_3, window_bounds = array<i64: 32, 1>}, {pipeline_mode = #tpu.pipeline_mode<synchronous>, transform_indices = @transform_4, window_bounds = array<i64: 32, 1>}, {transform_indices = @transform_5, window_bounds = array<i64: 32, 128>}]} {
    %c0 = arith.constant 0 : index
    %c0_0 = arith.constant 0 : index
    %c0_1 = arith.constant 0 : index
    %0 = vector.load %arg2[%c0, %c0_0, %c0_1] : memref<5x32x32xf32, #tpu.memory_space<vmem>>, vector<1x32x32xf32>
    %1 = vector.shape_cast %0 : vector<1x32x32xf32> to vector<32x32xf32>
    %c1 = arith.constant 1 : index
    %c0_2 = arith.constant 0 : index
    %c0_3 = arith.constant 0 : index
    %2 = vector.load %arg2[%c1, %c0_2, %c0_3] : memref<5x32x32xf32, #tpu.memory_space<vmem>>, vector<1x32x32xf32>
    %3 = vector.shape_cast %2 : vector<1x32x32xf32> to vector<32x32xf32>
    %c2 = arith.constant 2 : index
    %c0_4 = arith.constant 0 : index
    %c0_5 = arith.constant 0 : index
    %4 = vector.load %arg2[%c2, %c0_4, %c0_5] : memref<5x32x32xf32, #tpu.memory_space<vmem>>, vector<1x32x32xf32>
    %5 = vector.shape_cast %4 : vector<1x32x32xf32> to vector<32x32xf32>
    %c3 = arith.constant 3 : index
    %c0_6 = arith.constant 0 : index
    %c0_7 = arith.constant 0 : index
    %6 = vector.load %arg2[%c3, %c0_6, %c0_7] : memref<5x32x32xf32, #tpu.memory_space<vmem>>, vector<1x32x32xf32>
    %7 = vector.shape_cast %6 : vector<1x32x32xf32> to vector<32x32xf32>
    %c4 = arith.constant 4 : index
    %c0_8 = arith.constant 0 : index
    %c0_9 = arith.constant 0 : index
    %8 = vector.load %arg2[%c4, %c0_8, %c0_9] : memref<5x32x32xf32, #tpu.memory_space<vmem>>, vector<1x32x32xf32>
    %9 = vector.shape_cast %8 : vector<1x32x32xf32> to vector<32x32xf32>
    %cst = arith.constant 0.000000e+00 : f32
    %10 = vector.broadcast %cst : f32 to vector<32x128xf32>
    %cst_10 = arith.constant 0.000000e+00 : f32
    %11 = vector.broadcast %cst_10 : f32 to vector<32x128xf32>
    %cst_11 = arith.constant 0xFF800000 : f32
    %12 = vector.broadcast %cst_11 : f32 to vector<32x128xf32>
    %cst_12 = arith.constant 0x7F800000 : f32
    %13 = vector.broadcast %cst_12 : f32 to vector<32x128xf32>
    %c0_13 = arith.constant 0 : index
    %c0_14 = arith.constant 0 : index
    %c0_15 = arith.constant 0 : index
    %14 = vector.load %arg1[%c0_13, %c0_14, %c0_15] : memref<20x32x128xf32, #tpu.memory_space<vmem>>, vector<1x32x128xf32>
    %15 = vector.shape_cast %14 : vector<1x32x128xf32> to vector<32x128xf32>
    %cst_16 = arith.constant dense<0.000000e+00> : vector<32x128xf32>
    %16 = tpu.matmul %1, %15, %cst_16 {dimension_numbers = #tpu.dot_dimension_numbers<[1], [0], [0], [1], [0, 0, 1, 1], [], []>} : vector<32x32xf32>, vector<32x128xf32>, vector<32x128xf32> -> vector<32x128xf32>
    %c1_17 = arith.constant 1 : index
    %c0_18 = arith.constant 0 : index
    %c0_19 = arith.constant 0 : index
    %17 = vector.load %arg1[%c1_17, %c0_18, %c0_19] : memref<20x32x128xf32, #tpu.memory_space<vmem>>, vector<1x32x128xf32>
    %18 = vector.shape_cast %17 : vector<1x32x128xf32> to vector<32x128xf32>
    %cst_20 = arith.constant dense<0.000000e+00> : vector<32x128xf32>
    %19 = tpu.matmul %3, %18, %cst_20 {dimension_numbers = #tpu.dot_dimension_numbers<[1], [0], [0], [1], [0, 0, 1, 1], [], []>} : vector<32x32xf32>, vector<32x128xf32>, vector<32x128xf32> -> vector<32x128xf32>
    %20 = arith.addf %16, %19 : vector<32x128xf32>
    %c2_21 = arith.constant 2 : index
    %c0_22 = arith.constant 0 : index
    %c0_23 = arith.constant 0 : index
    %21 = vector.load %arg1[%c2_21, %c0_22, %c0_23] : memref<20x32x128xf32, #tpu.memory_space<vmem>>, vector<1x32x128xf32>
    %22 = vector.shape_cast %21 : vector<1x32x128xf32> to vector<32x128xf32>
    %cst_24 = arith.constant dense<0.000000e+00> : vector<32x128xf32>
    %23 = tpu.matmul %5, %22, %cst_24 {dimension_numbers = #tpu.dot_dimension_numbers<[1], [0], [0], [1], [0, 0, 1, 1], [], []>} : vector<32x32xf32>, vector<32x128xf32>, vector<32x128xf32> -> vector<32x128xf32>
    %24 = arith.addf %20, %23 : vector<32x128xf32>
    %c3_25 = arith.constant 3 : index
    %c0_26 = arith.constant 0 : index
    %c0_27 = arith.constant 0 : index
    %25 = vector.load %arg1[%c3_25, %c0_26, %c0_27] : memref<20x32x128xf32, #tpu.memory_space<vmem>>, vector<1x32x128xf32>
    %26 = vector.shape_cast %25 : vector<1x32x128xf32> to vector<32x128xf32>
    %cst_28 = arith.constant dense<0.000000e+00> : vector<32x128xf32>
    %27 = tpu.matmul %7, %26, %cst_28 {dimension_numbers = #tpu.dot_dimension_numbers<[1], [0], [0], [1], [0, 0, 1, 1], [], []>} : vector<32x32xf32>, vector<32x128xf32>, vector<32x128xf32> -> vector<32x128xf32>
    %28 = arith.addf %24, %27 : vector<32x128xf32>
    %c4_29 = arith.constant 4 : index
    %c0_30 = arith.constant 0 : index
    %c0_31 = arith.constant 0 : index
    %29 = vector.load %arg1[%c4_29, %c0_30, %c0_31] : memref<20x32x128xf32, #tpu.memory_space<vmem>>, vector<1x32x128xf32>
    %30 = vector.shape_cast %29 : vector<1x32x128xf32> to vector<32x128xf32>
    %cst_32 = arith.constant dense<0.000000e+00> : vector<32x128xf32>
    %31 = tpu.matmul %9, %30, %cst_32 {dimension_numbers = #tpu.dot_dimension_numbers<[1], [0], [0], [1], [0, 0, 1, 1], [], []>} : vector<32x32xf32>, vector<32x128xf32>, vector<32x128xf32> -> vector<32x128xf32>
    %32 = arith.addf %28, %31 : vector<32x128xf32>
    %33 = arith.addf %10, %32 : vector<32x128xf32>
    %34 = arith.mulf %32, %32 : vector<32x128xf32>
    %35 = arith.addf %11, %34 : vector<32x128xf32>
    %36 = arith.maximumf %12, %32 : vector<32x128xf32>
    %37 = arith.minimumf %13, %32 : vector<32x128xf32>
    %c1_33 = arith.constant 1 : index
    %c0_34 = arith.constant 0 : index
    %c0_35 = arith.constant 0 : index
    %38 = vector.load %arg1[%c1_33, %c0_34, %c0_35] : memref<20x32x128xf32, #tpu.memory_space<vmem>>, vector<1x32x128xf32>
    %39 = vector.shape_cast %38 : vector<1x32x128xf32> to vector<32x128xf32>
    %cst_36 = arith.constant dense<0.000000e+00> : vector<32x128xf32>
    %40 = tpu.matmul %1, %39, %cst_36 {dimension_numbers = #tpu.dot_dimension_numbers<[1], [0], [0], [1], [0, 0, 1, 1], [], []>} : vector<32x32xf32>, vector<32x128xf32>, vector<32x128xf32> -> vector<32x128xf32>
    %c2_37 = arith.constant 2 : index
    %c0_38 = arith.constant 0 : index
    %c0_39 = arith.constant 0 : index
    %41 = vector.load %arg1[%c2_37, %c0_38, %c0_39] : memref<20x32x128xf32, #tpu.memory_space<vmem>>, vector<1x32x128xf32>
    %42 = vector.shape_cast %41 : vector<1x32x128xf32> to vector<32x128xf32>
    %cst_40 = arith.constant dense<0.000000e+00> : vector<32x128xf32>
    %43 = tpu.matmul %3, %42, %cst_40 {dimension_numbers = #tpu.dot_dimension_numbers<[1], [0], [0], [1], [0, 0, 1, 1], [], []>} : vector<32x32xf32>, vector<32x128xf32>, vector<32x128xf32> -> vector<32x128xf32>
    %44 = arith.addf %40, %43 : vector<32x128xf32>
    %c3_41 = arith.constant 3 : index
    %c0_42 = arith.constant 0 : index
    %c0_43 = arith.constant 0 : index
    %45 = vector.load %arg1[%c3_41, %c0_42, %c0_43] : memref<20x32x128xf32, #tpu.memory_space<vmem>>, vector<1x32x128xf32>
    %46 = vector.shape_cast %45 : vector<1x32x128xf32> to vector<32x128xf32>
    %cst_44 = arith.constant dense<0.000000e+00> : vector<32x128xf32>
    %47 = tpu.matmul %5, %46, %cst_44 {dimension_numbers = #tpu.dot_dimension_numbers<[1], [0], [0], [1], [0, 0, 1, 1], [], []>} : vector<32x32xf32>, vector<32x128xf32>, vector<32x128xf32> -> vector<32x128xf32>
    %48 = arith.addf %44, %47 : vector<32x128xf32>
    %c4_45 = arith.constant 4 : index
    %c0_46 = arith.constant 0 : index
    %c0_47 = arith.constant 0 : index
    %49 = vector.load %arg1[%c4_45, %c0_46, %c0_47] : memref<20x32x128xf32, #tpu.memory_space<vmem>>, vector<1x32x128xf32>
    %50 = vector.shape_cast %49 : vector<1x32x128xf32> to vector<32x128xf32>
    %cst_48 = arith.constant dense<0.000000e+00> : vector<32x128xf32>
    %51 = tpu.matmul %7, %50, %cst_48 {dimension_numbers = #tpu.dot_dimension_numbers<[1], [0], [0], [1], [0, 0, 1, 1], [], []>} : vector<32x32xf32>, vector<32x128xf32>, vector<32x128xf32> -> vector<32x128xf32>
    %52 = arith.addf %48, %51 : vector<32x128xf32>
    %c5 = arith.constant 5 : index
    %c0_49 = arith.constant 0 : index
    %c0_50 = arith.constant 0 : index
    %53 = vector.load %arg1[%c5, %c0_49, %c0_50] : memref<20x32x128xf32, #tpu.memory_space<vmem>>, vector<1x32x128xf32>
    %54 = vector.shape_cast %53 : vector<1x32x128xf32> to vector<32x128xf32>
    %cst_51 = arith.constant dense<0.000000e+00> : vector<32x128xf32>
    %55 = tpu.matmul %9, %54, %cst_51 {dimension_numbers = #tpu.dot_dimension_numbers<[1], [0], [0], [1], [0, 0, 1, 1], [], []>} : vector<32x32xf32>, vector<32x128xf32>, vector<32x128xf32> -> vector<32x128xf32>
    %56 = arith.addf %52, %55 : vector<32x128xf32>
    %57 = arith.addf %33, %56 : vector<32x128xf32>
    %58 = arith.mulf %56, %56 : vector<32x128xf32>
    %59 = arith.addf %35, %58 : vector<32x128xf32>
    %60 = arith.maximumf %36, %56 : vector<32x128xf32>
    %61 = arith.minimumf %37, %56 : vector<32x128xf32>
    %c2_52 = arith.constant 2 : index
    %c0_53 = arith.constant 0 : index
    %c0_54 = arith.constant 0 : index
    %62 = vector.load %arg1[%c2_52, %c0_53, %c0_54] : memref<20x32x128xf32, #tpu.memory_space<vmem>>, vector<1x32x128xf32>
    %63 = vector.shape_cast %62 : vector<1x32x128xf32> to vector<32x128xf32>
    %cst_55 = arith.constant dense<0.000000e+00> : vector<32x128xf32>
    %64 = tpu.matmul %1, %63, %cst_55 {dimension_numbers = #tpu.dot_dimension_numbers<[1], [0], [0], [1], [0, 0, 1, 1], [], []>} : vector<32x32xf32>, vector<32x128xf32>, vector<32x128xf32> -> vector<32x128xf32>
    %c3_56 = arith.constant 3 : index
    %c0_57 = arith.constant 0 : index
    %c0_58 = arith.constant 0 : index
    %65 = vector.load %arg1[%c3_56, %c0_57, %c0_58] : memref<20x32x128xf32, #tpu.memory_space<vmem>>, vector<1x32x128xf32>
    %66 = vector.shape_cast %65 : vector<1x32x128xf32> to vector<32x128xf32>
    %cst_59 = arith.constant dense<0.000000e+00> : vector<32x128xf32>
    %67 = tpu.matmul %3, %66, %cst_59 {dimension_numbers = #tpu.dot_dimension_numbers<[1], [0], [0], [1], [0, 0, 1, 1], [], []>} : vector<32x32xf32>, vector<32x128xf32>, vector<32x128xf32> -> vector<32x128xf32>
    %68 = arith.addf %64, %67 : vector<32x128xf32>
    %c4_60 = arith.constant 4 : index
    %c0_61 = arith.constant 0 : index
    %c0_62 = arith.constant 0 : index
    %69 = vector.load %arg1[%c4_60, %c0_61, %c0_62] : memref<20x32x128xf32, #tpu.memory_space<vmem>>, vector<1x32x128xf32>
    %70 = vector.shape_cast %69 : vector<1x32x128xf32> to vector<32x128xf32>
    %cst_63 = arith.constant dense<0.000000e+00> : vector<32x128xf32>
    %71 = tpu.matmul %5, %70, %cst_63 {dimension_numbers = #tpu.dot_dimension_numbers<[1], [0], [0], [1], [0, 0, 1, 1], [], []>} : vector<32x32xf32>, vector<32x128xf32>, vector<32x128xf32> -> vector<32x128xf32>
    %72 = arith.addf %68, %71 : vector<32x128xf32>
    %c5_64 = arith.constant 5 : index
    %c0_65 = arith.constant 0 : index
    %c0_66 = arith.constant 0 : index
    %73 = vector.load %arg1[%c5_64, %c0_65, %c0_66] : memref<20x32x128xf32, #tpu.memory_space<vmem>>, vector<1x32x128xf32>
    %74 = vector.shape_cast %73 : vector<1x32x128xf32> to vector<32x128xf32>
    %cst_67 = arith.constant dense<0.000000e+00> : vector<32x128xf32>
    %75 = tpu.matmul %7, %74, %cst_67 {dimension_numbers = #tpu.dot_dimension_numbers<[1], [0], [0], [1], [0, 0, 1, 1], [], []>} : vector<32x32xf32>, vector<32x128xf32>, vector<32x128xf32> -> vector<32x128xf32>
    %76 = arith.addf %72, %75 : vector<32x128xf32>
    %c6 = arith.constant 6 : index
    %c0_68 = arith.constant 0 : index
    %c0_69 = arith.constant 0 : index
    %77 = vector.load %arg1[%c6, %c0_68, %c0_69] : memref<20x32x128xf32, #tpu.memory_space<vmem>>, vector<1x32x128xf32>
    %78 = vector.shape_cast %77 : vector<1x32x128xf32> to vector<32x128xf32>
    %cst_70 = arith.constant dense<0.000000e+00> : vector<32x128xf32>
    %79 = tpu.matmul %9, %78, %cst_70 {dimension_numbers = #tpu.dot_dimension_numbers<[1], [0], [0], [1], [0, 0, 1, 1], [], []>} : vector<32x32xf32>, vector<32x128xf32>, vector<32x128xf32> -> vector<32x128xf32>
    %80 = arith.addf %76, %79 : vector<32x128xf32>
    %81 = arith.addf %57, %80 : vector<32x128xf32>
    %82 = arith.mulf %80, %80 : vector<32x128xf32>
    %83 = arith.addf %59, %82 : vector<32x128xf32>
    %84 = arith.maximumf %60, %80 : vector<32x128xf32>
    %85 = arith.minimumf %61, %80 : vector<32x128xf32>
    %c3_71 = arith.constant 3 : index
    %c0_72 = arith.constant 0 : index
    %c0_73 = arith.constant 0 : index
    %86 = vector.load %arg1[%c3_71, %c0_72, %c0_73] : memref<20x32x128xf32, #tpu.memory_space<vmem>>, vector<1x32x128xf32>
    %87 = vector.shape_cast %86 : vector<1x32x128xf32> to vector<32x128xf32>
    %cst_74 = arith.constant dense<0.000000e+00> : vector<32x128xf32>
    %88 = tpu.matmul %1, %87, %cst_74 {dimension_numbers = #tpu.dot_dimension_numbers<[1], [0], [0], [1], [0, 0, 1, 1], [], []>} : vector<32x32xf32>, vector<32x128xf32>, vector<32x128xf32> -> vector<32x128xf32>
    %c4_75 = arith.constant 4 : index
    %c0_76 = arith.constant 0 : index
    %c0_77 = arith.constant 0 : index
    %89 = vector.load %arg1[%c4_75, %c0_76, %c0_77] : memref<20x32x128xf32, #tpu.memory_space<vmem>>, vector<1x32x128xf32>
    %90 = vector.shape_cast %89 : vector<1x32x128xf32> to vector<32x128xf32>
    %cst_78 = arith.constant dense<0.000000e+00> : vector<32x128xf32>
    %91 = tpu.matmul %3, %90, %cst_78 {dimension_numbers = #tpu.dot_dimension_numbers<[1], [0], [0], [1], [0, 0, 1, 1], [], []>} : vector<32x32xf32>, vector<32x128xf32>, vector<32x128xf32> -> vector<32x128xf32>
    %92 = arith.addf %88, %91 : vector<32x128xf32>
    %c5_79 = arith.constant 5 : index
    %c0_80 = arith.constant 0 : index
    %c0_81 = arith.constant 0 : index
    %93 = vector.load %arg1[%c5_79, %c0_80, %c0_81] : memref<20x32x128xf32, #tpu.memory_space<vmem>>, vector<1x32x128xf32>
    %94 = vector.shape_cast %93 : vector<1x32x128xf32> to vector<32x128xf32>
    %cst_82 = arith.constant dense<0.000000e+00> : vector<32x128xf32>
    %95 = tpu.matmul %5, %94, %cst_82 {dimension_numbers = #tpu.dot_dimension_numbers<[1], [0], [0], [1], [0, 0, 1, 1], [], []>} : vector<32x32xf32>, vector<32x128xf32>, vector<32x128xf32> -> vector<32x128xf32>
    %96 = arith.addf %92, %95 : vector<32x128xf32>
    %c6_83 = arith.constant 6 : index
    %c0_84 = arith.constant 0 : index
    %c0_85 = arith.constant 0 : index
    %97 = vector.load %arg1[%c6_83, %c0_84, %c0_85] : memref<20x32x128xf32, #tpu.memory_space<vmem>>, vector<1x32x128xf32>
    %98 = vector.shape_cast %97 : vector<1x32x128xf32> to vector<32x128xf32>
    %cst_86 = arith.constant dense<0.000000e+00> : vector<32x128xf32>
    %99 = tpu.matmul %7, %98, %cst_86 {dimension_numbers = #tpu.dot_dimension_numbers<[1], [0], [0], [1], [0, 0, 1, 1], [], []>} : vector<32x32xf32>, vector<32x128xf32>, vector<32x128xf32> -> vector<32x128xf32>
    %100 = arith.addf %96, %99 : vector<32x128xf32>
    %c7 = arith.constant 7 : index
    %c0_87 = arith.constant 0 : index
    %c0_88 = arith.constant 0 : index
    %101 = vector.load %arg1[%c7, %c0_87, %c0_88] : memref<20x32x128xf32, #tpu.memory_space<vmem>>, vector<1x32x128xf32>
    %102 = vector.shape_cast %101 : vector<1x32x128xf32> to vector<32x128xf32>
    %cst_89 = arith.constant dense<0.000000e+00> : vector<32x128xf32>
    %103 = tpu.matmul %9, %102, %cst_89 {dimension_numbers = #tpu.dot_dimension_numbers<[1], [0], [0], [1], [0, 0, 1, 1], [], []>} : vector<32x32xf32>, vector<32x128xf32>, vector<32x128xf32> -> vector<32x128xf32>
    %104 = arith.addf %100, %103 : vector<32x128xf32>
    %105 = arith.addf %81, %104 : vector<32x128xf32>
    %106 = arith.mulf %104, %104 : vector<32x128xf32>
    %107 = arith.addf %83, %106 : vector<32x128xf32>
    %108 = arith.maximumf %84, %104 : vector<32x128xf32>
    %109 = arith.minimumf %85, %104 : vector<32x128xf32>
    %c4_90 = arith.constant 4 : index
    %c0_91 = arith.constant 0 : index
    %c0_92 = arith.constant 0 : index
    %110 = vector.load %arg1[%c4_90, %c0_91, %c0_92] : memref<20x32x128xf32, #tpu.memory_space<vmem>>, vector<1x32x128xf32>
    %111 = vector.shape_cast %110 : vector<1x32x128xf32> to vector<32x128xf32>
    %cst_93 = arith.constant dense<0.000000e+00> : vector<32x128xf32>
    %112 = tpu.matmul %1, %111, %cst_93 {dimension_numbers = #tpu.dot_dimension_numbers<[1], [0], [0], [1], [0, 0, 1, 1], [], []>} : vector<32x32xf32>, vector<32x128xf32>, vector<32x128xf32> -> vector<32x128xf32>
    %c5_94 = arith.constant 5 : index
    %c0_95 = arith.constant 0 : index
    %c0_96 = arith.constant 0 : index
    %113 = vector.load %arg1[%c5_94, %c0_95, %c0_96] : memref<20x32x128xf32, #tpu.memory_space<vmem>>, vector<1x32x128xf32>
    %114 = vector.shape_cast %113 : vector<1x32x128xf32> to vector<32x128xf32>
    %cst_97 = arith.constant dense<0.000000e+00> : vector<32x128xf32>
    %115 = tpu.matmul %3, %114, %cst_97 {dimension_numbers = #tpu.dot_dimension_numbers<[1], [0], [0], [1], [0, 0, 1, 1], [], []>} : vector<32x32xf32>, vector<32x128xf32>, vector<32x128xf32> -> vector<32x128xf32>
    %116 = arith.addf %112, %115 : vector<32x128xf32>
    %c6_98 = arith.constant 6 : index
    %c0_99 = arith.constant 0 : index
    %c0_100 = arith.constant 0 : index
    %117 = vector.load %arg1[%c6_98, %c0_99, %c0_100] : memref<20x32x128xf32, #tpu.memory_space<vmem>>, vector<1x32x128xf32>
    %118 = vector.shape_cast %117 : vector<1x32x128xf32> to vector<32x128xf32>
    %cst_101 = arith.constant dense<0.000000e+00> : vector<32x128xf32>
    %119 = tpu.matmul %5, %118, %cst_101 {dimension_numbers = #tpu.dot_dimension_numbers<[1], [0], [0], [1], [0, 0, 1, 1], [], []>} : vector<32x32xf32>, vector<32x128xf32>, vector<32x128xf32> -> vector<32x128xf32>
    %120 = arith.addf %116, %119 : vector<32x128xf32>
    %c7_102 = arith.constant 7 : index
    %c0_103 = arith.constant 0 : index
    %c0_104 = arith.constant 0 : index
    %121 = vector.load %arg1[%c7_102, %c0_103, %c0_104] : memref<20x32x128xf32, #tpu.memory_space<vmem>>, vector<1x32x128xf32>
    %122 = vector.shape_cast %121 : vector<1x32x128xf32> to vector<32x128xf32>
    %cst_105 = arith.constant dense<0.000000e+00> : vector<32x128xf32>
    %123 = tpu.matmul %7, %122, %cst_105 {dimension_numbers = #tpu.dot_dimension_numbers<[1], [0], [0], [1], [0, 0, 1, 1], [], []>} : vector<32x32xf32>, vector<32x128xf32>, vector<32x128xf32> -> vector<32x128xf32>
    %124 = arith.addf %120, %123 : vector<32x128xf32>
    %c8 = arith.constant 8 : index
    %c0_106 = arith.constant 0 : index
    %c0_107 = arith.constant 0 : index
    %125 = vector.load %arg1[%c8, %c0_106, %c0_107] : memref<20x32x128xf32, #tpu.memory_space<vmem>>, vector<1x32x128xf32>
    %126 = vector.shape_cast %125 : vector<1x32x128xf32> to vector<32x128xf32>
    %cst_108 = arith.constant dense<0.000000e+00> : vector<32x128xf32>
    %127 = tpu.matmul %9, %126, %cst_108 {dimension_numbers = #tpu.dot_dimension_numbers<[1], [0], [0], [1], [0, 0, 1, 1], [], []>} : vector<32x32xf32>, vector<32x128xf32>, vector<32x128xf32> -> vector<32x128xf32>
    %128 = arith.addf %124, %127 : vector<32x128xf32>
    %129 = arith.addf %105, %128 : vector<32x128xf32>
    %130 = arith.mulf %128, %128 : vector<32x128xf32>
    %131 = arith.addf %107, %130 : vector<32x128xf32>
    %132 = arith.maximumf %108, %128 : vector<32x128xf32>
    %133 = arith.minimumf %109, %128 : vector<32x128xf32>
    %c5_109 = arith.constant 5 : index
    %c0_110 = arith.constant 0 : index
    %c0_111 = arith.constant 0 : index
    %134 = vector.load %arg1[%c5_109, %c0_110, %c0_111] : memref<20x32x128xf32, #tpu.memory_space<vmem>>, vector<1x32x128xf32>
    %135 = vector.shape_cast %134 : vector<1x32x128xf32> to vector<32x128xf32>
    %cst_112 = arith.constant dense<0.000000e+00> : vector<32x128xf32>
    %136 = tpu.matmul %1, %135, %cst_112 {dimension_numbers = #tpu.dot_dimension_numbers<[1], [0], [0], [1], [0, 0, 1, 1], [], []>} : vector<32x32xf32>, vector<32x128xf32>, vector<32x128xf32> -> vector<32x128xf32>
    %c6_113 = arith.constant 6 : index
    %c0_114 = arith.constant 0 : index
    %c0_115 = arith.constant 0 : index
    %137 = vector.load %arg1[%c6_113, %c0_114, %c0_115] : memref<20x32x128xf32, #tpu.memory_space<vmem>>, vector<1x32x128xf32>
    %138 = vector.shape_cast %137 : vector<1x32x128xf32> to vector<32x128xf32>
    %cst_116 = arith.constant dense<0.000000e+00> : vector<32x128xf32>
    %139 = tpu.matmul %3, %138, %cst_116 {dimension_numbers = #tpu.dot_dimension_numbers<[1], [0], [0], [1], [0, 0, 1, 1], [], []>} : vector<32x32xf32>, vector<32x128xf32>, vector<32x128xf32> -> vector<32x128xf32>
    %140 = arith.addf %136, %139 : vector<32x128xf32>
    %c7_117 = arith.constant 7 : index
    %c0_118 = arith.constant 0 : index
    %c0_119 = arith.constant 0 : index
    %141 = vector.load %arg1[%c7_117, %c0_118, %c0_119] : memref<20x32x128xf32, #tpu.memory_space<vmem>>, vector<1x32x128xf32>
    %142 = vector.shape_cast %141 : vector<1x32x128xf32> to vector<32x128xf32>
    %cst_120 = arith.constant dense<0.000000e+00> : vector<32x128xf32>
    %143 = tpu.matmul %5, %142, %cst_120 {dimension_numbers = #tpu.dot_dimension_numbers<[1], [0], [0], [1], [0, 0, 1, 1], [], []>} : vector<32x32xf32>, vector<32x128xf32>, vector<32x128xf32> -> vector<32x128xf32>
    %144 = arith.addf %140, %143 : vector<32x128xf32>
    %c8_121 = arith.constant 8 : index
    %c0_122 = arith.constant 0 : index
    %c0_123 = arith.constant 0 : index
    %145 = vector.load %arg1[%c8_121, %c0_122, %c0_123] : memref<20x32x128xf32, #tpu.memory_space<vmem>>, vector<1x32x128xf32>
    %146 = vector.shape_cast %145 : vector<1x32x128xf32> to vector<32x128xf32>
    %cst_124 = arith.constant dense<0.000000e+00> : vector<32x128xf32>
    %147 = tpu.matmul %7, %146, %cst_124 {dimension_numbers = #tpu.dot_dimension_numbers<[1], [0], [0], [1], [0, 0, 1, 1], [], []>} : vector<32x32xf32>, vector<32x128xf32>, vector<32x128xf32> -> vector<32x128xf32>
    %148 = arith.addf %144, %147 : vector<32x128xf32>
    %c9 = arith.constant 9 : index
    %c0_125 = arith.constant 0 : index
    %c0_126 = arith.constant 0 : index
    %149 = vector.load %arg1[%c9, %c0_125, %c0_126] : memref<20x32x128xf32, #tpu.memory_space<vmem>>, vector<1x32x128xf32>
    %150 = vector.shape_cast %149 : vector<1x32x128xf32> to vector<32x128xf32>
    %cst_127 = arith.constant dense<0.000000e+00> : vector<32x128xf32>
    %151 = tpu.matmul %9, %150, %cst_127 {dimension_numbers = #tpu.dot_dimension_numbers<[1], [0], [0], [1], [0, 0, 1, 1], [], []>} : vector<32x32xf32>, vector<32x128xf32>, vector<32x128xf32> -> vector<32x128xf32>
    %152 = arith.addf %148, %151 : vector<32x128xf32>
    %153 = arith.addf %129, %152 : vector<32x128xf32>
    %154 = arith.mulf %152, %152 : vector<32x128xf32>
    %155 = arith.addf %131, %154 : vector<32x128xf32>
    %156 = arith.maximumf %132, %152 : vector<32x128xf32>
    %157 = arith.minimumf %133, %152 : vector<32x128xf32>
    %c6_128 = arith.constant 6 : index
    %c0_129 = arith.constant 0 : index
    %c0_130 = arith.constant 0 : index
    %158 = vector.load %arg1[%c6_128, %c0_129, %c0_130] : memref<20x32x128xf32, #tpu.memory_space<vmem>>, vector<1x32x128xf32>
    %159 = vector.shape_cast %158 : vector<1x32x128xf32> to vector<32x128xf32>
    %cst_131 = arith.constant dense<0.000000e+00> : vector<32x128xf32>
    %160 = tpu.matmul %1, %159, %cst_131 {dimension_numbers = #tpu.dot_dimension_numbers<[1], [0], [0], [1], [0, 0, 1, 1], [], []>} : vector<32x32xf32>, vector<32x128xf32>, vector<32x128xf32> -> vector<32x128xf32>
    %c7_132 = arith.constant 7 : index
    %c0_133 = arith.constant 0 : index
    %c0_134 = arith.constant 0 : index
    %161 = vector.load %arg1[%c7_132, %c0_133, %c0_134] : memref<20x32x128xf32, #tpu.memory_space<vmem>>, vector<1x32x128xf32>
    %162 = vector.shape_cast %161 : vector<1x32x128xf32> to vector<32x128xf32>
    %cst_135 = arith.constant dense<0.000000e+00> : vector<32x128xf32>
    %163 = tpu.matmul %3, %162, %cst_135 {dimension_numbers = #tpu.dot_dimension_numbers<[1], [0], [0], [1], [0, 0, 1, 1], [], []>} : vector<32x32xf32>, vector<32x128xf32>, vector<32x128xf32> -> vector<32x128xf32>
    %164 = arith.addf %160, %163 : vector<32x128xf32>
    %c8_136 = arith.constant 8 : index
    %c0_137 = arith.constant 0 : index
    %c0_138 = arith.constant 0 : index
    %165 = vector.load %arg1[%c8_136, %c0_137, %c0_138] : memref<20x32x128xf32, #tpu.memory_space<vmem>>, vector<1x32x128xf32>
    %166 = vector.shape_cast %165 : vector<1x32x128xf32> to vector<32x128xf32>
    %cst_139 = arith.constant dense<0.000000e+00> : vector<32x128xf32>
    %167 = tpu.matmul %5, %166, %cst_139 {dimension_numbers = #tpu.dot_dimension_numbers<[1], [0], [0], [1], [0, 0, 1, 1], [], []>} : vector<32x32xf32>, vector<32x128xf32>, vector<32x128xf32> -> vector<32x128xf32>
    %168 = arith.addf %164, %167 : vector<32x128xf32>
    %c9_140 = arith.constant 9 : index
    %c0_141 = arith.constant 0 : index
    %c0_142 = arith.constant 0 : index
    %169 = vector.load %arg1[%c9_140, %c0_141, %c0_142] : memref<20x32x128xf32, #tpu.memory_space<vmem>>, vector<1x32x128xf32>
    %170 = vector.shape_cast %169 : vector<1x32x128xf32> to vector<32x128xf32>
    %cst_143 = arith.constant dense<0.000000e+00> : vector<32x128xf32>
    %171 = tpu.matmul %7, %170, %cst_143 {dimension_numbers = #tpu.dot_dimension_numbers<[1], [0], [0], [1], [0, 0, 1, 1], [], []>} : vector<32x32xf32>, vector<32x128xf32>, vector<32x128xf32> -> vector<32x128xf32>
    %172 = arith.addf %168, %171 : vector<32x128xf32>
    %c10 = arith.constant 10 : index
    %c0_144 = arith.constant 0 : index
    %c0_145 = arith.constant 0 : index
    %173 = vector.load %arg1[%c10, %c0_144, %c0_145] : memref<20x32x128xf32, #tpu.memory_space<vmem>>, vector<1x32x128xf32>
    %174 = vector.shape_cast %173 : vector<1x32x128xf32> to vector<32x128xf32>
    %cst_146 = arith.constant dense<0.000000e+00> : vector<32x128xf32>
    %175 = tpu.matmul %9, %174, %cst_146 {dimension_numbers = #tpu.dot_dimension_numbers<[1], [0], [0], [1], [0, 0, 1, 1], [], []>} : vector<32x32xf32>, vector<32x128xf32>, vector<32x128xf32> -> vector<32x128xf32>
    %176 = arith.addf %172, %175 : vector<32x128xf32>
    %177 = arith.addf %153, %176 : vector<32x128xf32>
    %178 = arith.mulf %176, %176 : vector<32x128xf32>
    %179 = arith.addf %155, %178 : vector<32x128xf32>
    %180 = arith.maximumf %156, %176 : vector<32x128xf32>
    %181 = arith.minimumf %157, %176 : vector<32x128xf32>
    %c7_147 = arith.constant 7 : index
    %c0_148 = arith.constant 0 : index
    %c0_149 = arith.constant 0 : index
    %182 = vector.load %arg1[%c7_147, %c0_148, %c0_149] : memref<20x32x128xf32, #tpu.memory_space<vmem>>, vector<1x32x128xf32>
    %183 = vector.shape_cast %182 : vector<1x32x128xf32> to vector<32x128xf32>
    %cst_150 = arith.constant dense<0.000000e+00> : vector<32x128xf32>
    %184 = tpu.matmul %1, %183, %cst_150 {dimension_numbers = #tpu.dot_dimension_numbers<[1], [0], [0], [1], [0, 0, 1, 1], [], []>} : vector<32x32xf32>, vector<32x128xf32>, vector<32x128xf32> -> vector<32x128xf32>
    %c8_151 = arith.constant 8 : index
    %c0_152 = arith.constant 0 : index
    %c0_153 = arith.constant 0 : index
    %185 = vector.load %arg1[%c8_151, %c0_152, %c0_153] : memref<20x32x128xf32, #tpu.memory_space<vmem>>, vector<1x32x128xf32>
    %186 = vector.shape_cast %185 : vector<1x32x128xf32> to vector<32x128xf32>
    %cst_154 = arith.constant dense<0.000000e+00> : vector<32x128xf32>
    %187 = tpu.matmul %3, %186, %cst_154 {dimension_numbers = #tpu.dot_dimension_numbers<[1], [0], [0], [1], [0, 0, 1, 1], [], []>} : vector<32x32xf32>, vector<32x128xf32>, vector<32x128xf32> -> vector<32x128xf32>
    %188 = arith.addf %184, %187 : vector<32x128xf32>
    %c9_155 = arith.constant 9 : index
    %c0_156 = arith.constant 0 : index
    %c0_157 = arith.constant 0 : index
    %189 = vector.load %arg1[%c9_155, %c0_156, %c0_157] : memref<20x32x128xf32, #tpu.memory_space<vmem>>, vector<1x32x128xf32>
    %190 = vector.shape_cast %189 : vector<1x32x128xf32> to vector<32x128xf32>
    %cst_158 = arith.constant dense<0.000000e+00> : vector<32x128xf32>
    %191 = tpu.matmul %5, %190, %cst_158 {dimension_numbers = #tpu.dot_dimension_numbers<[1], [0], [0], [1], [0, 0, 1, 1], [], []>} : vector<32x32xf32>, vector<32x128xf32>, vector<32x128xf32> -> vector<32x128xf32>
    %192 = arith.addf %188, %191 : vector<32x128xf32>
    %c10_159 = arith.constant 10 : index
    %c0_160 = arith.constant 0 : index
    %c0_161 = arith.constant 0 : index
    %193 = vector.load %arg1[%c10_159, %c0_160, %c0_161] : memref<20x32x128xf32, #tpu.memory_space<vmem>>, vector<1x32x128xf32>
    %194 = vector.shape_cast %193 : vector<1x32x128xf32> to vector<32x128xf32>
    %cst_162 = arith.constant dense<0.000000e+00> : vector<32x128xf32>
    %195 = tpu.matmul %7, %194, %cst_162 {dimension_numbers = #tpu.dot_dimension_numbers<[1], [0], [0], [1], [0, 0, 1, 1], [], []>} : vector<32x32xf32>, vector<32x128xf32>, vector<32x128xf32> -> vector<32x128xf32>
    %196 = arith.addf %192, %195 : vector<32x128xf32>
    %c11 = arith.constant 11 : index
    %c0_163 = arith.constant 0 : index
    %c0_164 = arith.constant 0 : index
    %197 = vector.load %arg1[%c11, %c0_163, %c0_164] : memref<20x32x128xf32, #tpu.memory_space<vmem>>, vector<1x32x128xf32>
    %198 = vector.shape_cast %197 : vector<1x32x128xf32> to vector<32x128xf32>
    %cst_165 = arith.constant dense<0.000000e+00> : vector<32x128xf32>
    %199 = tpu.matmul %9, %198, %cst_165 {dimension_numbers = #tpu.dot_dimension_numbers<[1], [0], [0], [1], [0, 0, 1, 1], [], []>} : vector<32x32xf32>, vector<32x128xf32>, vector<32x128xf32> -> vector<32x128xf32>
    %200 = arith.addf %196, %199 : vector<32x128xf32>
    %201 = arith.addf %177, %200 : vector<32x128xf32>
    %202 = arith.mulf %200, %200 : vector<32x128xf32>
    %203 = arith.addf %179, %202 : vector<32x128xf32>
    %204 = arith.maximumf %180, %200 : vector<32x128xf32>
    %205 = arith.minimumf %181, %200 : vector<32x128xf32>
    %c8_166 = arith.constant 8 : index
    %c0_167 = arith.constant 0 : index
    %c0_168 = arith.constant 0 : index
    %206 = vector.load %arg1[%c8_166, %c0_167, %c0_168] : memref<20x32x128xf32, #tpu.memory_space<vmem>>, vector<1x32x128xf32>
    %207 = vector.shape_cast %206 : vector<1x32x128xf32> to vector<32x128xf32>
    %cst_169 = arith.constant dense<0.000000e+00> : vector<32x128xf32>
    %208 = tpu.matmul %1, %207, %cst_169 {dimension_numbers = #tpu.dot_dimension_numbers<[1], [0], [0], [1], [0, 0, 1, 1], [], []>} : vector<32x32xf32>, vector<32x128xf32>, vector<32x128xf32> -> vector<32x128xf32>
    %c9_170 = arith.constant 9 : index
    %c0_171 = arith.constant 0 : index
    %c0_172 = arith.constant 0 : index
    %209 = vector.load %arg1[%c9_170, %c0_171, %c0_172] : memref<20x32x128xf32, #tpu.memory_space<vmem>>, vector<1x32x128xf32>
    %210 = vector.shape_cast %209 : vector<1x32x128xf32> to vector<32x128xf32>
    %cst_173 = arith.constant dense<0.000000e+00> : vector<32x128xf32>
    %211 = tpu.matmul %3, %210, %cst_173 {dimension_numbers = #tpu.dot_dimension_numbers<[1], [0], [0], [1], [0, 0, 1, 1], [], []>} : vector<32x32xf32>, vector<32x128xf32>, vector<32x128xf32> -> vector<32x128xf32>
    %212 = arith.addf %208, %211 : vector<32x128xf32>
    %c10_174 = arith.constant 10 : index
    %c0_175 = arith.constant 0 : index
    %c0_176 = arith.constant 0 : index
    %213 = vector.load %arg1[%c10_174, %c0_175, %c0_176] : memref<20x32x128xf32, #tpu.memory_space<vmem>>, vector<1x32x128xf32>
    %214 = vector.shape_cast %213 : vector<1x32x128xf32> to vector<32x128xf32>
    %cst_177 = arith.constant dense<0.000000e+00> : vector<32x128xf32>
    %215 = tpu.matmul %5, %214, %cst_177 {dimension_numbers = #tpu.dot_dimension_numbers<[1], [0], [0], [1], [0, 0, 1, 1], [], []>} : vector<32x32xf32>, vector<32x128xf32>, vector<32x128xf32> -> vector<32x128xf32>
    %216 = arith.addf %212, %215 : vector<32x128xf32>
    %c11_178 = arith.constant 11 : index
    %c0_179 = arith.constant 0 : index
    %c0_180 = arith.constant 0 : index
    %217 = vector.load %arg1[%c11_178, %c0_179, %c0_180] : memref<20x32x128xf32, #tpu.memory_space<vmem>>, vector<1x32x128xf32>
    %218 = vector.shape_cast %217 : vector<1x32x128xf32> to vector<32x128xf32>
    %cst_181 = arith.constant dense<0.000000e+00> : vector<32x128xf32>
    %219 = tpu.matmul %7, %218, %cst_181 {dimension_numbers = #tpu.dot_dimension_numbers<[1], [0], [0], [1], [0, 0, 1, 1], [], []>} : vector<32x32xf32>, vector<32x128xf32>, vector<32x128xf32> -> vector<32x128xf32>
    %220 = arith.addf %216, %219 : vector<32x128xf32>
    %c12 = arith.constant 12 : index
    %c0_182 = arith.constant 0 : index
    %c0_183 = arith.constant 0 : index
    %221 = vector.load %arg1[%c12, %c0_182, %c0_183] : memref<20x32x128xf32, #tpu.memory_space<vmem>>, vector<1x32x128xf32>
    %222 = vector.shape_cast %221 : vector<1x32x128xf32> to vector<32x128xf32>
    %cst_184 = arith.constant dense<0.000000e+00> : vector<32x128xf32>
    %223 = tpu.matmul %9, %222, %cst_184 {dimension_numbers = #tpu.dot_dimension_numbers<[1], [0], [0], [1], [0, 0, 1, 1], [], []>} : vector<32x32xf32>, vector<32x128xf32>, vector<32x128xf32> -> vector<32x128xf32>
    %224 = arith.addf %220, %223 : vector<32x128xf32>
    %225 = arith.addf %201, %224 : vector<32x128xf32>
    %226 = arith.mulf %224, %224 : vector<32x128xf32>
    %227 = arith.addf %203, %226 : vector<32x128xf32>
    %228 = arith.maximumf %204, %224 : vector<32x128xf32>
    %229 = arith.minimumf %205, %224 : vector<32x128xf32>
    %c9_185 = arith.constant 9 : index
    %c0_186 = arith.constant 0 : index
    %c0_187 = arith.constant 0 : index
    %230 = vector.load %arg1[%c9_185, %c0_186, %c0_187] : memref<20x32x128xf32, #tpu.memory_space<vmem>>, vector<1x32x128xf32>
    %231 = vector.shape_cast %230 : vector<1x32x128xf32> to vector<32x128xf32>
    %cst_188 = arith.constant dense<0.000000e+00> : vector<32x128xf32>
    %232 = tpu.matmul %1, %231, %cst_188 {dimension_numbers = #tpu.dot_dimension_numbers<[1], [0], [0], [1], [0, 0, 1, 1], [], []>} : vector<32x32xf32>, vector<32x128xf32>, vector<32x128xf32> -> vector<32x128xf32>
    %c10_189 = arith.constant 10 : index
    %c0_190 = arith.constant 0 : index
    %c0_191 = arith.constant 0 : index
    %233 = vector.load %arg1[%c10_189, %c0_190, %c0_191] : memref<20x32x128xf32, #tpu.memory_space<vmem>>, vector<1x32x128xf32>
    %234 = vector.shape_cast %233 : vector<1x32x128xf32> to vector<32x128xf32>
    %cst_192 = arith.constant dense<0.000000e+00> : vector<32x128xf32>
    %235 = tpu.matmul %3, %234, %cst_192 {dimension_numbers = #tpu.dot_dimension_numbers<[1], [0], [0], [1], [0, 0, 1, 1], [], []>} : vector<32x32xf32>, vector<32x128xf32>, vector<32x128xf32> -> vector<32x128xf32>
    %236 = arith.addf %232, %235 : vector<32x128xf32>
    %c11_193 = arith.constant 11 : index
    %c0_194 = arith.constant 0 : index
    %c0_195 = arith.constant 0 : index
    %237 = vector.load %arg1[%c11_193, %c0_194, %c0_195] : memref<20x32x128xf32, #tpu.memory_space<vmem>>, vector<1x32x128xf32>
    %238 = vector.shape_cast %237 : vector<1x32x128xf32> to vector<32x128xf32>
    %cst_196 = arith.constant dense<0.000000e+00> : vector<32x128xf32>
    %239 = tpu.matmul %5, %238, %cst_196 {dimension_numbers = #tpu.dot_dimension_numbers<[1], [0], [0], [1], [0, 0, 1, 1], [], []>} : vector<32x32xf32>, vector<32x128xf32>, vector<32x128xf32> -> vector<32x128xf32>
    %240 = arith.addf %236, %239 : vector<32x128xf32>
    %c12_197 = arith.constant 12 : index
    %c0_198 = arith.constant 0 : index
    %c0_199 = arith.constant 0 : index
    %241 = vector.load %arg1[%c12_197, %c0_198, %c0_199] : memref<20x32x128xf32, #tpu.memory_space<vmem>>, vector<1x32x128xf32>
    %242 = vector.shape_cast %241 : vector<1x32x128xf32> to vector<32x128xf32>
    %cst_200 = arith.constant dense<0.000000e+00> : vector<32x128xf32>
    %243 = tpu.matmul %7, %242, %cst_200 {dimension_numbers = #tpu.dot_dimension_numbers<[1], [0], [0], [1], [0, 0, 1, 1], [], []>} : vector<32x32xf32>, vector<32x128xf32>, vector<32x128xf32> -> vector<32x128xf32>
    %244 = arith.addf %240, %243 : vector<32x128xf32>
    %c13 = arith.constant 13 : index
    %c0_201 = arith.constant 0 : index
    %c0_202 = arith.constant 0 : index
    %245 = vector.load %arg1[%c13, %c0_201, %c0_202] : memref<20x32x128xf32, #tpu.memory_space<vmem>>, vector<1x32x128xf32>
    %246 = vector.shape_cast %245 : vector<1x32x128xf32> to vector<32x128xf32>
    %cst_203 = arith.constant dense<0.000000e+00> : vector<32x128xf32>
    %247 = tpu.matmul %9, %246, %cst_203 {dimension_numbers = #tpu.dot_dimension_numbers<[1], [0], [0], [1], [0, 0, 1, 1], [], []>} : vector<32x32xf32>, vector<32x128xf32>, vector<32x128xf32> -> vector<32x128xf32>
    %248 = arith.addf %244, %247 : vector<32x128xf32>
    %249 = arith.addf %225, %248 : vector<32x128xf32>
    %250 = arith.mulf %248, %248 : vector<32x128xf32>
    %251 = arith.addf %227, %250 : vector<32x128xf32>
    %252 = arith.maximumf %228, %248 : vector<32x128xf32>
    %253 = arith.minimumf %229, %248 : vector<32x128xf32>
    %c10_204 = arith.constant 10 : index
    %c0_205 = arith.constant 0 : index
    %c0_206 = arith.constant 0 : index
    %254 = vector.load %arg1[%c10_204, %c0_205, %c0_206] : memref<20x32x128xf32, #tpu.memory_space<vmem>>, vector<1x32x128xf32>
    %255 = vector.shape_cast %254 : vector<1x32x128xf32> to vector<32x128xf32>
    %cst_207 = arith.constant dense<0.000000e+00> : vector<32x128xf32>
    %256 = tpu.matmul %1, %255, %cst_207 {dimension_numbers = #tpu.dot_dimension_numbers<[1], [0], [0], [1], [0, 0, 1, 1], [], []>} : vector<32x32xf32>, vector<32x128xf32>, vector<32x128xf32> -> vector<32x128xf32>
    %c11_208 = arith.constant 11 : index
    %c0_209 = arith.constant 0 : index
    %c0_210 = arith.constant 0 : index
    %257 = vector.load %arg1[%c11_208, %c0_209, %c0_210] : memref<20x32x128xf32, #tpu.memory_space<vmem>>, vector<1x32x128xf32>
    %258 = vector.shape_cast %257 : vector<1x32x128xf32> to vector<32x128xf32>
    %cst_211 = arith.constant dense<0.000000e+00> : vector<32x128xf32>
    %259 = tpu.matmul %3, %258, %cst_211 {dimension_numbers = #tpu.dot_dimension_numbers<[1], [0], [0], [1], [0, 0, 1, 1], [], []>} : vector<32x32xf32>, vector<32x128xf32>, vector<32x128xf32> -> vector<32x128xf32>
    %260 = arith.addf %256, %259 : vector<32x128xf32>
    %c12_212 = arith.constant 12 : index
    %c0_213 = arith.constant 0 : index
    %c0_214 = arith.constant 0 : index
    %261 = vector.load %arg1[%c12_212, %c0_213, %c0_214] : memref<20x32x128xf32, #tpu.memory_space<vmem>>, vector<1x32x128xf32>
    %262 = vector.shape_cast %261 : vector<1x32x128xf32> to vector<32x128xf32>
    %cst_215 = arith.constant dense<0.000000e+00> : vector<32x128xf32>
    %263 = tpu.matmul %5, %262, %cst_215 {dimension_numbers = #tpu.dot_dimension_numbers<[1], [0], [0], [1], [0, 0, 1, 1], [], []>} : vector<32x32xf32>, vector<32x128xf32>, vector<32x128xf32> -> vector<32x128xf32>
    %264 = arith.addf %260, %263 : vector<32x128xf32>
    %c13_216 = arith.constant 13 : index
    %c0_217 = arith.constant 0 : index
    %c0_218 = arith.constant 0 : index
    %265 = vector.load %arg1[%c13_216, %c0_217, %c0_218] : memref<20x32x128xf32, #tpu.memory_space<vmem>>, vector<1x32x128xf32>
    %266 = vector.shape_cast %265 : vector<1x32x128xf32> to vector<32x128xf32>
    %cst_219 = arith.constant dense<0.000000e+00> : vector<32x128xf32>
    %267 = tpu.matmul %7, %266, %cst_219 {dimension_numbers = #tpu.dot_dimension_numbers<[1], [0], [0], [1], [0, 0, 1, 1], [], []>} : vector<32x32xf32>, vector<32x128xf32>, vector<32x128xf32> -> vector<32x128xf32>
    %268 = arith.addf %264, %267 : vector<32x128xf32>
    %c14 = arith.constant 14 : index
    %c0_220 = arith.constant 0 : index
    %c0_221 = arith.constant 0 : index
    %269 = vector.load %arg1[%c14, %c0_220, %c0_221] : memref<20x32x128xf32, #tpu.memory_space<vmem>>, vector<1x32x128xf32>
    %270 = vector.shape_cast %269 : vector<1x32x128xf32> to vector<32x128xf32>
    %cst_222 = arith.constant dense<0.000000e+00> : vector<32x128xf32>
    %271 = tpu.matmul %9, %270, %cst_222 {dimension_numbers = #tpu.dot_dimension_numbers<[1], [0], [0], [1], [0, 0, 1, 1], [], []>} : vector<32x32xf32>, vector<32x128xf32>, vector<32x128xf32> -> vector<32x128xf32>
    %272 = arith.addf %268, %271 : vector<32x128xf32>
    %273 = arith.addf %249, %272 : vector<32x128xf32>
    %274 = arith.mulf %272, %272 : vector<32x128xf32>
    %275 = arith.addf %251, %274 : vector<32x128xf32>
    %276 = arith.maximumf %252, %272 : vector<32x128xf32>
    %277 = arith.minimumf %253, %272 : vector<32x128xf32>
    %c11_223 = arith.constant 11 : index
    %c0_224 = arith.constant 0 : index
    %c0_225 = arith.constant 0 : index
    %278 = vector.load %arg1[%c11_223, %c0_224, %c0_225] : memref<20x32x128xf32, #tpu.memory_space<vmem>>, vector<1x32x128xf32>
    %279 = vector.shape_cast %278 : vector<1x32x128xf32> to vector<32x128xf32>
    %cst_226 = arith.constant dense<0.000000e+00> : vector<32x128xf32>
    %280 = tpu.matmul %1, %279, %cst_226 {dimension_numbers = #tpu.dot_dimension_numbers<[1], [0], [0], [1], [0, 0, 1, 1], [], []>} : vector<32x32xf32>, vector<32x128xf32>, vector<32x128xf32> -> vector<32x128xf32>
    %c12_227 = arith.constant 12 : index
    %c0_228 = arith.constant 0 : index
    %c0_229 = arith.constant 0 : index
    %281 = vector.load %arg1[%c12_227, %c0_228, %c0_229] : memref<20x32x128xf32, #tpu.memory_space<vmem>>, vector<1x32x128xf32>
    %282 = vector.shape_cast %281 : vector<1x32x128xf32> to vector<32x128xf32>
    %cst_230 = arith.constant dense<0.000000e+00> : vector<32x128xf32>
    %283 = tpu.matmul %3, %282, %cst_230 {dimension_numbers = #tpu.dot_dimension_numbers<[1], [0], [0], [1], [0, 0, 1, 1], [], []>} : vector<32x32xf32>, vector<32x128xf32>, vector<32x128xf32> -> vector<32x128xf32>
    %284 = arith.addf %280, %283 : vector<32x128xf32>
    %c13_231 = arith.constant 13 : index
    %c0_232 = arith.constant 0 : index
    %c0_233 = arith.constant 0 : index
    %285 = vector.load %arg1[%c13_231, %c0_232, %c0_233] : memref<20x32x128xf32, #tpu.memory_space<vmem>>, vector<1x32x128xf32>
    %286 = vector.shape_cast %285 : vector<1x32x128xf32> to vector<32x128xf32>
    %cst_234 = arith.constant dense<0.000000e+00> : vector<32x128xf32>
    %287 = tpu.matmul %5, %286, %cst_234 {dimension_numbers = #tpu.dot_dimension_numbers<[1], [0], [0], [1], [0, 0, 1, 1], [], []>} : vector<32x32xf32>, vector<32x128xf32>, vector<32x128xf32> -> vector<32x128xf32>
    %288 = arith.addf %284, %287 : vector<32x128xf32>
    %c14_235 = arith.constant 14 : index
    %c0_236 = arith.constant 0 : index
    %c0_237 = arith.constant 0 : index
    %289 = vector.load %arg1[%c14_235, %c0_236, %c0_237] : memref<20x32x128xf32, #tpu.memory_space<vmem>>, vector<1x32x128xf32>
    %290 = vector.shape_cast %289 : vector<1x32x128xf32> to vector<32x128xf32>
    %cst_238 = arith.constant dense<0.000000e+00> : vector<32x128xf32>
    %291 = tpu.matmul %7, %290, %cst_238 {dimension_numbers = #tpu.dot_dimension_numbers<[1], [0], [0], [1], [0, 0, 1, 1], [], []>} : vector<32x32xf32>, vector<32x128xf32>, vector<32x128xf32> -> vector<32x128xf32>
    %292 = arith.addf %288, %291 : vector<32x128xf32>
    %c15 = arith.constant 15 : index
    %c0_239 = arith.constant 0 : index
    %c0_240 = arith.constant 0 : index
    %293 = vector.load %arg1[%c15, %c0_239, %c0_240] : memref<20x32x128xf32, #tpu.memory_space<vmem>>, vector<1x32x128xf32>
    %294 = vector.shape_cast %293 : vector<1x32x128xf32> to vector<32x128xf32>
    %cst_241 = arith.constant dense<0.000000e+00> : vector<32x128xf32>
    %295 = tpu.matmul %9, %294, %cst_241 {dimension_numbers = #tpu.dot_dimension_numbers<[1], [0], [0], [1], [0, 0, 1, 1], [], []>} : vector<32x32xf32>, vector<32x128xf32>, vector<32x128xf32> -> vector<32x128xf32>
    %296 = arith.addf %292, %295 : vector<32x128xf32>
    %297 = arith.addf %273, %296 : vector<32x128xf32>
    %298 = arith.mulf %296, %296 : vector<32x128xf32>
    %299 = arith.addf %275, %298 : vector<32x128xf32>
    %300 = arith.maximumf %276, %296 : vector<32x128xf32>
    %301 = arith.minimumf %277, %296 : vector<32x128xf32>
    %c12_242 = arith.constant 12 : index
    %c0_243 = arith.constant 0 : index
    %c0_244 = arith.constant 0 : index
    %302 = vector.load %arg1[%c12_242, %c0_243, %c0_244] : memref<20x32x128xf32, #tpu.memory_space<vmem>>, vector<1x32x128xf32>
    %303 = vector.shape_cast %302 : vector<1x32x128xf32> to vector<32x128xf32>
    %cst_245 = arith.constant dense<0.000000e+00> : vector<32x128xf32>
    %304 = tpu.matmul %1, %303, %cst_245 {dimension_numbers = #tpu.dot_dimension_numbers<[1], [0], [0], [1], [0, 0, 1, 1], [], []>} : vector<32x32xf32>, vector<32x128xf32>, vector<32x128xf32> -> vector<32x128xf32>
    %c13_246 = arith.constant 13 : index
    %c0_247 = arith.constant 0 : index
    %c0_248 = arith.constant 0 : index
    %305 = vector.load %arg1[%c13_246, %c0_247, %c0_248] : memref<20x32x128xf32, #tpu.memory_space<vmem>>, vector<1x32x128xf32>
    %306 = vector.shape_cast %305 : vector<1x32x128xf32> to vector<32x128xf32>
    %cst_249 = arith.constant dense<0.000000e+00> : vector<32x128xf32>
    %307 = tpu.matmul %3, %306, %cst_249 {dimension_numbers = #tpu.dot_dimension_numbers<[1], [0], [0], [1], [0, 0, 1, 1], [], []>} : vector<32x32xf32>, vector<32x128xf32>, vector<32x128xf32> -> vector<32x128xf32>
    %308 = arith.addf %304, %307 : vector<32x128xf32>
    %c14_250 = arith.constant 14 : index
    %c0_251 = arith.constant 0 : index
    %c0_252 = arith.constant 0 : index
    %309 = vector.load %arg1[%c14_250, %c0_251, %c0_252] : memref<20x32x128xf32, #tpu.memory_space<vmem>>, vector<1x32x128xf32>
    %310 = vector.shape_cast %309 : vector<1x32x128xf32> to vector<32x128xf32>
    %cst_253 = arith.constant dense<0.000000e+00> : vector<32x128xf32>
    %311 = tpu.matmul %5, %310, %cst_253 {dimension_numbers = #tpu.dot_dimension_numbers<[1], [0], [0], [1], [0, 0, 1, 1], [], []>} : vector<32x32xf32>, vector<32x128xf32>, vector<32x128xf32> -> vector<32x128xf32>
    %312 = arith.addf %308, %311 : vector<32x128xf32>
    %c15_254 = arith.constant 15 : index
    %c0_255 = arith.constant 0 : index
    %c0_256 = arith.constant 0 : index
    %313 = vector.load %arg1[%c15_254, %c0_255, %c0_256] : memref<20x32x128xf32, #tpu.memory_space<vmem>>, vector<1x32x128xf32>
    %314 = vector.shape_cast %313 : vector<1x32x128xf32> to vector<32x128xf32>
    %cst_257 = arith.constant dense<0.000000e+00> : vector<32x128xf32>
    %315 = tpu.matmul %7, %314, %cst_257 {dimension_numbers = #tpu.dot_dimension_numbers<[1], [0], [0], [1], [0, 0, 1, 1], [], []>} : vector<32x32xf32>, vector<32x128xf32>, vector<32x128xf32> -> vector<32x128xf32>
    %316 = arith.addf %312, %315 : vector<32x128xf32>
    %c16 = arith.constant 16 : index
    %c0_258 = arith.constant 0 : index
    %c0_259 = arith.constant 0 : index
    %317 = vector.load %arg1[%c16, %c0_258, %c0_259] : memref<20x32x128xf32, #tpu.memory_space<vmem>>, vector<1x32x128xf32>
    %318 = vector.shape_cast %317 : vector<1x32x128xf32> to vector<32x128xf32>
    %cst_260 = arith.constant dense<0.000000e+00> : vector<32x128xf32>
    %319 = tpu.matmul %9, %318, %cst_260 {dimension_numbers = #tpu.dot_dimension_numbers<[1], [0], [0], [1], [0, 0, 1, 1], [], []>} : vector<32x32xf32>, vector<32x128xf32>, vector<32x128xf32> -> vector<32x128xf32>
    %320 = arith.addf %316, %319 : vector<32x128xf32>
    %321 = arith.addf %297, %320 : vector<32x128xf32>
    %322 = arith.mulf %320, %320 : vector<32x128xf32>
    %323 = arith.addf %299, %322 : vector<32x128xf32>
    %324 = arith.maximumf %300, %320 : vector<32x128xf32>
    %325 = arith.minimumf %301, %320 : vector<32x128xf32>
    %c13_261 = arith.constant 13 : index
    %c0_262 = arith.constant 0 : index
    %c0_263 = arith.constant 0 : index
    %326 = vector.load %arg1[%c13_261, %c0_262, %c0_263] : memref<20x32x128xf32, #tpu.memory_space<vmem>>, vector<1x32x128xf32>
    %327 = vector.shape_cast %326 : vector<1x32x128xf32> to vector<32x128xf32>
    %cst_264 = arith.constant dense<0.000000e+00> : vector<32x128xf32>
    %328 = tpu.matmul %1, %327, %cst_264 {dimension_numbers = #tpu.dot_dimension_numbers<[1], [0], [0], [1], [0, 0, 1, 1], [], []>} : vector<32x32xf32>, vector<32x128xf32>, vector<32x128xf32> -> vector<32x128xf32>
    %c14_265 = arith.constant 14 : index
    %c0_266 = arith.constant 0 : index
    %c0_267 = arith.constant 0 : index
    %329 = vector.load %arg1[%c14_265, %c0_266, %c0_267] : memref<20x32x128xf32, #tpu.memory_space<vmem>>, vector<1x32x128xf32>
    %330 = vector.shape_cast %329 : vector<1x32x128xf32> to vector<32x128xf32>
    %cst_268 = arith.constant dense<0.000000e+00> : vector<32x128xf32>
    %331 = tpu.matmul %3, %330, %cst_268 {dimension_numbers = #tpu.dot_dimension_numbers<[1], [0], [0], [1], [0, 0, 1, 1], [], []>} : vector<32x32xf32>, vector<32x128xf32>, vector<32x128xf32> -> vector<32x128xf32>
    %332 = arith.addf %328, %331 : vector<32x128xf32>
    %c15_269 = arith.constant 15 : index
    %c0_270 = arith.constant 0 : index
    %c0_271 = arith.constant 0 : index
    %333 = vector.load %arg1[%c15_269, %c0_270, %c0_271] : memref<20x32x128xf32, #tpu.memory_space<vmem>>, vector<1x32x128xf32>
    %334 = vector.shape_cast %333 : vector<1x32x128xf32> to vector<32x128xf32>
    %cst_272 = arith.constant dense<0.000000e+00> : vector<32x128xf32>
    %335 = tpu.matmul %5, %334, %cst_272 {dimension_numbers = #tpu.dot_dimension_numbers<[1], [0], [0], [1], [0, 0, 1, 1], [], []>} : vector<32x32xf32>, vector<32x128xf32>, vector<32x128xf32> -> vector<32x128xf32>
    %336 = arith.addf %332, %335 : vector<32x128xf32>
    %c16_273 = arith.constant 16 : index
    %c0_274 = arith.constant 0 : index
    %c0_275 = arith.constant 0 : index
    %337 = vector.load %arg1[%c16_273, %c0_274, %c0_275] : memref<20x32x128xf32, #tpu.memory_space<vmem>>, vector<1x32x128xf32>
    %338 = vector.shape_cast %337 : vector<1x32x128xf32> to vector<32x128xf32>
    %cst_276 = arith.constant dense<0.000000e+00> : vector<32x128xf32>
    %339 = tpu.matmul %7, %338, %cst_276 {dimension_numbers = #tpu.dot_dimension_numbers<[1], [0], [0], [1], [0, 0, 1, 1], [], []>} : vector<32x32xf32>, vector<32x128xf32>, vector<32x128xf32> -> vector<32x128xf32>
    %340 = arith.addf %336, %339 : vector<32x128xf32>
    %c17 = arith.constant 17 : index
    %c0_277 = arith.constant 0 : index
    %c0_278 = arith.constant 0 : index
    %341 = vector.load %arg1[%c17, %c0_277, %c0_278] : memref<20x32x128xf32, #tpu.memory_space<vmem>>, vector<1x32x128xf32>
    %342 = vector.shape_cast %341 : vector<1x32x128xf32> to vector<32x128xf32>
    %cst_279 = arith.constant dense<0.000000e+00> : vector<32x128xf32>
    %343 = tpu.matmul %9, %342, %cst_279 {dimension_numbers = #tpu.dot_dimension_numbers<[1], [0], [0], [1], [0, 0, 1, 1], [], []>} : vector<32x32xf32>, vector<32x128xf32>, vector<32x128xf32> -> vector<32x128xf32>
    %344 = arith.addf %340, %343 : vector<32x128xf32>
    %345 = arith.addf %321, %344 : vector<32x128xf32>
    %346 = arith.mulf %344, %344 : vector<32x128xf32>
    %347 = arith.addf %323, %346 : vector<32x128xf32>
    %348 = arith.maximumf %324, %344 : vector<32x128xf32>
    %349 = arith.minimumf %325, %344 : vector<32x128xf32>
    %c14_280 = arith.constant 14 : index
    %c0_281 = arith.constant 0 : index
    %c0_282 = arith.constant 0 : index
    %350 = vector.load %arg1[%c14_280, %c0_281, %c0_282] : memref<20x32x128xf32, #tpu.memory_space<vmem>>, vector<1x32x128xf32>
    %351 = vector.shape_cast %350 : vector<1x32x128xf32> to vector<32x128xf32>
    %cst_283 = arith.constant dense<0.000000e+00> : vector<32x128xf32>
    %352 = tpu.matmul %1, %351, %cst_283 {dimension_numbers = #tpu.dot_dimension_numbers<[1], [0], [0], [1], [0, 0, 1, 1], [], []>} : vector<32x32xf32>, vector<32x128xf32>, vector<32x128xf32> -> vector<32x128xf32>
    %c15_284 = arith.constant 15 : index
    %c0_285 = arith.constant 0 : index
    %c0_286 = arith.constant 0 : index
    %353 = vector.load %arg1[%c15_284, %c0_285, %c0_286] : memref<20x32x128xf32, #tpu.memory_space<vmem>>, vector<1x32x128xf32>
    %354 = vector.shape_cast %353 : vector<1x32x128xf32> to vector<32x128xf32>
    %cst_287 = arith.constant dense<0.000000e+00> : vector<32x128xf32>
    %355 = tpu.matmul %3, %354, %cst_287 {dimension_numbers = #tpu.dot_dimension_numbers<[1], [0], [0], [1], [0, 0, 1, 1], [], []>} : vector<32x32xf32>, vector<32x128xf32>, vector<32x128xf32> -> vector<32x128xf32>
    %356 = arith.addf %352, %355 : vector<32x128xf32>
    %c16_288 = arith.constant 16 : index
    %c0_289 = arith.constant 0 : index
    %c0_290 = arith.constant 0 : index
    %357 = vector.load %arg1[%c16_288, %c0_289, %c0_290] : memref<20x32x128xf32, #tpu.memory_space<vmem>>, vector<1x32x128xf32>
    %358 = vector.shape_cast %357 : vector<1x32x128xf32> to vector<32x128xf32>
    %cst_291 = arith.constant dense<0.000000e+00> : vector<32x128xf32>
    %359 = tpu.matmul %5, %358, %cst_291 {dimension_numbers = #tpu.dot_dimension_numbers<[1], [0], [0], [1], [0, 0, 1, 1], [], []>} : vector<32x32xf32>, vector<32x128xf32>, vector<32x128xf32> -> vector<32x128xf32>
    %360 = arith.addf %356, %359 : vector<32x128xf32>
    %c17_292 = arith.constant 17 : index
    %c0_293 = arith.constant 0 : index
    %c0_294 = arith.constant 0 : index
    %361 = vector.load %arg1[%c17_292, %c0_293, %c0_294] : memref<20x32x128xf32, #tpu.memory_space<vmem>>, vector<1x32x128xf32>
    %362 = vector.shape_cast %361 : vector<1x32x128xf32> to vector<32x128xf32>
    %cst_295 = arith.constant dense<0.000000e+00> : vector<32x128xf32>
    %363 = tpu.matmul %7, %362, %cst_295 {dimension_numbers = #tpu.dot_dimension_numbers<[1], [0], [0], [1], [0, 0, 1, 1], [], []>} : vector<32x32xf32>, vector<32x128xf32>, vector<32x128xf32> -> vector<32x128xf32>
    %364 = arith.addf %360, %363 : vector<32x128xf32>
    %c18 = arith.constant 18 : index
    %c0_296 = arith.constant 0 : index
    %c0_297 = arith.constant 0 : index
    %365 = vector.load %arg1[%c18, %c0_296, %c0_297] : memref<20x32x128xf32, #tpu.memory_space<vmem>>, vector<1x32x128xf32>
    %366 = vector.shape_cast %365 : vector<1x32x128xf32> to vector<32x128xf32>
    %cst_298 = arith.constant dense<0.000000e+00> : vector<32x128xf32>
    %367 = tpu.matmul %9, %366, %cst_298 {dimension_numbers = #tpu.dot_dimension_numbers<[1], [0], [0], [1], [0, 0, 1, 1], [], []>} : vector<32x32xf32>, vector<32x128xf32>, vector<32x128xf32> -> vector<32x128xf32>
    %368 = arith.addf %364, %367 : vector<32x128xf32>
    %369 = arith.addf %345, %368 : vector<32x128xf32>
    %370 = arith.mulf %368, %368 : vector<32x128xf32>
    %371 = arith.addf %347, %370 : vector<32x128xf32>
    %372 = arith.maximumf %348, %368 : vector<32x128xf32>
    %373 = arith.minimumf %349, %368 : vector<32x128xf32>
    %c15_299 = arith.constant 15 : index
    %c0_300 = arith.constant 0 : index
    %c0_301 = arith.constant 0 : index
    %374 = vector.load %arg1[%c15_299, %c0_300, %c0_301] : memref<20x32x128xf32, #tpu.memory_space<vmem>>, vector<1x32x128xf32>
    %375 = vector.shape_cast %374 : vector<1x32x128xf32> to vector<32x128xf32>
    %cst_302 = arith.constant dense<0.000000e+00> : vector<32x128xf32>
    %376 = tpu.matmul %1, %375, %cst_302 {dimension_numbers = #tpu.dot_dimension_numbers<[1], [0], [0], [1], [0, 0, 1, 1], [], []>} : vector<32x32xf32>, vector<32x128xf32>, vector<32x128xf32> -> vector<32x128xf32>
    %c16_303 = arith.constant 16 : index
    %c0_304 = arith.constant 0 : index
    %c0_305 = arith.constant 0 : index
    %377 = vector.load %arg1[%c16_303, %c0_304, %c0_305] : memref<20x32x128xf32, #tpu.memory_space<vmem>>, vector<1x32x128xf32>
    %378 = vector.shape_cast %377 : vector<1x32x128xf32> to vector<32x128xf32>
    %cst_306 = arith.constant dense<0.000000e+00> : vector<32x128xf32>
    %379 = tpu.matmul %3, %378, %cst_306 {dimension_numbers = #tpu.dot_dimension_numbers<[1], [0], [0], [1], [0, 0, 1, 1], [], []>} : vector<32x32xf32>, vector<32x128xf32>, vector<32x128xf32> -> vector<32x128xf32>
    %380 = arith.addf %376, %379 : vector<32x128xf32>
    %c17_307 = arith.constant 17 : index
    %c0_308 = arith.constant 0 : index
    %c0_309 = arith.constant 0 : index
    %381 = vector.load %arg1[%c17_307, %c0_308, %c0_309] : memref<20x32x128xf32, #tpu.memory_space<vmem>>, vector<1x32x128xf32>
    %382 = vector.shape_cast %381 : vector<1x32x128xf32> to vector<32x128xf32>
    %cst_310 = arith.constant dense<0.000000e+00> : vector<32x128xf32>
    %383 = tpu.matmul %5, %382, %cst_310 {dimension_numbers = #tpu.dot_dimension_numbers<[1], [0], [0], [1], [0, 0, 1, 1], [], []>} : vector<32x32xf32>, vector<32x128xf32>, vector<32x128xf32> -> vector<32x128xf32>
    %384 = arith.addf %380, %383 : vector<32x128xf32>
    %c18_311 = arith.constant 18 : index
    %c0_312 = arith.constant 0 : index
    %c0_313 = arith.constant 0 : index
    %385 = vector.load %arg1[%c18_311, %c0_312, %c0_313] : memref<20x32x128xf32, #tpu.memory_space<vmem>>, vector<1x32x128xf32>
    %386 = vector.shape_cast %385 : vector<1x32x128xf32> to vector<32x128xf32>
    %cst_314 = arith.constant dense<0.000000e+00> : vector<32x128xf32>
    %387 = tpu.matmul %7, %386, %cst_314 {dimension_numbers = #tpu.dot_dimension_numbers<[1], [0], [0], [1], [0, 0, 1, 1], [], []>} : vector<32x32xf32>, vector<32x128xf32>, vector<32x128xf32> -> vector<32x128xf32>
    %388 = arith.addf %384, %387 : vector<32x128xf32>
    %c19 = arith.constant 19 : index
    %c0_315 = arith.constant 0 : index
    %c0_316 = arith.constant 0 : index
    %389 = vector.load %arg1[%c19, %c0_315, %c0_316] : memref<20x32x128xf32, #tpu.memory_space<vmem>>, vector<1x32x128xf32>
    %390 = vector.shape_cast %389 : vector<1x32x128xf32> to vector<32x128xf32>
    %cst_317 = arith.constant dense<0.000000e+00> : vector<32x128xf32>
    %391 = tpu.matmul %9, %390, %cst_317 {dimension_numbers = #tpu.dot_dimension_numbers<[1], [0], [0], [1], [0, 0, 1, 1], [], []>} : vector<32x32xf32>, vector<32x128xf32>, vector<32x128xf32> -> vector<32x128xf32>
    %392 = arith.addf %388, %391 : vector<32x128xf32>
    %393 = arith.addf %369, %392 : vector<32x128xf32>
    %394 = arith.mulf %392, %392 : vector<32x128xf32>
    %395 = arith.addf %371, %394 : vector<32x128xf32>
    %396 = arith.maximumf %372, %392 : vector<32x128xf32>
    %397 = arith.minimumf %373, %392 : vector<32x128xf32>
    %c0_318 = arith.constant 0 : index
    %c0_319 = arith.constant 0 : index
    %398 = vector.load %arg3[%c0_318, %c0_319] : memref<32x1xf32, #tpu.memory_space<vmem>>, vector<32x1xf32>
    %399 = vector.shape_cast %398 : vector<32x1xf32> to vector<2x16x1xf32>
    %c0_320 = arith.constant 0 : index
    %c0_321 = arith.constant 0 : index
    %400 = vector.load %arg4[%c0_320, %c0_321] : memref<32x1xf32, #tpu.memory_space<vmem>>, vector<32x1xf32>
    %401 = vector.shape_cast %400 : vector<32x1xf32> to vector<2x16x1xf32>
    %c0_322 = arith.constant 0 : index
    %c0_323 = arith.constant 0 : index
    %402 = vector.load %arg5[%c0_322, %c0_323] : memref<32x1xf32, #tpu.memory_space<vmem>>, vector<32x1xf32>
    %403 = vector.shape_cast %402 : vector<32x1xf32> to vector<2x16x1xf32>
    %404 = vector.shape_cast %393 : vector<32x128xf32> to vector<2x16x128xf32>
    %405 = vector.shape_cast %395 : vector<32x128xf32> to vector<2x16x128xf32>
    %406 = vector.shape_cast %396 : vector<32x128xf32> to vector<2x16x128xf32>
    %407 = vector.shape_cast %397 : vector<32x128xf32> to vector<2x16x128xf32>
    %cst_324 = arith.constant 1.600000e+01 : f32
    %408 = vector.broadcast %cst_324 : f32 to vector<2x16x1xf32>
    %409 = arith.mulf %408, %399 : vector<2x16x1xf32>
    %410 = vector.broadcast %409 : vector<2x16x1xf32> to vector<2x16x128xf32>
    %411 = arith.addf %404, %410 : vector<2x16x128xf32>
    %cst_325 = arith.constant 2.000000e+00 : f32
    %412 = vector.broadcast %cst_325 : f32 to vector<2x16x1xf32>
    %413 = arith.mulf %412, %399 : vector<2x16x1xf32>
    %414 = vector.broadcast %413 : vector<2x16x1xf32> to vector<2x16x128xf32>
    %415 = arith.mulf %414, %404 : vector<2x16x128xf32>
    %416 = arith.addf %405, %415 : vector<2x16x128xf32>
    %417 = arith.mulf %399, %399 : vector<2x16x1xf32>
    %cst_326 = arith.constant 1.600000e+01 : f32
    %418 = vector.broadcast %cst_326 : f32 to vector<2x16x1xf32>
    %419 = arith.mulf %418, %417 : vector<2x16x1xf32>
    %420 = vector.broadcast %419 : vector<2x16x1xf32> to vector<2x16x128xf32>
    %421 = arith.addf %416, %420 : vector<2x16x128xf32>
    %cst_327 = arith.constant dense<0.000000e+00> : vector<2x128xf32>
    %422 = vector.multi_reduction <add>, %411, %cst_327 [1] : vector<2x16x128xf32> to vector<2x128xf32>
    %423 = vector.shape_cast %422 : vector<2x128xf32> to vector<2x1x128xf32>
    %cst_328 = arith.constant dense<0.000000e+00> : vector<2x128xf32>
    %424 = vector.multi_reduction <add>, %421, %cst_328 [1] : vector<2x16x128xf32> to vector<2x128xf32>
    %425 = vector.shape_cast %424 : vector<2x128xf32> to vector<2x1x128xf32>
    %cst_329 = arith.constant 3.906250e-03 : f32
    %426 = vector.broadcast %cst_329 : f32 to vector<2x1x128xf32>
    %427 = arith.mulf %423, %426 : vector<2x1x128xf32>
    %cst_330 = arith.constant 3.906250e-03 : f32
    %428 = vector.broadcast %cst_330 : f32 to vector<2x1x128xf32>
    %429 = arith.mulf %425, %428 : vector<2x1x128xf32>
    %430 = arith.mulf %427, %427 : vector<2x1x128xf32>
    %431 = arith.subf %429, %430 : vector<2x1x128xf32>
    %cst_331 = arith.constant 0.000000e+00 : f32
    %432 = vector.broadcast %cst_331 : f32 to vector<2x1x128xf32>
    %433 = arith.maximumf %431, %432 : vector<2x1x128xf32>
    %cst_332 = arith.constant 9.99999974E-6 : f32
    %434 = vector.broadcast %cst_332 : f32 to vector<2x1x128xf32>
    %435 = arith.addf %433, %434 : vector<2x1x128xf32>
    %436 = math.rsqrt %435 : vector<2x1x128xf32>
    %437 = vector.broadcast %401 : vector<2x16x1xf32> to vector<2x16x128xf32>
    %438 = vector.broadcast %436 : vector<2x1x128xf32> to vector<2x16x128xf32>
    %439 = arith.mulf %437, %438 : vector<2x16x128xf32>
    %440 = vector.broadcast %399 : vector<2x16x1xf32> to vector<2x16x128xf32>
    %441 = vector.broadcast %427 : vector<2x1x128xf32> to vector<2x16x128xf32>
    %442 = arith.subf %440, %441 : vector<2x16x128xf32>
    %443 = arith.mulf %439, %442 : vector<2x16x128xf32>
    %444 = vector.broadcast %403 : vector<2x16x1xf32> to vector<2x16x128xf32>
    %445 = arith.addf %443, %444 : vector<2x16x128xf32>
    %cst_333 = arith.constant 0.000000e+00 : f32
    %446 = vector.broadcast %cst_333 : f32 to vector<2x16x128xf32>
    %447 = arith.cmpf oge, %439, %446 : vector<2x16x128xf32>
    %448 = arith.mulf %439, %406 : vector<2x16x128xf32>
    %449 = arith.addf %448, %445 : vector<2x16x128xf32>
    %450 = arith.mulf %439, %407 : vector<2x16x128xf32>
    %451 = arith.addf %450, %445 : vector<2x16x128xf32>
    %452 = arith.select %447, %449, %451 : vector<2x16x128xi1>, vector<2x16x128xf32>
    %cst_334 = arith.constant 0.000000e+00 : f32
    %453 = vector.broadcast %cst_334 : f32 to vector<2x16x128xf32>
    %454 = arith.maximumf %452, %453 : vector<2x16x128xf32>
    %455 = vector.shape_cast %454 : vector<2x16x128xf32> to vector<32x128xf32>
    %c0_335 = arith.constant 0 : index
    %c0_336 = arith.constant 0 : index
    %456 = vector.load %arg6[%c0_335, %c0_336] : memref<32x128xf32, #tpu.memory_space<vmem>>, vector<32x128xf32>
    tpu.vector_store %arg6[%c0_335, %c0_336], %455 {strides = array<i32>} : memref<32x128xf32, #tpu.memory_space<vmem>>, vector<32x128xf32>,
    return
  }
  func.func @transform_0(%arg0: i32) -> (i32, i32, i32) {
    %c0_i32 = arith.constant 0 : i32
    %c0_i32_0 = arith.constant 0 : i32
    %c0_i32_1 = arith.constant 0 : i32
    return %c0_i32, %c0_i32_0, %arg0 : i32, i32, i32
  }
  func.func @transform_1(%arg0: i32) -> (i32, i32, i32) {
    %c0_i32 = arith.constant 0 : i32
    %c0_i32_0 = arith.constant 0 : i32
    %c0_i32_1 = arith.constant 0 : i32
    %c0_i32_2 = arith.constant 0 : i32
    return %c0_i32, %c0_i32_0, %c0_i32_1 : i32, i32, i32
  }
  func.func @transform_2(%arg0: i32) -> (i32, i32) {
    %c0_i32 = arith.constant 0 : i32
    %c0_i32_0 = arith.constant 0 : i32
    %c0_i32_1 = arith.constant 0 : i32
    return %c0_i32, %c0_i32_0 : i32, i32
  }
  func.func @transform_3(%arg0: i32) -> (i32, i32) {
    %c0_i32 = arith.constant 0 : i32
    %c0_i32_0 = arith.constant 0 : i32
    %c0_i32_1 = arith.constant 0 : i32
    return %c0_i32, %c0_i32_0 : i32, i32
  }
  func.func @transform_4(%arg0: i32) -> (i32, i32) {
    %c0_i32 = arith.constant 0 : i32
    %c0_i32_0 = arith.constant 0 : i32
    %c0_i32_1 = arith.constant 0 : i32
    return %c0_i32, %c0_i32_0 : i32, i32
  }
  func.func @transform_5(%arg0: i32) -> (i32, i32) {
    %c0_i32 = arith.constant 0 : i32
    %c0_i32_0 = arith.constant 0 : i32
    return %c0_i32, %arg0 : i32, i32
  }
}

</mosaic_0001>

<llo_original>
// kernel: tpu_custom_call.1
$region0: #{tpu_custom_call.1}
  #allocation0 [shape = 'u32[]', space=smem, size = 0x4, offset = 0x4, fixed_abs, tag = 'smem constant byte address 0x4 - core index']
  #allocation1 [shape = 'u32[72,128]{1,0:T(1,128)}', space=vmem, size = 0x9000, scoped, tag = 'internal scratch']
  %s0 = inlined_call_operand.hbm [shape: f32[20,32,128], index: 0, kind: input, shape index: {}]
  %s1 = inlined_call_operand.hbm [shape: f32[5,32,32], index: 1, kind: input, shape index: {}]
  %s2 = inlined_call_operand.vmem [shape: f32[32,1], index: 2, kind: input, shape index: {}]
  %s3 = inlined_call_operand.vmem [shape: f32[32,1], index: 3, kind: input, shape index: {}]
  %s4 = inlined_call_operand.vmem [shape: f32[32,1], index: 4, kind: input, shape index: {}]
  %s5 = inlined_call_operand.hbm [shape: f32[32,128], index: 5, kind: output, shape index: {}]
  %s6 = sld [smem:[#allocation0]]
  $region38: #{tpu_custom_call.1} parent=0
    _
  %s8 = ssub.s32 1, %s6
  %s9 = scalar_select 0, %s8, %s6
  $region1: #{tpu_custom_call.1} parent=0
    #allocation2 [shape = 'u8[327680]{0}', space=vmem, size = 0x50000, scoped, tag = 'input window, operand 0, single buffered']
    #allocation3 [shape = 's32[1]{0}', space=sflag, size = 0x4, scoped, tag = 'scoped memory for tpu_custom_call.1']
    #allocation4 [shape = 's32[1]{0}', space=sflag, size = 0x4, scoped, tag = 'scoped memory for tpu_custom_call.1']
    #allocation5 [shape = 'u8[81920]{0}', space=vmem, size = 0x14000, scoped, tag = 'input window, operand 1, single buffered']
    #allocation6 [shape = 's32[1]{0}', space=sflag, size = 0x4, scoped, tag = 'scoped memory for tpu_custom_call.1']
    #allocation7 [shape = 'u8[16384]{0}', space=vmem, size = 0x4000, scoped, tag = 'output window, operand 0, single buffered']
    %10 = vsyncpa [#allocation3], 0
    %11 = vsyncpa [#allocation6], 0
    %12 = vsyncpa [#allocation4], 0
    // Predicated region
    $region2: #{tpu_custom_call.1} parent=1 // pred_check
      _
    $region3: #{tpu_custom_call.1} parent=1 // pred_check_branch
      %14 = sbr.rel (0) target = $region5
    $region4: #{tpu_custom_call.1} parent=1 // pred_region
      %16 = vsyncadd [#allocation3], 0
      %s17 = sshll.u32 %s0, 4
      %s18 = int_to_ptr.hbm [resolvable:$true] %s17
      %s19 = sshll.u32 [#allocation2], 4
      %s20 = int_to_ptr.vmem [resolvable:$true] %s19
      %25 = dma.hbm_to_vmem [thread:$0]  %s18, 10240, %s20, [#allocation3], 128, 128, 8
    $region5: #{tpu_custom_call.1} parent=1 // pred_fallthru
      _
    // Predicated region
    $region6: #{tpu_custom_call.1} parent=1 // pred_check
      _
    $region7: #{tpu_custom_call.1} parent=1 // pred_check_branch
      %27 = sbr.rel (0) target = $region9
    $region8: #{tpu_custom_call.1} parent=1 // pred_region
      %29 = vsyncadd [#allocation6], 0
      %s30 = sshll.u32 %s1, 4
      %s31 = int_to_ptr.hbm [resolvable:$true] %s30
      %s32 = sshll.u32 [#allocation5], 4
      %s33 = int_to_ptr.vmem [resolvable:$true] %s32
      %38 = dma.hbm_to_vmem [thread:$0]  %s31, 2560, %s33, [#allocation6], 128, 128, 8
    $region9: #{tpu_custom_call.1} parent=1 // pred_fallthru
      _
    // Predicated region
    $region10: #{tpu_custom_call.1} parent=1 // pred_check
      _
    $region11: #{tpu_custom_call.1} parent=1 // pred_check_branch
      %40 = sbr.rel (0) target = $region13
    $region12: #{tpu_custom_call.1} parent=1 // pred_region
      _
    $region13: #{tpu_custom_call.1} parent=1 // pred_fallthru
      _
    // Predicated region
    $region14: #{tpu_custom_call.1} parent=1 // pred_check
      _
    $region15: #{tpu_custom_call.1} parent=1 // pred_check_branch
      %42 = sbr.rel (0) target = $region17
    $region16: #{tpu_custom_call.1} parent=1 // pred_region
      _
    $region17: #{tpu_custom_call.1} parent=1 // pred_fallthru
      _
    // Predicated region
    $region18: #{tpu_custom_call.1} parent=1 // pred_check
      _
    $region19: #{tpu_custom_call.1} parent=1 // pred_check_branch
      %44 = sbr.rel (0) target = $region21
    $region20: #{tpu_custom_call.1} parent=1 // pred_region
      _
    $region21: #{tpu_custom_call.1} parent=1 // pred_fallthru
      _
    // Predicated region
    $region22: #{tpu_custom_call.1} parent=1 // pred_check
      _
    $region23: #{tpu_custom_call.1} parent=1 // pred_check_branch
      %46 = sbr.rel (0) target = $region25
    $region24: #{tpu_custom_call.1} parent=1 // pred_region
      %48 = dma.done [#allocation3], 10240
    $region25: #{tpu_custom_call.1} parent=1 // pred_fallthru
      _
    // Predicated region
    $region26: #{tpu_custom_call.1} parent=1 // pred_check
      _
    $region27: #{tpu_custom_call.1} parent=1 // pred_check_branch
      %50 = sbr.rel (0) target = $region29
    $region28: #{tpu_custom_call.1} parent=1 // pred_region
      %52 = dma.done [#allocation6], 2560
    $region29: #{tpu_custom_call.1} parent=1 // pred_fallthru
      _
    %v53 = vld [vmem:[#allocation5] sm:$0xff]
    %v54 = vld [vmem:[#allocation5 + $0x8] sm:$0xff]
    %v55 = vld [vmem:[#allocation5 + $0x10] sm:$0xff]
    %v56 = vld [vmem:[#allocation5 + $0x18] sm:$0xff]
    %s57 = scalar_lea.vmem [#allocation5], 32
    %v58 = vld [vmem:[%s57] sm:$0xff]
    %v59 = vld [vmem:[%s57 + $0x8] sm:$0xff]
    %v60 = vld [vmem:[%s57 + $0x10] sm:$0xff]
    %v61 = vld [vmem:[%s57 + $0x18] sm:$0xff]
    %s62 = scalar_lea.vmem [#allocation5], 64
    %v63 = vld [vmem:[%s62] sm:$0xff]
    %v64 = vld [vmem:[%s62 + $0x8] sm:$0xff]
    %v65 = vld [vmem:[%s62 + $0x10] sm:$0xff]
    %v66 = vld [vmem:[%s62 + $0x18] sm:$0xff]
    %s67 = scalar_lea.vmem [#allocation5], 96
    %v68 = vld [vmem:[%s67] sm:$0xff]
    %v69 = vld [vmem:[%s67 + $0x8] sm:$0xff]
    %v70 = vld [vmem:[%s67 + $0x10] sm:$0xff]
    %v71 = vld [vmem:[%s67 + $0x18] sm:$0xff]
    %s72 = scalar_lea.vmem [#allocation5], 128
    %v73 = vld [vmem:[%s72] sm:$0xff]
    %v74 = vld [vmem:[%s72 + $0x8] sm:$0xff]
    %v75 = vld [vmem:[%s72 + $0x10] sm:$0xff]
    %v76 = vld [vmem:[%s72 + $0x18] sm:$0xff]
    %v77 = vld [vmem:[#allocation2] sm:$0xff]
    %v78 = vld [vmem:[#allocation2 + $0x8] sm:$0xff]
    %v79 = vld [vmem:[#allocation2 + $0x10] sm:$0xff]
    %v80 = vld [vmem:[#allocation2 + $0x18] sm:$0xff]
    %s81 = scalar_lea.vmem [#allocation2], 32
    %v82 = vld [vmem:[%s81] sm:$0xff]
    %v83 = vld [vmem:[%s81 + $0x8] sm:$0xff]
    %v84 = vld [vmem:[%s81 + $0x10] sm:$0xff]
    %v85 = vld [vmem:[%s81 + $0x18] sm:$0xff]
    %vm86 = vcmask 261120
    %v88 = vsel %vm86, %v58, 0
    %v91 = vsel %vm86, %v59, 0
    %v94 = vsel %vm86, %v60, 0
    %v97 = vsel %vm86, %v61, 0
    %99 = vmatpush.msra.mxu0 0.0
    %100 = vmatpush.msra.mxu0 0.0
    %101 = vmatpush.msra.mxu0 0.0
    %102 = vmatpush.msra.mxu0 0.0
    %103 = vmatpush.msra.mxu0 0.0
    %104 = vmatpush.msra.mxu0 0.0
    %105 = vmatpush.msra.mxu0 0.0
    %106 = vmatpush.msra.mxu0 0.0
    %107 = vmatpush.msra.mxu0 0.0
    %108 = vmatpush.msra.mxu0 0.0
    %109 = vmatpush.msra.mxu0 0.0
    %110 = vmatpush.msra.mxu0 0.0
    %111 = vmatpush.msra.mxu0 %v85
    %112 = vmatpush.msra.mxu0 %v84
    %113 = vmatpush.msra.mxu0 %v83
    %114 = vmatpush.msra.mxu0 %v82
    %115 = vmatmul.f32.gmra.mxu0 %v88
    %v116 = vpop.f32.mrf.mxu0
    %v117 = vadd.f32 0.0, %v116
    %118 = vmatmul.f32.gmra.mxu0 %v91
    %v119 = vpop.f32.mrf.mxu0
    %v120 = vadd.f32 0.0, %v119
    %121 = vmatmul.f32.gmra.mxu0 %v94
    %v122 = vpop.f32.mrf.mxu0
    %v123 = vadd.f32 0.0, %v122
    %124 = vmatmul.f32.gmra.mxu0 %v97
    %v125 = vpop.f32.mrf.mxu0
    %v126 = vadd.f32 0.0, %v125
    %127 = vdwg.mxu0
    %v129 = vsel %vm86, %v53, 0
    %v132 = vsel %vm86, %v54, 0
    %v135 = vsel %vm86, %v55, 0
    %v138 = vsel %vm86, %v56, 0
    %140 = vmatpush.msra.mxu0 0.0
    %141 = vmatpush.msra.mxu0 0.0
    %142 = vmatpush.msra.mxu0 0.0
    %143 = vmatpush.msra.mxu0 0.0
    %144 = vmatpush.msra.mxu0 0.0
    %145 = vmatpush.msra.mxu0 0.0
    %146 = vmatpush.msra.mxu0 0.0
    %147 = vmatpush.msra.mxu0 0.0
    %148 = vmatpush.msra.mxu0 0.0
    %149 = vmatpush.msra.mxu0 0.0
    %150 = vmatpush.msra.mxu0 0.0
    %151 = vmatpush.msra.mxu0 0.0
    %152 = vmatpush.msra.mxu0 %v80
    %153 = vmatpush.msra.mxu0 %v79
    %154 = vmatpush.msra.mxu0 %v78
    %155 = vmatpush.msra.mxu0 %v77
    %156 = vmatmul.f32.gmra.mxu0 %v129
    %v157 = vpop.f32.mrf.mxu0
    %v158 = vadd.f32 %v117, %v157
    %159 = vmatmul.f32.gmra.mxu0 %v132
    %v160 = vpop.f32.mrf.mxu0
    %v161 = vadd.f32 %v120, %v160
    %162 = vmatmul.f32.gmra.mxu0 %v135
    %v163 = vpop.f32.mrf.mxu0
    %v164 = vadd.f32 %v123, %v163
    %165 = vmatmul.f32.gmra.mxu0 %v138
    %v166 = vpop.f32.mrf.mxu0
    %v167 = vadd.f32 %v126, %v166
    %168 = vdwg.mxu0
    %s169 = scalar_lea.vmem [#allocation2], 64
    %v170 = vld [vmem:[%s169] sm:$0xff]
    %v171 = vld [vmem:[%s169 + $0x8] sm:$0xff]
    %v172 = vld [vmem:[%s169 + $0x10] sm:$0xff]
    %v173 = vld [vmem:[%s169 + $0x18] sm:$0xff]
    %v175 = vsel %vm86, %v63, 0
    %v178 = vsel %vm86, %v64, 0
    %v181 = vsel %vm86, %v65, 0
    %v184 = vsel %vm86, %v66, 0
    %186 = vmatpush.msra.mxu0 0.0
    %187 = vmatpush.msra.mxu0 0.0
    %188 = vmatpush.msra.mxu0 0.0
    %189 = vmatpush.msra.mxu0 0.0
    %190 = vmatpush.msra.mxu0 0.0
    %191 = vmatpush.msra.mxu0 0.0
    %192 = vmatpush.msra.mxu0 0.0
    %193 = vmatpush.msra.mxu0 0.0
    %194 = vmatpush.msra.mxu0 0.0
    %195 = vmatpush.msra.mxu0 0.0
    %196 = vmatpush.msra.mxu0 0.0
    %197 = vmatpush.msra.mxu0 0.0
    %198 = vmatpush.msra.mxu0 %v173
    %199 = vmatpush.msra.mxu0 %v172
    %200 = vmatpush.msra.mxu0 %v171
    %201 = vmatpush.msra.mxu0 %v170
    %202 = vmatmul.f32.gmra.mxu0 %v175
    %v203 = vpop.f32.mrf.mxu0
    %v204 = vadd.f32 0.0, %v203
    %205 = vmatmul.f32.gmra.mxu0 %v178
    %v206 = vpop.f32.mrf.mxu0
    %v207 = vadd.f32 0.0, %v206
    %208 = vmatmul.f32.gmra.mxu0 %v181
    %v209 = vpop.f32.mrf.mxu0
    %v210 = vadd.f32 0.0, %v209
    %211 = vmatmul.f32.gmra.mxu0 %v184
    %v212 = vpop.f32.mrf.mxu0
    %v213 = vadd.f32 0.0, %v212
    %214 = vdwg.mxu0
    %v215 = vadd.f32 %v158, %v204
    %v216 = vadd.f32 %v161, %v207
    %v217 = vadd.f32 %v164, %v210
    %v218 = vadd.f32 %v167, %v213
    %s219 = scalar_lea.vmem [#allocation2], 96
    %v220 = vld [vmem:[%s219] sm:$0xff]
    %v221 = vld [vmem:[%s219 + $0x8] sm:$0xff]
    %v222 = vld [vmem:[%s219 + $0x10] sm:$0xff]
    %v223 = vld [vmem:[%s219 + $0x18] sm:$0xff]
    %v225 = vsel %vm86, %v68, 0
    %v228 = vsel %vm86, %v69, 0
    %v231 = vsel %vm86, %v70, 0
    %v234 = vsel %vm86, %v71, 0
    %236 = vmatpush.msra.mxu0 0.0
    %237 = vmatpush.msra.mxu0 0.0
    %238 = vmatpush.msra.mxu0 0.0
    %239 = vmatpush.msra.mxu0 0.0
    %240 = vmatpush.msra.mxu0 0.0
    %241 = vmatpush.msra.mxu0 0.0
    %242 = vmatpush.msra.mxu0 0.0
    %243 = vmatpush.msra.mxu0 0.0
    %244 = vmatpush.msra.mxu0 0.0
    %245 = vmatpush.msra.mxu0 0.0
    %246 = vmatpush.msra.mxu0 0.0
    %247 = vmatpush.msra.mxu0 0.0
    %248 = vmatpush.msra.mxu0 %v223
    %249 = vmatpush.msra.mxu0 %v222
    %250 = vmatpush.msra.mxu0 %v221
    %251 = vmatpush.msra.mxu0 %v220
    %252 = vmatmul.f32.gmra.mxu0 %v225
    %v253 = vpop.f32.mrf.mxu0
    %v254 = vadd.f32 0.0, %v253
    %255 = vmatmul.f32.gmra.mxu0 %v228
    %v256 = vpop.f32.mrf.mxu0
    %v257 = vadd.f32 0.0, %v256
    %258 = vmatmul.f32.gmra.mxu0 %v231
    %v259 = vpop.f32.mrf.mxu0
    %v260 = vadd.f32 0.0, %v259
    %261 = vmatmul.f32.gmra.mxu0 %v234
    %v262 = vpop.f32.mrf.mxu0
    %v263 = vadd.f32 0.0, %v262
    %264 = vdwg.mxu0
    %v265 = vadd.f32 %v215, %v254
    %v266 = vadd.f32 %v216, %v257
    %v267 = vadd.f32 %v217, %v260
    %v268 = vadd.f32 %v218, %v263
    %s269 = scalar_lea.vmem [#allocation2], 128
    %v270 = vld [vmem:[%s269] sm:$0xff]
    %v271 = vld [vmem:[%s269 + $0x8] sm:$0xff]
    %v272 = vld [vmem:[%s269 + $0x10] sm:$0xff]
    %v273 = vld [vmem:[%s269 + $0x18] sm:$0xff]
    %v275 = vsel %vm86, %v73, 0
    %v278 = vsel %vm86, %v74, 0
    %v281 = vsel %vm86, %v75, 0
    %v284 = vsel %vm86, %v76, 0
    %286 = vmatpush.msra.mxu0 0.0
    %287 = vmatpush.msra.mxu0 0.0
    %288 = vmatpush.msra.mxu0 0.0
    %289 = vmatpush.msra.mxu0 0.0
    %290 = vmatpush.msra.mxu0 0.0
    %291 = vmatpush.msra.mxu0 0.0
    %292 = vmatpush.msra.mxu0 0.0
    %293 = vmatpush.msra.mxu0 0.0
    %294 = vmatpush.msra.mxu0 0.0
    %295 = vmatpush.msra.mxu0 0.0
    %296 = vmatpush.msra.mxu0 0.0
    %297 = vmatpush.msra.mxu0 0.0
    %298 = vmatpush.msra.mxu0 %v273
    %299 = vmatpush.msra.mxu0 %v272
    %300 = vmatpush.msra.mxu0 %v271
    %301 = vmatpush.msra.mxu0 %v270
    %302 = vmatmul.f32.gmra.mxu0 %v275
    %v303 = vpop.f32.mrf.mxu0
    %v304 = vadd.f32 0.0, %v303
    %305 = vmatmul.f32.gmra.mxu0 %v278
    %v306 = vpop.f32.mrf.mxu0
    %v307 = vadd.f32 0.0, %v306
    %308 = vmatmul.f32.gmra.mxu0 %v281
    %v309 = vpop.f32.mrf.mxu0
    %v310 = vadd.f32 0.0, %v309
    %311 = vmatmul.f32.gmra.mxu0 %v284
    %v312 = vpop.f32.mrf.mxu0
    %v313 = vadd.f32 0.0, %v312
    %314 = vdwg.mxu0
    %v315 = vadd.f32 %v265, %v304
    %v316 = vadd.f32 %v266, %v307
    %v317 = vadd.f32 %v267, %v310
    %v318 = vadd.f32 %v268, %v313
    %v319 = vadd.f32 %v315, 0.0
    %v320 = vadd.f32 %v316, 0.0
    %v321 = vadd.f32 %v317, 0.0
    %v322 = vadd.f32 %v318, 0.0
    %v323 = vmul.f32 %v315, %v315
    %v324 = vmul.f32 %v316, %v316
    %v325 = vmul.f32 %v317, %v317
    %v326 = vmul.f32 %v318, %v318
    %v327 = vadd.f32 %v323, 0.0
    %v328 = vadd.f32 %v324, 0.0
    %v329 = vadd.f32 %v325, 0.0
    %v330 = vadd.f32 %v326, 0.0
    %331 = vmatpush.msra.mxu0 0.0
    %332 = vmatpush.msra.mxu0 0.0
    %333 = vmatpush.msra.mxu0 0.0
    %334 = vmatpush.msra.mxu0 0.0
    %335 = vmatpush.msra.mxu0 0.0
    %336 = vmatpush.msra.mxu0 0.0
    %337 = vmatpush.msra.mxu0 0.0
    %338 = vmatpush.msra.mxu0 0.0
    %339 = vmatpush.msra.mxu0 0.0
    %340 = vmatpush.msra.mxu0 0.0
    %341 = vmatpush.msra.mxu0 0.0
    %342 = vmatpush.msra.mxu0 0.0
    %343 = vmatpush.msra.mxu0 %v173
    %344 = vmatpush.msra.mxu0 %v172
    %345 = vmatpush.msra.mxu0 %v171
    %346 = vmatpush.msra.mxu0 %v170
    %347 = vmatmul.f32.gmra.mxu0 %v88
    %v348 = vpop.f32.mrf.mxu0
    %v349 = vadd.f32 0.0, %v348
    %350 = vmatmul.f32.gmra.mxu0 %v91
    %v351 = vpop.f32.mrf.mxu0
    %v352 = vadd.f32 0.0, %v351
    %353 = vmatmul.f32.gmra.mxu0 %v94
    %v354 = vpop.f32.mrf.mxu0
    %v355 = vadd.f32 0.0, %v354
    %356 = vmatmul.f32.gmra.mxu0 %v97
    %v357 = vpop.f32.mrf.mxu0
    %v358 = vadd.f32 0.0, %v357
    %359 = vdwg.mxu0
    %360 = vmatpush.msra.mxu0 0.0
    %361 = vmatpush.msra.mxu0 0.0
    %362 = vmatpush.msra.mxu0 0.0
    %363 = vmatpush.msra.mxu0 0.0
    %364 = vmatpush.msra.mxu0 0.0
    %365 = vmatpush.msra.mxu0 0.0
    %366 = vmatpush.msra.mxu0 0.0
    %367 = vmatpush.msra.mxu0 0.0
    %368 = vmatpush.msra.mxu0 0.0
    %369 = vmatpush.msra.mxu0 0.0
    %370 = vmatpush.msra.mxu0 0.0
    %371 = vmatpush.msra.mxu0 0.0
    %372 = vmatpush.msra.mxu0 %v85
    %373 = vmatpush.msra.mxu0 %v84
    %374 = vmatpush.msra.mxu0 %v83
    %375 = vmatpush.msra.mxu0 %v82
    %376 = vmatmul.f32.gmra.mxu0 %v129
    %v377 = vpop.f32.mrf.mxu0
    %v378 = vadd.f32 %v349, %v377
    %379 = vmatmul.f32.gmra.mxu0 %v132
    %v380 = vpop.f32.mrf.mxu0
    %v381 = vadd.f32 %v352, %v380
    %382 = vmatmul.f32.gmra.mxu0 %v135
    %v383 = vpop.f32.mrf.mxu0
    %v384 = vadd.f32 %v355, %v383
    %385 = vmatmul.f32.gmra.mxu0 %v138
    %v386 = vpop.f32.mrf.mxu0
    %v387 = vadd.f32 %v358, %v386
    %388 = vdwg.mxu0
    %389 = vmatpush.msra.mxu0 0.0
    %390 = vmatpush.msra.mxu0 0.0
    %391 = vmatpush.msra.mxu0 0.0
    %392 = vmatpush.msra.mxu0 0.0
    %393 = vmatpush.msra.mxu0 0.0
    %394 = vmatpush.msra.mxu0 0.0
    %395 = vmatpush.msra.mxu0 0.0
    %396 = vmatpush.msra.mxu0 0.0
    %397 = vmatpush.msra.mxu0 0.0
    %398 = vmatpush.msra.mxu0 0.0
    %399 = vmatpush.msra.mxu0 0.0
    %400 = vmatpush.msra.mxu0 0.0
    %401 = vmatpush.msra.mxu0 %v223
    %402 = vmatpush.msra.mxu0 %v222
    %403 = vmatpush.msra.mxu0 %v221
    %404 = vmatpush.msra.mxu0 %v220
    %405 = vmatmul.f32.gmra.mxu0 %v175
    %v406 = vpop.f32.mrf.mxu0
    %v407 = vadd.f32 0.0, %v406
    %408 = vmatmul.f32.gmra.mxu0 %v178
    %v409 = vpop.f32.mrf.mxu0
    %v410 = vadd.f32 0.0, %v409
    %411 = vmatmul.f32.gmra.mxu0 %v181
    %v412 = vpop.f32.mrf.mxu0
    %v413 = vadd.f32 0.0, %v412
    %414 = vmatmul.f32.gmra.mxu0 %v184
    %v415 = vpop.f32.mrf.mxu0
    %v416 = vadd.f32 0.0, %v415
    %417 = vdwg.mxu0
    %v418 = vadd.f32 %v378, %v407
    %v419 = vadd.f32 %v381, %v410
    %v420 = vadd.f32 %v384, %v413
    %v421 = vadd.f32 %v387, %v416
    %422 = vmatpush.msra.mxu0 0.0
    %423 = vmatpush.msra.mxu0 0.0
    %424 = vmatpush.msra.mxu0 0.0
    %425 = vmatpush.msra.mxu0 0.0
    %426 = vmatpush.msra.mxu0 0.0
    %427 = vmatpush.msra.mxu0 0.0
    %428 = vmatpush.msra.mxu0 0.0
    %429 = vmatpush.msra.mxu0 0.0
    %430 = vmatpush.msra.mxu0 0.0
    %431 = vmatpush.msra.mxu0 0.0
    %432 = vmatpush.msra.mxu0 0.0
    %433 = vmatpush.msra.mxu0 0.0
    %434 = vmatpush.msra.mxu0 %v273
    %435 = vmatpush.msra.mxu0 %v272
    %436 = vmatpush.msra.mxu0 %v271
    %437 = vmatpush.msra.mxu0 %v270
    %438 = vmatmul.f32.gmra.mxu0 %v225
    %v439 = vpop.f32.mrf.mxu0
    %v440 = vadd.f32 0.0, %v439
    %441 = vmatmul.f32.gmra.mxu0 %v228
    %v442 = vpop.f32.mrf.mxu0
    %v443 = vadd.f32 0.0, %v442
    %444 = vmatmul.f32.gmra.mxu0 %v231
    %v445 = vpop.f32.mrf.mxu0
    %v446 = vadd.f32 0.0, %v445
    %447 = vmatmul.f32.gmra.mxu0 %v234
    %v448 = vpop.f32.mrf.mxu0
    %v449 = vadd.f32 0.0, %v448
    %450 = vdwg.mxu0
    %v451 = vadd.f32 %v418, %v440
    %v452 = vadd.f32 %v419, %v443
    %v453 = vadd.f32 %v420, %v446
    %v454 = vadd.f32 %v421, %v449
    %s455 = scalar_lea.vmem [#allocation2], 160
    %v456 = vld [vmem:[%s455] sm:$0xff]
    %v457 = vld [vmem:[%s455 + $0x8] sm:$0xff]
    %v458 = vld [vmem:[%s455 + $0x10] sm:$0xff]
    %v459 = vld [vmem:[%s455 + $0x18] sm:$0xff]
    %460 = vmatpush.msra.mxu0 0.0
    %461 = vmatpush.msra.mxu0 0.0
    %462 = vmatpush.msra.mxu0 0.0
    %463 = vmatpush.msra.mxu0 0.0
    %464 = vmatpush.msra.mxu0 0.0
    %465 = vmatpush.msra.mxu0 0.0
    %466 = vmatpush.msra.mxu0 0.0
    %467 = vmatpush.msra.mxu0 0.0
    %468 = vmatpush.msra.mxu0 0.0
    %469 = vmatpush.msra.mxu0 0.0
    %470 = vmatpush.msra.mxu0 0.0
    %471 = vmatpush.msra.mxu0 0.0
    %472 = vmatpush.msra.mxu0 %v459
    %473 = vmatpush.msra.mxu0 %v458
    %474 = vmatpush.msra.mxu0 %v457
    %475 = vmatpush.msra.mxu0 %v456
    %476 = vmatmul.f32.gmra.mxu0 %v275
    %v477 = vpop.f32.mrf.mxu0
    %v478 = vadd.f32 0.0, %v477
    %479 = vmatmul.f32.gmra.mxu0 %v278
    %v480 = vpop.f32.mrf.mxu0
    %v481 = vadd.f32 0.0, %v480
    %482 = vmatmul.f32.gmra.mxu0 %v281
    %v483 = vpop.f32.mrf.mxu0
    %v484 = vadd.f32 0.0, %v483
    %485 = vmatmul.f32.gmra.mxu0 %v284
    %v486 = vpop.f32.mrf.mxu0
    %v487 = vadd.f32 0.0, %v486
    %488 = vdwg.mxu0
    %v489 = vadd.f32 %v451, %v478
    %v490 = vadd.f32 %v452, %v481
    %v491 = vadd.f32 %v453, %v484
    %v492 = vadd.f32 %v454, %v487
    %v493 = vadd.f32 %v319, %v489
    %v494 = vadd.f32 %v320, %v490
    %v495 = vadd.f32 %v321, %v491
    %v496 = vadd.f32 %v322, %v492
    %v497 = vmul.f32 %v489, %v489
    %v498 = vmul.f32 %v490, %v490
    %v499 = vmul.f32 %v491, %v491
    %v500 = vmul.f32 %v492, %v492
    %v501 = vadd.f32 %v327, %v497
    %v502 = vadd.f32 %v328, %v498
    %v503 = vadd.f32 %v329, %v499
    %v504 = vadd.f32 %v330, %v500
    %v505 = vmax.f32 %v315, %v489
    %v506 = vmax.f32 %v316, %v490
    %v507 = vmax.f32 %v317, %v491
    %v508 = vmax.f32 %v318, %v492
    %v509 = vmin.f32 %v315, %v489
    %v510 = vmin.f32 %v316, %v490
    %v511 = vmin.f32 %v317, %v491
    %v512 = vmin.f32 %v318, %v492
    %513 = vmatpush.msra.mxu0 0.0
    %514 = vmatpush.msra.mxu0 0.0
    %515 = vmatpush.msra.mxu0 0.0
    %516 = vmatpush.msra.mxu0 0.0
    %517 = vmatpush.msra.mxu0 0.0
    %518 = vmatpush.msra.mxu0 0.0
    %519 = vmatpush.msra.mxu0 0.0
    %520 = vmatpush.msra.mxu0 0.0
    %521 = vmatpush.msra.mxu0 0.0
    %522 = vmatpush.msra.mxu0 0.0
    %523 = vmatpush.msra.mxu0 0.0
    %524 = vmatpush.msra.mxu0 0.0
    %525 = vmatpush.msra.mxu0 %v223
    %526 = vmatpush.msra.mxu0 %v222
    %527 = vmatpush.msra.mxu0 %v221
    %528 = vmatpush.msra.mxu0 %v220
    %529 = vmatmul.f32.gmra.mxu0 %v88
    %v530 = vpop.f32.mrf.mxu0
    %v531 = vadd.f32 0.0, %v530
    %532 = vmatmul.f32.gmra.mxu0 %v91
    %v533 = vpop.f32.mrf.mxu0
    %v534 = vadd.f32 0.0, %v533
    %535 = vmatmul.f32.gmra.mxu0 %v94
    %v536 = vpop.f32.mrf.mxu0
    %v537 = vadd.f32 0.0, %v536
    %538 = vmatmul.f32.gmra.mxu0 %v97
    %v539 = vpop.f32.mrf.mxu0
    %v540 = vadd.f32 0.0, %v539
    %541 = vdwg.mxu0
    %542 = vmatpush.msra.mxu0 0.0
    %543 = vmatpush.msra.mxu0 0.0
    %544 = vmatpush.msra.mxu0 0.0
    %545 = vmatpush.msra.mxu0 0.0
    %546 = vmatpush.msra.mxu0 0.0
    %547 = vmatpush.msra.mxu0 0.0
    %548 = vmatpush.msra.mxu0 0.0
    %549 = vmatpush.msra.mxu0 0.0
    %550 = vmatpush.msra.mxu0 0.0
    %551 = vmatpush.msra.mxu0 0.0
    %552 = vmatpush.msra.mxu0 0.0
    %553 = vmatpush.msra.mxu0 0.0
    %554 = vmatpush.msra.mxu0 %v173
    %555 = vmatpush.msra.mxu0 %v172
    %556 = vmatpush.msra.mxu0 %v171
    %557 = vmatpush.msra.mxu0 %v170
    %558 = vmatmul.f32.gmra.mxu0 %v129
    %v559 = vpop.f32.mrf.mxu0
    %v560 = vadd.f32 %v531, %v559
    %561 = vmatmul.f32.gmra.mxu0 %v132
    %v562 = vpop.f32.mrf.mxu0
    %v563 = vadd.f32 %v534, %v562
    %564 = vmatmul.f32.gmra.mxu0 %v135
    %v565 = vpop.f32.mrf.mxu0
    %v566 = vadd.f32 %v537, %v565
    %567 = vmatmul.f32.gmra.mxu0 %v138
    %v568 = vpop.f32.mrf.mxu0
    %v569 = vadd.f32 %v540, %v568
    %570 = vdwg.mxu0
    %571 = vmatpush.msra.mxu0 0.0
    %572 = vmatpush.msra.mxu0 0.0
    %573 = vmatpush.msra.mxu0 0.0
    %574 = vmatpush.msra.mxu0 0.0
    %575 = vmatpush.msra.mxu0 0.0
    %576 = vmatpush.msra.mxu0 0.0
    %577 = vmatpush.msra.mxu0 0.0
    %578 = vmatpush.msra.mxu0 0.0
    %579 = vmatpush.msra.mxu0 0.0
    %580 = vmatpush.msra.mxu0 0.0
    %581 = vmatpush.msra.mxu0 0.0
    %582 = vmatpush.msra.mxu0 0.0
    %583 = vmatpush.msra.mxu0 %v273
    %584 = vmatpush.msra.mxu0 %v272
    %585 = vmatpush.msra.mxu0 %v271
    %586 = vmatpush.msra.mxu0 %v270
    %587 = vmatmul.f32.gmra.mxu0 %v175
    %v588 = vpop.f32.mrf.mxu0
    %v589 = vadd.f32 0.0, %v588
    %590 = vmatmul.f32.gmra.mxu0 %v178
    %v591 = vpop.f32.mrf.mxu0
    %v592 = vadd.f32 0.0, %v591
    %593 = vmatmul.f32.gmra.mxu0 %v181
    %v594 = vpop.f32.mrf.mxu0
    %v595 = vadd.f32 0.0, %v594
    %596 = vmatmul.f32.gmra.mxu0 %v184
    %v597 = vpop.f32.mrf.mxu0
    %v598 = vadd.f32 0.0, %v597
    %599 = vdwg.mxu0
    %v600 = vadd.f32 %v560, %v589
    %v601 = vadd.f32 %v563, %v592
    %v602 = vadd.f32 %v566, %v595
    %v603 = vadd.f32 %v569, %v598
    %604 = vmatpush.msra.mxu0 0.0
    %605 = vmatpush.msra.mxu0 0.0
    %606 = vmatpush.msra.mxu0 0.0
    %607 = vmatpush.msra.mxu0 0.0
    %608 = vmatpush.msra.mxu0 0.0
    %609 = vmatpush.msra.mxu0 0.0
    %610 = vmatpush.msra.mxu0 0.0
    %611 = vmatpush.msra.mxu0 0.0
    %612 = vmatpush.msra.mxu0 0.0
    %613 = vmatpush.msra.mxu0 0.0
    %614 = vmatpush.msra.mxu0 0.0
    %615 = vmatpush.msra.mxu0 0.0
    %616 = vmatpush.msra.mxu0 %v459
    %617 = vmatpush.msra.mxu0 %v458
    %618 = vmatpush.msra.mxu0 %v457
    %619 = vmatpush.msra.mxu0 %v456
    %620 = vmatmul.f32.gmra.mxu0 %v225
    %v621 = vpop.f32.mrf.mxu0
    %v622 = vadd.f32 0.0, %v621
    %623 = vmatmul.f32.gmra.mxu0 %v228
    %v624 = vpop.f32.mrf.mxu0
    %v625 = vadd.f32 0.0, %v624
    %626 = vmatmul.f32.gmra.mxu0 %v231
    %v627 = vpop.f32.mrf.mxu0
    %v628 = vadd.f32 0.0, %v627
    %629 = vmatmul.f32.gmra.mxu0 %v234
    %v630 = vpop.f32.mrf.mxu0
    %v631 = vadd.f32 0.0, %v630
    %632 = vdwg.mxu0
    %v633 = vadd.f32 %v600, %v622
    %v634 = vadd.f32 %v601, %v625
    %v635 = vadd.f32 %v602, %v628
    %v636 = vadd.f32 %v603, %v631
    %s637 = scalar_lea.vmem [#allocation2], 192
    %v638 = vld [vmem:[%s637] sm:$0xff]
    %v639 = vld [vmem:[%s637 + $0x8] sm:$0xff]
    %v640 = vld [vmem:[%s637 + $0x10] sm:$0xff]
    %v641 = vld [vmem:[%s637 + $0x18] sm:$0xff]
    %642 = vmatpush.msra.mxu0 0.0
    %643 = vmatpush.msra.mxu0 0.0
    %644 = vmatpush.msra.mxu0 0.0
    %645 = vmatpush.msra.mxu0 0.0
    %646 = vmatpush.msra.mxu0 0.0
    %647 = vmatpush.msra.mxu0 0.0
    %648 = vmatpush.msra.mxu0 0.0
    %649 = vmatpush.msra.mxu0 0.0
    %650 = vmatpush.msra.mxu0 0.0
    %651 = vmatpush.msra.mxu0 0.0
    %652 = vmatpush.msra.mxu0 0.0
    %653 = vmatpush.msra.mxu0 0.0
    %654 = vmatpush.msra.mxu0 %v641
    %655 = vmatpush.msra.mxu0 %v640
    %656 = vmatpush.msra.mxu0 %v639
    %657 = vmatpush.msra.mxu0 %v638
    %658 = vmatmul.f32.gmra.mxu0 %v275
    %v659 = vpop.f32.mrf.mxu0
    %v660 = vadd.f32 0.0, %v659
    %661 = vmatmul.f32.gmra.mxu0 %v278
    %v662 = vpop.f32.mrf.mxu0
    %v663 = vadd.f32 0.0, %v662
    %664 = vmatmul.f32.gmra.mxu0 %v281
    %v665 = vpop.f32.mrf.mxu0
    %v666 = vadd.f32 0.0, %v665
    %667 = vmatmul.f32.gmra.mxu0 %v284
    %v668 = vpop.f32.mrf.mxu0
    %v669 = vadd.f32 0.0, %v668
    %670 = vdwg.mxu0
    %v671 = vadd.f32 %v633, %v660
    %v672 = vadd.f32 %v634, %v663
    %v673 = vadd.f32 %v635, %v666
    %v674 = vadd.f32 %v636, %v669
    %v675 = vadd.f32 %v493, %v671
    %v676 = vadd.f32 %v494, %v672
    %v677 = vadd.f32 %v495, %v673
    %v678 = vadd.f32 %v496, %v674
    %v679 = vmul.f32 %v671, %v671
    %v680 = vmul.f32 %v672, %v672
    %v681 = vmul.f32 %v673, %v673
    %v682 = vmul.f32 %v674, %v674
    %v683 = vadd.f32 %v501, %v679
    %v684 = vadd.f32 %v502, %v680
    %v685 = vadd.f32 %v503, %v681
    %v686 = vadd.f32 %v504, %v682
    %v687 = vmax.f32 %v505, %v671
    %v688 = vmax.f32 %v506, %v672
    %v689 = vmax.f32 %v507, %v673
    %v690 = vmax.f32 %v508, %v674
    %v691 = vmin.f32 %v509, %v671
    %v692 = vmin.f32 %v510, %v672
    %v693 = vmin.f32 %v511, %v673
    %v694 = vmin.f32 %v512, %v674
    %695 = vmatpush.msra.mxu0 0.0
    %696 = vmatpush.msra.mxu0 0.0
    %697 = vmatpush.msra.mxu0 0.0
    %698 = vmatpush.msra.mxu0 0.0
    %699 = vmatpush.msra.mxu0 0.0
    %700 = vmatpush.msra.mxu0 0.0
    %701 = vmatpush.msra.mxu0 0.0
    %702 = vmatpush.msra.mxu0 0.0
    %703 = vmatpush.msra.mxu0 0.0
    %704 = vmatpush.msra.mxu0 0.0
    %705 = vmatpush.msra.mxu0 0.0
    %706 = vmatpush.msra.mxu0 0.0
    %707 = vmatpush.msra.mxu0 %v273
    %708 = vmatpush.msra.mxu0 %v272
    %709 = vmatpush.msra.mxu0 %v271
    %710 = vmatpush.msra.mxu0 %v270
    %711 = vmatmul.f32.gmra.mxu0 %v88
    %v712 = vpop.f32.mrf.mxu0
    %v713 = vadd.f32 0.0, %v712
    %714 = vmatmul.f32.gmra.mxu0 %v91
    %v715 = vpop.f32.mrf.mxu0
    %v716 = vadd.f32 0.0, %v715
    %717 = vmatmul.f32.gmra.mxu0 %v94
    %v718 = vpop.f32.mrf.mxu0
    %v719 = vadd.f32 0.0, %v718
    %720 = vmatmul.f32.gmra.mxu0 %v97
    %v721 = vpop.f32.mrf.mxu0
    %v722 = vadd.f32 0.0, %v721
    %723 = vdwg.mxu0
    %724 = vmatpush.msra.mxu0 0.0
    %725 = vmatpush.msra.mxu0 0.0
    %726 = vmatpush.msra.mxu0 0.0
    %727 = vmatpush.msra.mxu0 0.0
    %728 = vmatpush.msra.mxu0 0.0
    %729 = vmatpush.msra.mxu0 0.0
    %730 = vmatpush.msra.mxu0 0.0
    %731 = vmatpush.msra.mxu0 0.0
    %732 = vmatpush.msra.mxu0 0.0
    %733 = vmatpush.msra.mxu0 0.0
    %734 = vmatpush.msra.mxu0 0.0
    %735 = vmatpush.msra.mxu0 0.0
    %736 = vmatpush.msra.mxu0 %v223
    %737 = vmatpush.msra.mxu0 %v222
    %738 = vmatpush.msra.mxu0 %v221
    %739 = vmatpush.msra.mxu0 %v220
    %740 = vmatmul.f32.gmra.mxu0 %v129
    %v741 = vpop.f32.mrf.mxu0
    %v742 = vadd.f32 %v713, %v741
    %743 = vmatmul.f32.gmra.mxu0 %v132
    %v744 = vpop.f32.mrf.mxu0
    %v745 = vadd.f32 %v716, %v744
    %746 = vmatmul.f32.gmra.mxu0 %v135
    %v747 = vpop.f32.mrf.mxu0
    %v748 = vadd.f32 %v719, %v747
    %749 = vmatmul.f32.gmra.mxu0 %v138
    %v750 = vpop.f32.mrf.mxu0
    %v751 = vadd.f32 %v722, %v750
    %752 = vdwg.mxu0
    %753 = vmatpush.msra.mxu0 0.0
    %754 = vmatpush.msra.mxu0 0.0
    %755 = vmatpush.msra.mxu0 0.0
    %756 = vmatpush.msra.mxu0 0.0
    %757 = vmatpush.msra.mxu0 0.0
    %758 = vmatpush.msra.mxu0 0.0
    %759 = vmatpush.msra.mxu0 0.0
    %760 = vmatpush.msra.mxu0 0.0
    %761 = vmatpush.msra.mxu0 0.0
    %762 = vmatpush.msra.mxu0 0.0
    %763 = vmatpush.msra.mxu0 0.0
    %764 = vmatpush.msra.mxu0 0.0
    %765 = vmatpush.msra.mxu0 %v459
    %766 = vmatpush.msra.mxu0 %v458
    %767 = vmatpush.msra.mxu0 %v457
    %768 = vmatpush.msra.mxu0 %v456
    %769 = vmatmul.f32.gmra.mxu0 %v175
    %v770 = vpop.f32.mrf.mxu0
    %v771 = vadd.f32 0.0, %v770
    %772 = vmatmul.f32.gmra.mxu0 %v178
    %v773 = vpop.f32.mrf.mxu0
    %v774 = vadd.f32 0.0, %v773
    %775 = vmatmul.f32.gmra.mxu0 %v181
    %v776 = vpop.f32.mrf.mxu0
    %v777 = vadd.f32 0.0, %v776
    %778 = vmatmul.f32.gmra.mxu0 %v184
    %v779 = vpop.f32.mrf.mxu0
    %v780 = vadd.f32 0.0, %v779
    %781 = vdwg.mxu0
    %v782 = vadd.f32 %v742, %v771
    %v783 = vadd.f32 %v745, %v774
    %v784 = vadd.f32 %v748, %v777
    %v785 = vadd.f32 %v751, %v780
    %786 = vmatpush.msra.mxu0 0.0
    %787 = vmatpush.msra.mxu0 0.0
    %788 = vmatpush.msra.mxu0 0.0
    %789 = vmatpush.msra.mxu0 0.0
    %790 = vmatpush.msra.mxu0 0.0
    %791 = vmatpush.msra.mxu0 0.0
    %792 = vmatpush.msra.mxu0 0.0
    %793 = vmatpush.msra.mxu0 0.0
    %794 = vmatpush.msra.mxu0 0.0
    %795 = vmatpush.msra.mxu0 0.0
    %796 = vmatpush.msra.mxu0 0.0
    %797 = vmatpush.msra.mxu0 0.0
    %798 = vmatpush.msra.mxu0 %v641
    %799 = vmatpush.msra.mxu0 %v640
    %800 = vmatpush.msra.mxu0 %v639
    %801 = vmatpush.msra.mxu0 %v638
    %802 = vmatmul.f32.gmra.mxu0 %v225
    %v803 = vpop.f32.mrf.mxu0
    %v804 = vadd.f32 0.0, %v803
    %805 = vmatmul.f32.gmra.mxu0 %v228
    %v806 = vpop.f32.mrf.mxu0
    %v807 = vadd.f32 0.0, %v806
    %808 = vmatmul.f32.gmra.mxu0 %v231
    %v809 = vpop.f32.mrf.mxu0
    %v810 = vadd.f32 0.0, %v809
    %811 = vmatmul.f32.gmra.mxu0 %v234
    %v812 = vpop.f32.mrf.mxu0
    %v813 = vadd.f32 0.0, %v812
    %814 = vdwg.mxu0
    %v815 = vadd.f32 %v782, %v804
    %v816 = vadd.f32 %v783, %v807
    %v817 = vadd.f32 %v784, %v810
    %v818 = vadd.f32 %v785, %v813
    %s819 = scalar_lea.vmem [#allocation2], 224
    %v820 = vld [vmem:[%s819] sm:$0xff]
    %v821 = vld [vmem:[%s819 + $0x8] sm:$0xff]
    %v822 = vld [vmem:[%s819 + $0x10] sm:$0xff]
    %v823 = vld [vmem:[%s819 + $0x18] sm:$0xff]
    %824 = vmatpush.msra.mxu0 0.0
    %825 = vmatpush.msra.mxu0 0.0
    %826 = vmatpush.msra.mxu0 0.0
    %827 = vmatpush.msra.mxu0 0.0
    %828 = vmatpush.msra.mxu0 0.0
    %829 = vmatpush.msra.mxu0 0.0
    %830 = vmatpush.msra.mxu0 0.0
    %831 = vmatpush.msra.mxu0 0.0
    %832 = vmatpush.msra.mxu0 0.0
    %833 = vmatpush.msra.mxu0 0.0
    %834 = vmatpush.msra.mxu0 0.0
    %835 = vmatpush.msra.mxu0 0.0
    %836 = vmatpush.msra.mxu0 %v823
    %837 = vmatpush.msra.mxu0 %v822
    %838 = vmatpush.msra.mxu0 %v821
    %839 = vmatpush.msra.mxu0 %v820
    %840 = vmatmul.f32.gmra.mxu0 %v275
    %v841 = vpop.f32.mrf.mxu0
    %v842 = vadd.f32 0.0, %v841
    %843 = vmatmul.f32.gmra.mxu0 %v278
    %v844 = vpop.f32.mrf.mxu0
    %v845 = vadd.f32 0.0, %v844
    %846 = vmatmul.f32.gmra.mxu0 %v281
    %v847 = vpop.f32.mrf.mxu0
    %v848 = vadd.f32 0.0, %v847
    %849 = vmatmul.f32.gmra.mxu0 %v284
    %v850 = vpop.f32.mrf.mxu0
    %v851 = vadd.f32 0.0, %v850
    %852 = vdwg.mxu0
    %v853 = vadd.f32 %v815, %v842
    %v854 = vadd.f32 %v816, %v845
    %v855 = vadd.f32 %v817, %v848
    %v856 = vadd.f32 %v818, %v851
    %v857 = vadd.f32 %v675, %v853
    %v858 = vadd.f32 %v676, %v854
    %v859 = vadd.f32 %v677, %v855
    %v860 = vadd.f32 %v678, %v856
    %v861 = vmul.f32 %v853, %v853
    %v862 = vmul.f32 %v854, %v854
    %v863 = vmul.f32 %v855, %v855
    %v864 = vmul.f32 %v856, %v856
    %v865 = vadd.f32 %v683, %v861
    %v866 = vadd.f32 %v684, %v862
    %v867 = vadd.f32 %v685, %v863
    %v868 = vadd.f32 %v686, %v864
    %v869 = vmax.f32 %v687, %v853
    %v870 = vmax.f32 %v688, %v854
    %v871 = vmax.f32 %v689, %v855
    %v872 = vmax.f32 %v690, %v856
    %v873 = vmin.f32 %v691, %v853
    %v874 = vmin.f32 %v692, %v854
    %v875 = vmin.f32 %v693, %v855
    %v876 = vmin.f32 %v694, %v856
    %877 = vmatpush.msra.mxu0 0.0
    %878 = vmatpush.msra.mxu0 0.0
    %879 = vmatpush.msra.mxu0 0.0
    %880 = vmatpush.msra.mxu0 0.0
    %881 = vmatpush.msra.mxu0 0.0
    %882 = vmatpush.msra.mxu0 0.0
    %883 = vmatpush.msra.mxu0 0.0
    %884 = vmatpush.msra.mxu0 0.0
    %885 = vmatpush.msra.mxu0 0.0
    %886 = vmatpush.msra.mxu0 0.0
    %887 = vmatpush.msra.mxu0 0.0
    %888 = vmatpush.msra.mxu0 0.0
    %889 = vmatpush.msra.mxu0 %v459
    %890 = vmatpush.msra.mxu0 %v458
    %891 = vmatpush.msra.mxu0 %v457
    %892 = vmatpush.msra.mxu0 %v456
    %893 = vmatmul.f32.gmra.mxu0 %v88
    %v894 = vpop.f32.mrf.mxu0
    %v895 = vadd.f32 0.0, %v894
    %896 = vmatmul.f32.gmra.mxu0 %v91
    %v897 = vpop.f32.mrf.mxu0
    %v898 = vadd.f32 0.0, %v897
    %899 = vmatmul.f32.gmra.mxu0 %v94
    %v900 = vpop.f32.mrf.mxu0
    %v901 = vadd.f32 0.0, %v900
    %902 = vmatmul.f32.gmra.mxu0 %v97
    %v903 = vpop.f32.mrf.mxu0
    %v904 = vadd.f32 0.0, %v903
    %905 = vdwg.mxu0
    %906 = vmatpush.msra.mxu0 0.0
    %907 = vmatpush.msra.mxu0 0.0
    %908 = vmatpush.msra.mxu0 0.0
    %909 = vmatpush.msra.mxu0 0.0
    %910 = vmatpush.msra.mxu0 0.0
    %911 = vmatpush.msra.mxu0 0.0
    %912 = vmatpush.msra.mxu0 0.0
    %913 = vmatpush.msra.mxu0 0.0
    %914 = vmatpush.msra.mxu0 0.0
    %915 = vmatpush.msra.mxu0 0.0
    %916 = vmatpush.msra.mxu0 0.0
    %917 = vmatpush.msra.mxu0 0.0
    %918 = vmatpush.msra.mxu0 %v273
    %919 = vmatpush.msra.mxu0 %v272
    %920 = vmatpush.msra.mxu0 %v271
    %921 = vmatpush.msra.mxu0 %v270
    %922 = vmatmul.f32.gmra.mxu0 %v129
    %v923 = vpop.f32.mrf.mxu0
    %v924 = vadd.f32 %v895, %v923
    %925 = vmatmul.f32.gmra.mxu0 %v132
    %v926 = vpop.f32.mrf.mxu0
    %v927 = vadd.f32 %v898, %v926
    %928 = vmatmul.f32.gmra.mxu0 %v135
    %v929 = vpop.f32.mrf.mxu0
    %v930 = vadd.f32 %v901, %v929
    %931 = vmatmul.f32.gmra.mxu0 %v138
    %v932 = vpop.f32.mrf.mxu0
    %v933 = vadd.f32 %v904, %v932
    %934 = vdwg.mxu0
    %935 = vmatpush.msra.mxu0 0.0
    %936 = vmatpush.msra.mxu0 0.0
    %937 = vmatpush.msra.mxu0 0.0
    %938 = vmatpush.msra.mxu0 0.0
    %939 = vmatpush.msra.mxu0 0.0
    %940 = vmatpush.msra.mxu0 0.0
    %941 = vmatpush.msra.mxu0 0.0
    %942 = vmatpush.msra.mxu0 0.0
    %943 = vmatpush.msra.mxu0 0.0
    %944 = vmatpush.msra.mxu0 0.0
    %945 = vmatpush.msra.mxu0 0.0
    %946 = vmatpush.msra.mxu0 0.0
    %947 = vmatpush.msra.mxu0 %v641
    %948 = vmatpush.msra.mxu0 %v640
    %949 = vmatpush.msra.mxu0 %v639
    %950 = vmatpush.msra.mxu0 %v638
    %951 = vmatmul.f32.gmra.mxu0 %v175
    %v952 = vpop.f32.mrf.mxu0
    %v953 = vadd.f32 0.0, %v952
    %954 = vmatmul.f32.gmra.mxu0 %v178
    %v955 = vpop.f32.mrf.mxu0
    %v956 = vadd.f32 0.0, %v955
    %957 = vmatmul.f32.gmra.mxu0 %v181
    %v958 = vpop.f32.mrf.mxu0
    %v959 = vadd.f32 0.0, %v958
    %960 = vmatmul.f32.gmra.mxu0 %v184
    %v961 = vpop.f32.mrf.mxu0
    %v962 = vadd.f32 0.0, %v961
    %963 = vdwg.mxu0
    %v964 = vadd.f32 %v924, %v953
    %v965 = vadd.f32 %v927, %v956
    %v966 = vadd.f32 %v930, %v959
    %v967 = vadd.f32 %v933, %v962
    %968 = vmatpush.msra.mxu0 0.0
    %969 = vmatpush.msra.mxu0 0.0
    %970 = vmatpush.msra.mxu0 0.0
    %971 = vmatpush.msra.mxu0 0.0
    %972 = vmatpush.msra.mxu0 0.0
    %973 = vmatpush.msra.mxu0 0.0
    %974 = vmatpush.msra.mxu0 0.0
    %975 = vmatpush.msra.mxu0 0.0
    %976 = vmatpush.msra.mxu0 0.0
    %977 = vmatpush.msra.mxu0 0.0
    %978 = vmatpush.msra.mxu0 0.0
    %979 = vmatpush.msra.mxu0 0.0
    %980 = vmatpush.msra.mxu0 %v823
    %981 = vmatpush.msra.mxu0 %v822
    %982 = vmatpush.msra.mxu0 %v821
    %983 = vmatpush.msra.mxu0 %v820
    %984 = vmatmul.f32.gmra.mxu0 %v225
    %v985 = vpop.f32.mrf.mxu0
    %v986 = vadd.f32 0.0, %v985
    %987 = vmatmul.f32.gmra.mxu0 %v228
    %v988 = vpop.f32.mrf.mxu0
    %v989 = vadd.f32 0.0, %v988
    %990 = vmatmul.f32.gmra.mxu0 %v231
    %v991 = vpop.f32.mrf.mxu0
    %v992 = vadd.f32 0.0, %v991
    %993 = vmatmul.f32.gmra.mxu0 %v234
    %v994 = vpop.f32.mrf.mxu0
    %v995 = vadd.f32 0.0, %v994
    %996 = vdwg.mxu0
    %v997 = vadd.f32 %v964, %v986
    %v998 = vadd.f32 %v965, %v989
    %v999 = vadd.f32 %v966, %v992
    %v1000 = vadd.f32 %v967, %v995
    %s1001 = scalar_lea.vmem [#allocation2], 256
    %v1002 = vld [vmem:[%s1001] sm:$0xff]
    %v1003 = vld [vmem:[%s1001 + $0x8] sm:$0xff]
    %v1004 = vld [vmem:[%s1001 + $0x10] sm:$0xff]
    %v1005 = vld [vmem:[%s1001 + $0x18] sm:$0xff]
    %1006 = vmatpush.msra.mxu0 0.0
    %1007 = vmatpush.msra.mxu0 0.0
    %1008 = vmatpush.msra.mxu0 0.0
    %1009 = vmatpush.msra.mxu0 0.0
    %1010 = vmatpush.msra.mxu0 0.0
    %1011 = vmatpush.msra.mxu0 0.0
    %1012 = vmatpush.msra.mxu0 0.0
    %1013 = vmatpush.msra.mxu0 0.0
    %1014 = vmatpush.msra.mxu0 0.0
    %1015 = vmatpush.msra.mxu0 0.0
    %1016 = vmatpush.msra.mxu0 0.0
    %1017 = vmatpush.msra.mxu0 0.0
    %1018 = vmatpush.msra.mxu0 %v1005
    %1019 = vmatpush.msra.mxu0 %v1004
    %1020 = vmatpush.msra.mxu0 %v1003
    %1021 = vmatpush.msra.mxu0 %v1002
    %1022 = vmatmul.f32.gmra.mxu0 %v275
    %v1023 = vpop.f32.mrf.mxu0
    %v1024 = vadd.f32 0.0, %v1023
    %1025 = vmatmul.f32.gmra.mxu0 %v278
    %v1026 = vpop.f32.mrf.mxu0
    %v1027 = vadd.f32 0.0, %v1026
    %1028 = vmatmul.f32.gmra.mxu0 %v281
    %v1029 = vpop.f32.mrf.mxu0
    %v1030 = vadd.f32 0.0, %v1029
    %1031 = vmatmul.f32.gmra.mxu0 %v284
    %v1032 = vpop.f32.mrf.mxu0
    %v1033 = vadd.f32 0.0, %v1032
    %1034 = vdwg.mxu0
    %v1035 = vadd.f32 %v997, %v1024
    %v1036 = vadd.f32 %v998, %v1027
    %v1037 = vadd.f32 %v999, %v1030
    %v1038 = vadd.f32 %v1000, %v1033
    %v1039 = vadd.f32 %v857, %v1035
    %v1040 = vadd.f32 %v858, %v1036
    %v1041 = vadd.f32 %v859, %v1037
    %v1042 = vadd.f32 %v860, %v1038
    %v1043 = vmul.f32 %v1035, %v1035
    %v1044 = vmul.f32 %v1036, %v1036
    %v1045 = vmul.f32 %v1037, %v1037
    %v1046 = vmul.f32 %v1038, %v1038
    %v1047 = vadd.f32 %v865, %v1043
    %v1048 = vadd.f32 %v866, %v1044
    %v1049 = vadd.f32 %v867, %v1045
    %v1050 = vadd.f32 %v868, %v1046
    %v1051 = vmax.f32 %v869, %v1035
    %v1052 = vmax.f32 %v870, %v1036
    %v1053 = vmax.f32 %v871, %v1037
    %v1054 = vmax.f32 %v872, %v1038
    %v1055 = vmin.f32 %v873, %v1035
    %v1056 = vmin.f32 %v874, %v1036
    %v1057 = vmin.f32 %v875, %v1037
    %v1058 = vmin.f32 %v876, %v1038
    %1059 = vmatpush.msra.mxu0 0.0
    %1060 = vmatpush.msra.mxu0 0.0
    %1061 = vmatpush.msra.mxu0 0.0
    %1062 = vmatpush.msra.mxu0 0.0
    %1063 = vmatpush.msra.mxu0 0.0
    %1064 = vmatpush.msra.mxu0 0.0
    %1065 = vmatpush.msra.mxu0 0.0
    %1066 = vmatpush.msra.mxu0 0.0
    %1067 = vmatpush.msra.mxu0 0.0
    %1068 = vmatpush.msra.mxu0 0.0
    %1069 = vmatpush.msra.mxu0 0.0
    %1070 = vmatpush.msra.mxu0 0.0
    %1071 = vmatpush.msra.mxu0 %v641
    %1072 = vmatpush.msra.mxu0 %v640
    %1073 = vmatpush.msra.mxu0 %v639
    %1074 = vmatpush.msra.mxu0 %v638
    %1075 = vmatmul.f32.gmra.mxu0 %v88
    %v1076 = vpop.f32.mrf.mxu0
    %v1077 = vadd.f32 0.0, %v1076
    %1078 = vmatmul.f32.gmra.mxu0 %v91
    %v1079 = vpop.f32.mrf.mxu0
    %v1080 = vadd.f32 0.0, %v1079
    %1081 = vmatmul.f32.gmra.mxu0 %v94
    %v1082 = vpop.f32.mrf.mxu0
    %v1083 = vadd.f32 0.0, %v1082
    %1084 = vmatmul.f32.gmra.mxu0 %v97
    %v1085 = vpop.f32.mrf.mxu0
    %v1086 = vadd.f32 0.0, %v1085
    %1087 = vdwg.mxu0
    %1088 = vmatpush.msra.mxu0 0.0
    %1089 = vmatpush.msra.mxu0 0.0
    %1090 = vmatpush.msra.mxu0 0.0
    %1091 = vmatpush.msra.mxu0 0.0
    %1092 = vmatpush.msra.mxu0 0.0
    %1093 = vmatpush.msra.mxu0 0.0
    %1094 = vmatpush.msra.mxu0 0.0
    %1095 = vmatpush.msra.mxu0 0.0
    %1096 = vmatpush.msra.mxu0 0.0
    %1097 = vmatpush.msra.mxu0 0.0
    %1098 = vmatpush.msra.mxu0 0.0
    %1099 = vmatpush.msra.mxu0 0.0
    %1100 = vmatpush.msra.mxu0 %v459
    %1101 = vmatpush.msra.mxu0 %v458
    %1102 = vmatpush.msra.mxu0 %v457
    %1103 = vmatpush.msra.mxu0 %v456
    %1104 = vmatmul.f32.gmra.mxu0 %v129
    %v1105 = vpop.f32.mrf.mxu0
    %v1106 = vadd.f32 %v1077, %v1105
    %1107 = vmatmul.f32.gmra.mxu0 %v132
    %v1108 = vpop.f32.mrf.mxu0
    %v1109 = vadd.f32 %v1080, %v1108
    %1110 = vmatmul.f32.gmra.mxu0 %v135
    %v1111 = vpop.f32.mrf.mxu0
    %v1112 = vadd.f32 %v1083, %v1111
    %1113 = vmatmul.f32.gmra.mxu0 %v138
    %v1114 = vpop.f32.mrf.mxu0
    %v1115 = vadd.f32 %v1086, %v1114
    %1116 = vdwg.mxu0
    %1117 = vmatpush.msra.mxu0 0.0
    %1118 = vmatpush.msra.mxu0 0.0
    %1119 = vmatpush.msra.mxu0 0.0
    %1120 = vmatpush.msra.mxu0 0.0
    %1121 = vmatpush.msra.mxu0 0.0
    %1122 = vmatpush.msra.mxu0 0.0
    %1123 = vmatpush.msra.mxu0 0.0
    %1124 = vmatpush.msra.mxu0 0.0
    %1125 = vmatpush.msra.mxu0 0.0
    %1126 = vmatpush.msra.mxu0 0.0
    %1127 = vmatpush.msra.mxu0 0.0
    %1128 = vmatpush.msra.mxu0 0.0
    %1129 = vmatpush.msra.mxu0 %v823
    %1130 = vmatpush.msra.mxu0 %v822
    %1131 = vmatpush.msra.mxu0 %v821
    %1132 = vmatpush.msra.mxu0 %v820
    %1133 = vmatmul.f32.gmra.mxu0 %v175
    %v1134 = vpop.f32.mrf.mxu0
    %v1135 = vadd.f32 0.0, %v1134
    %1136 = vmatmul.f32.gmra.mxu0 %v178
    %v1137 = vpop.f32.mrf.mxu0
    %v1138 = vadd.f32 0.0, %v1137
    %1139 = vmatmul.f32.gmra.mxu0 %v181
    %v1140 = vpop.f32.mrf.mxu0
    %v1141 = vadd.f32 0.0, %v1140
    %1142 = vmatmul.f32.gmra.mxu0 %v184
    %v1143 = vpop.f32.mrf.mxu0
    %v1144 = vadd.f32 0.0, %v1143
    %1145 = vdwg.mxu0
    %v1146 = vadd.f32 %v1106, %v1135
    %v1147 = vadd.f32 %v1109, %v1138
    %v1148 = vadd.f32 %v1112, %v1141
    %v1149 = vadd.f32 %v1115, %v1144
    %1150 = vmatpush.msra.mxu0 0.0
    %1151 = vmatpush.msra.mxu0 0.0
    %1152 = vmatpush.msra.mxu0 0.0
    %1153 = vmatpush.msra.mxu0 0.0
    %1154 = vmatpush.msra.mxu0 0.0
    %1155 = vmatpush.msra.mxu0 0.0
    %1156 = vmatpush.msra.mxu0 0.0
    %1157 = vmatpush.msra.mxu0 0.0
    %1158 = vmatpush.msra.mxu0 0.0
    %1159 = vmatpush.msra.mxu0 0.0
    %1160 = vmatpush.msra.mxu0 0.0
    %1161 = vmatpush.msra.mxu0 0.0
    %1162 = vmatpush.msra.mxu0 %v1005
    %1163 = vmatpush.msra.mxu0 %v1004
    %1164 = vmatpush.msra.mxu0 %v1003
    %1165 = vmatpush.msra.mxu0 %v1002
    %1166 = vmatmul.f32.gmra.mxu0 %v225
    %v1167 = vpop.f32.mrf.mxu0
    %v1168 = vadd.f32 0.0, %v1167
    %1169 = vmatmul.f32.gmra.mxu0 %v228
    %v1170 = vpop.f32.mrf.mxu0
    %v1171 = vadd.f32 0.0, %v1170
    %1172 = vmatmul.f32.gmra.mxu0 %v231
    %v1173 = vpop.f32.mrf.mxu0
    %v1174 = vadd.f32 0.0, %v1173
    %1175 = vmatmul.f32.gmra.mxu0 %v234
    %v1176 = vpop.f32.mrf.mxu0
    %v1177 = vadd.f32 0.0, %v1176
    %1178 = vdwg.mxu0
    %v1179 = vadd.f32 %v1146, %v1168
    %v1180 = vadd.f32 %v1147, %v1171
    %v1181 = vadd.f32 %v1148, %v1174
    %v1182 = vadd.f32 %v1149, %v1177
    %s1183 = scalar_lea.vmem [#allocation2], 288
    %v1184 = vld [vmem:[%s1183] sm:$0xff]
    %v1185 = vld [vmem:[%s1183 + $0x8] sm:$0xff]
    %v1186 = vld [vmem:[%s1183 + $0x10] sm:$0xff]
    %v1187 = vld [vmem:[%s1183 + $0x18] sm:$0xff]
    %1188 = vmatpush.msra.mxu0 0.0
    %1189 = vmatpush.msra.mxu0 0.0
    %1190 = vmatpush.msra.mxu0 0.0
    %1191 = vmatpush.msra.mxu0 0.0
    %1192 = vmatpush.msra.mxu0 0.0
    %1193 = vmatpush.msra.mxu0 0.0
    %1194 = vmatpush.msra.mxu0 0.0
    %1195 = vmatpush.msra.mxu0 0.0
    %1196 = vmatpush.msra.mxu0 0.0
    %1197 = vmatpush.msra.mxu0 0.0
    %1198 = vmatpush.msra.mxu0 0.0
    %1199 = vmatpush.msra.mxu0 0.0
    %1200 = vmatpush.msra.mxu0 %v1187
    %1201 = vmatpush.msra.mxu0 %v1186
    %1202 = vmatpush.msra.mxu0 %v1185
    %1203 = vmatpush.msra.mxu0 %v1184
    %1204 = vmatmul.f32.gmra.mxu0 %v275
    %v1205 = vpop.f32.mrf.mxu0
    %v1206 = vadd.f32 0.0, %v1205
    %1207 = vmatmul.f32.gmra.mxu0 %v278
    %v1208 = vpop.f32.mrf.mxu0
    %v1209 = vadd.f32 0.0, %v1208
    %1210 = vmatmul.f32.gmra.mxu0 %v281
    %v1211 = vpop.f32.mrf.mxu0
    %v1212 = vadd.f32 0.0, %v1211
    %1213 = vmatmul.f32.gmra.mxu0 %v284
    %v1214 = vpop.f32.mrf.mxu0
    %v1215 = vadd.f32 0.0, %v1214
    %1216 = vdwg.mxu0
    %v1217 = vadd.f32 %v1179, %v1206
    %v1218 = vadd.f32 %v1180, %v1209
    %v1219 = vadd.f32 %v1181, %v1212
    %v1220 = vadd.f32 %v1182, %v1215
    %v1221 = vadd.f32 %v1039, %v1217
    %v1222 = vadd.f32 %v1040, %v1218
    %v1223 = vadd.f32 %v1041, %v1219
    %v1224 = vadd.f32 %v1042, %v1220
    %v1225 = vmul.f32 %v1217, %v1217
    %v1226 = vmul.f32 %v1218, %v1218
    %v1227 = vmul.f32 %v1219, %v1219
    %v1228 = vmul.f32 %v1220, %v1220
    %v1229 = vadd.f32 %v1047, %v1225
    %v1230 = vadd.f32 %v1048, %v1226
    %v1231 = vadd.f32 %v1049, %v1227
    %v1232 = vadd.f32 %v1050, %v1228
    %v1233 = vmax.f32 %v1051, %v1217
    %v1234 = vmax.f32 %v1052, %v1218
    %v1235 = vmax.f32 %v1053, %v1219
    %v1236 = vmax.f32 %v1054, %v1220
    %v1237 = vmin.f32 %v1055, %v1217
    %v1238 = vmin.f32 %v1056, %v1218
    %v1239 = vmin.f32 %v1057, %v1219
    %v1240 = vmin.f32 %v1058, %v1220
    %1241 = vmatpush.msra.mxu0 0.0
    %1242 = vmatpush.msra.mxu0 0.0
    %1243 = vmatpush.msra.mxu0 0.0
    %1244 = vmatpush.msra.mxu0 0.0
    %1245 = vmatpush.msra.mxu0 0.0
    %1246 = vmatpush.msra.mxu0 0.0
    %1247 = vmatpush.msra.mxu0 0.0
    %1248 = vmatpush.msra.mxu0 0.0
    %1249 = vmatpush.msra.mxu0 0.0
    %1250 = vmatpush.msra.mxu0 0.0
    %1251 = vmatpush.msra.mxu0 0.0
    %1252 = vmatpush.msra.mxu0 0.0
    %1253 = vmatpush.msra.mxu0 %v823
    %1254 = vmatpush.msra.mxu0 %v822
    %1255 = vmatpush.msra.mxu0 %v821
    %1256 = vmatpush.msra.mxu0 %v820
    %1257 = vmatmul.f32.gmra.mxu0 %v88
    %v1258 = vpop.f32.mrf.mxu0
    %v1259 = vadd.f32 0.0, %v1258
    %1260 = vmatmul.f32.gmra.mxu0 %v91
    %v1261 = vpop.f32.mrf.mxu0
    %v1262 = vadd.f32 0.0, %v1261
    %1263 = vmatmul.f32.gmra.mxu0 %v94
    %v1264 = vpop.f32.mrf.mxu0
    %v1265 = vadd.f32 0.0, %v1264
    %1266 = vmatmul.f32.gmra.mxu0 %v97
    %v1267 = vpop.f32.mrf.mxu0
    %v1268 = vadd.f32 0.0, %v1267
    %1269 = vdwg.mxu0
    %1270 = vmatpush.msra.mxu0 0.0
    %1271 = vmatpush.msra.mxu0 0.0
    %1272 = vmatpush.msra.mxu0 0.0
    %1273 = vmatpush.msra.mxu0 0.0
    %1274 = vmatpush.msra.mxu0 0.0
    %1275 = vmatpush.msra.mxu0 0.0
    %1276 = vmatpush.msra.mxu0 0.0
    %1277 = vmatpush.msra.mxu0 0.0
    %1278 = vmatpush.msra.mxu0 0.0
    %1279 = vmatpush.msra.mxu0 0.0
    %1280 = vmatpush.msra.mxu0 0.0
    %1281 = vmatpush.msra.mxu0 0.0
    %1282 = vmatpush.msra.mxu0 %v641
    %1283 = vmatpush.msra.mxu0 %v640
    %1284 = vmatpush.msra.mxu0 %v639
    %1285 = vmatpush.msra.mxu0 %v638
    %1286 = vmatmul.f32.gmra.mxu0 %v129
    %v1287 = vpop.f32.mrf.mxu0
    %v1288 = vadd.f32 %v1259, %v1287
    %1289 = vmatmul.f32.gmra.mxu0 %v132
    %v1290 = vpop.f32.mrf.mxu0
    %v1291 = vadd.f32 %v1262, %v1290
    %1292 = vmatmul.f32.gmra.mxu0 %v135
    %v1293 = vpop.f32.mrf.mxu0
    %v1294 = vadd.f32 %v1265, %v1293
    %1295 = vmatmul.f32.gmra.mxu0 %v138
    %v1296 = vpop.f32.mrf.mxu0
    %v1297 = vadd.f32 %v1268, %v1296
    %1298 = vdwg.mxu0
    %1299 = vmatpush.msra.mxu0 0.0
    %1300 = vmatpush.msra.mxu0 0.0
    %1301 = vmatpush.msra.mxu0 0.0
    %1302 = vmatpush.msra.mxu0 0.0
    %1303 = vmatpush.msra.mxu0 0.0
    %1304 = vmatpush.msra.mxu0 0.0
    %1305 = vmatpush.msra.mxu0 0.0
    %1306 = vmatpush.msra.mxu0 0.0
    %1307 = vmatpush.msra.mxu0 0.0
    %1308 = vmatpush.msra.mxu0 0.0
    %1309 = vmatpush.msra.mxu0 0.0
    %1310 = vmatpush.msra.mxu0 0.0
    %1311 = vmatpush.msra.mxu0 %v1005
    %1312 = vmatpush.msra.mxu0 %v1004
    %1313 = vmatpush.msra.mxu0 %v1003
    %1314 = vmatpush.msra.mxu0 %v1002
    %1315 = vmatmul.f32.gmra.mxu0 %v175
    %v1316 = vpop.f32.mrf.mxu0
    %v1317 = vadd.f32 0.0, %v1316
    %1318 = vmatmul.f32.gmra.mxu0 %v178
    %v1319 = vpop.f32.mrf.mxu0
    %v1320 = vadd.f32 0.0, %v1319
    %1321 = vmatmul.f32.gmra.mxu0 %v181
    %v1322 = vpop.f32.mrf.mxu0
    %v1323 = vadd.f32 0.0, %v1322
    %1324 = vmatmul.f32.gmra.mxu0 %v184
    %v1325 = vpop.f32.mrf.mxu0
    %v1326 = vadd.f32 0.0, %v1325
    %1327 = vdwg.mxu0
    %v1328 = vadd.f32 %v1288, %v1317
    %v1329 = vadd.f32 %v1291, %v1320
    %v1330 = vadd.f32 %v1294, %v1323
    %v1331 = vadd.f32 %v1297, %v1326
    %1332 = vmatpush.msra.mxu0 0.0
    %1333 = vmatpush.msra.mxu0 0.0
    %1334 = vmatpush.msra.mxu0 0.0
    %1335 = vmatpush.msra.mxu0 0.0
    %1336 = vmatpush.msra.mxu0 0.0
    %1337 = vmatpush.msra.mxu0 0.0
    %1338 = vmatpush.msra.mxu0 0.0
    %1339 = vmatpush.msra.mxu0 0.0
    %1340 = vmatpush.msra.mxu0 0.0
    %1341 = vmatpush.msra.mxu0 0.0
    %1342 = vmatpush.msra.mxu0 0.0
    %1343 = vmatpush.msra.mxu0 0.0
    %1344 = vmatpush.msra.mxu0 %v1187
    %1345 = vmatpush.msra.mxu0 %v1186
    %1346 = vmatpush.msra.mxu0 %v1185
    %1347 = vmatpush.msra.mxu0 %v1184
    %1348 = vmatmul.f32.gmra.mxu0 %v225
    %v1349 = vpop.f32.mrf.mxu0
    %v1350 = vadd.f32 0.0, %v1349
    %1351 = vmatmul.f32.gmra.mxu0 %v228
    %v1352 = vpop.f32.mrf.mxu0
    %v1353 = vadd.f32 0.0, %v1352
    %1354 = vmatmul.f32.gmra.mxu0 %v231
    %v1355 = vpop.f32.mrf.mxu0
    %v1356 = vadd.f32 0.0, %v1355
    %1357 = vmatmul.f32.gmra.mxu0 %v234
    %v1358 = vpop.f32.mrf.mxu0
    %v1359 = vadd.f32 0.0, %v1358
    %1360 = vdwg.mxu0
    %v1361 = vadd.f32 %v1328, %v1350
    %v1362 = vadd.f32 %v1329, %v1353
    %v1363 = vadd.f32 %v1330, %v1356
    %v1364 = vadd.f32 %v1331, %v1359
    %s1365 = scalar_lea.vmem [#allocation2], 320
    %v1366 = vld [vmem:[%s1365] sm:$0xff]
    %v1367 = vld [vmem:[%s1365 + $0x8] sm:$0xff]
    %v1368 = vld [vmem:[%s1365 + $0x10] sm:$0xff]
    %v1369 = vld [vmem:[%s1365 + $0x18] sm:$0xff]
    %1370 = vmatpush.msra.mxu0 0.0
    %1371 = vmatpush.msra.mxu0 0.0
    %1372 = vmatpush.msra.mxu0 0.0
    %1373 = vmatpush.msra.mxu0 0.0
    %1374 = vmatpush.msra.mxu0 0.0
    %1375 = vmatpush.msra.mxu0 0.0
    %1376 = vmatpush.msra.mxu0 0.0
    %1377 = vmatpush.msra.mxu0 0.0
    %1378 = vmatpush.msra.mxu0 0.0
    %1379 = vmatpush.msra.mxu0 0.0
    %1380 = vmatpush.msra.mxu0 0.0
    %1381 = vmatpush.msra.mxu0 0.0
    %1382 = vmatpush.msra.mxu0 %v1369
    %1383 = vmatpush.msra.mxu0 %v1368
    %1384 = vmatpush.msra.mxu0 %v1367
    %1385 = vmatpush.msra.mxu0 %v1366
    %1386 = vmatmul.f32.gmra.mxu0 %v275
    %v1387 = vpop.f32.mrf.mxu0
    %v1388 = vadd.f32 0.0, %v1387
    %1389 = vmatmul.f32.gmra.mxu0 %v278
    %v1390 = vpop.f32.mrf.mxu0
    %v1391 = vadd.f32 0.0, %v1390
    %1392 = vmatmul.f32.gmra.mxu0 %v281
    %v1393 = vpop.f32.mrf.mxu0
    %v1394 = vadd.f32 0.0, %v1393
    %1395 = vmatmul.f32.gmra.mxu0 %v284
    %v1396 = vpop.f32.mrf.mxu0
    %v1397 = vadd.f32 0.0, %v1396
    %1398 = vdwg.mxu0
    %v1399 = vadd.f32 %v1361, %v1388
    %v1400 = vadd.f32 %v1362, %v1391
    %v1401 = vadd.f32 %v1363, %v1394
    %v1402 = vadd.f32 %v1364, %v1397
    %v1403 = vadd.f32 %v1221, %v1399
    %v1404 = vadd.f32 %v1222, %v1400
    %v1405 = vadd.f32 %v1223, %v1401
    %v1406 = vadd.f32 %v1224, %v1402
    %v1407 = vmul.f32 %v1399, %v1399
    %v1408 = vmul.f32 %v1400, %v1400
    %v1409 = vmul.f32 %v1401, %v1401
    %v1410 = vmul.f32 %v1402, %v1402
    %v1411 = vadd.f32 %v1229, %v1407
    %v1412 = vadd.f32 %v1230, %v1408
    %v1413 = vadd.f32 %v1231, %v1409
    %v1414 = vadd.f32 %v1232, %v1410
    %v1415 = vmax.f32 %v1233, %v1399
    %v1416 = vmax.f32 %v1234, %v1400
    %v1417 = vmax.f32 %v1235, %v1401
    %v1418 = vmax.f32 %v1236, %v1402
    %v1419 = vmin.f32 %v1237, %v1399
    %v1420 = vmin.f32 %v1238, %v1400
    %v1421 = vmin.f32 %v1239, %v1401
    %v1422 = vmin.f32 %v1240, %v1402
    %1423 = vmatpush.msra.mxu0 0.0
    %1424 = vmatpush.msra.mxu0 0.0
    %1425 = vmatpush.msra.mxu0 0.0
    %1426 = vmatpush.msra.mxu0 0.0
    %1427 = vmatpush.msra.mxu0 0.0
    %1428 = vmatpush.msra.mxu0 0.0
    %1429 = vmatpush.msra.mxu0 0.0
    %1430 = vmatpush.msra.mxu0 0.0
    %1431 = vmatpush.msra.mxu0 0.0
    %1432 = vmatpush.msra.mxu0 0.0
    %1433 = vmatpush.msra.mxu0 0.0
    %1434 = vmatpush.msra.mxu0 0.0
    %1435 = vmatpush.msra.mxu0 %v1005
    %1436 = vmatpush.msra.mxu0 %v1004
    %1437 = vmatpush.msra.mxu0 %v1003
    %1438 = vmatpush.msra.mxu0 %v1002
    %1439 = vmatmul.f32.gmra.mxu0 %v88
    %v1440 = vpop.f32.mrf.mxu0
    %v1441 = vadd.f32 0.0, %v1440
    %1442 = vmatmul.f32.gmra.mxu0 %v91
    %v1443 = vpop.f32.mrf.mxu0
    %v1444 = vadd.f32 0.0, %v1443
    %1445 = vmatmul.f32.gmra.mxu0 %v94
    %v1446 = vpop.f32.mrf.mxu0
    %v1447 = vadd.f32 0.0, %v1446
    %1448 = vmatmul.f32.gmra.mxu0 %v97
    %v1449 = vpop.f32.mrf.mxu0
    %v1450 = vadd.f32 0.0, %v1449
    %1451 = vdwg.mxu0
    %1452 = vmatpush.msra.mxu0 0.0
    %1453 = vmatpush.msra.mxu0 0.0
    %1454 = vmatpush.msra.mxu0 0.0
    %1455 = vmatpush.msra.mxu0 0.0
    %1456 = vmatpush.msra.mxu0 0.0
    %1457 = vmatpush.msra.mxu0 0.0
    %1458 = vmatpush.msra.mxu0 0.0
    %1459 = vmatpush.msra.mxu0 0.0
    %1460 = vmatpush.msra.mxu0 0.0
    %1461 = vmatpush.msra.mxu0 0.0
    %1462 = vmatpush.msra.mxu0 0.0
    %1463 = vmatpush.msra.mxu0 0.0
    %1464 = vmatpush.msra.mxu0 %v823
    %1465 = vmatpush.msra.mxu0 %v822
    %1466 = vmatpush.msra.mxu0 %v821
    %1467 = vmatpush.msra.mxu0 %v820
    %1468 = vmatmul.f32.gmra.mxu0 %v129
    %v1469 = vpop.f32.mrf.mxu0
    %v1470 = vadd.f32 %v1441, %v1469
    %1471 = vmatmul.f32.gmra.mxu0 %v132
    %v1472 = vpop.f32.mrf.mxu0
    %v1473 = vadd.f32 %v1444, %v1472
    %1474 = vmatmul.f32.gmra.mxu0 %v135
    %v1475 = vpop.f32.mrf.mxu0
    %v1476 = vadd.f32 %v1447, %v1475
    %1477 = vmatmul.f32.gmra.mxu0 %v138
    %v1478 = vpop.f32.mrf.mxu0
    %v1479 = vadd.f32 %v1450, %v1478
    %1480 = vdwg.mxu0
    %1481 = vmatpush.msra.mxu0 0.0
    %1482 = vmatpush.msra.mxu0 0.0
    %1483 = vmatpush.msra.mxu0 0.0
    %1484 = vmatpush.msra.mxu0 0.0
    %1485 = vmatpush.msra.mxu0 0.0
    %1486 = vmatpush.msra.mxu0 0.0
    %1487 = vmatpush.msra.mxu0 0.0
    %1488 = vmatpush.msra.mxu0 0.0
    %1489 = vmatpush.msra.mxu0 0.0
    %1490 = vmatpush.msra.mxu0 0.0
    %1491 = vmatpush.msra.mxu0 0.0
    %1492 = vmatpush.msra.mxu0 0.0
    %1493 = vmatpush.msra.mxu0 %v1187
    %1494 = vmatpush.msra.mxu0 %v1186
    %1495 = vmatpush.msra.mxu0 %v1185
    %1496 = vmatpush.msra.mxu0 %v1184
    %1497 = vmatmul.f32.gmra.mxu0 %v175
    %v1498 = vpop.f32.mrf.mxu0
    %v1499 = vadd.f32 0.0, %v1498
    %1500 = vmatmul.f32.gmra.mxu0 %v178
    %v1501 = vpop.f32.mrf.mxu0
    %v1502 = vadd.f32 0.0, %v1501
    %1503 = vmatmul.f32.gmra.mxu0 %v181
    %v1504 = vpop.f32.mrf.mxu0
    %v1505 = vadd.f32 0.0, %v1504
    %1506 = vmatmul.f32.gmra.mxu0 %v184
    %v1507 = vpop.f32.mrf.mxu0
    %v1508 = vadd.f32 0.0, %v1507
    %1509 = vdwg.mxu0
    %v1510 = vadd.f32 %v1470, %v1499
    %v1511 = vadd.f32 %v1473, %v1502
    %v1512 = vadd.f32 %v1476, %v1505
    %v1513 = vadd.f32 %v1479, %v1508
    %1514 = vmatpush.msra.mxu0 0.0
    %1515 = vmatpush.msra.mxu0 0.0
    %1516 = vmatpush.msra.mxu0 0.0
    %1517 = vmatpush.msra.mxu0 0.0
    %1518 = vmatpush.msra.mxu0 0.0
    %1519 = vmatpush.msra.mxu0 0.0
    %1520 = vmatpush.msra.mxu0 0.0
    %1521 = vmatpush.msra.mxu0 0.0
    %1522 = vmatpush.msra.mxu0 0.0
    %1523 = vmatpush.msra.mxu0 0.0
    %1524 = vmatpush.msra.mxu0 0.0
    %1525 = vmatpush.msra.mxu0 0.0
    %1526 = vmatpush.msra.mxu0 %v1369
    %1527 = vmatpush.msra.mxu0 %v1368
    %1528 = vmatpush.msra.mxu0 %v1367
    %1529 = vmatpush.msra.mxu0 %v1366
    %1530 = vmatmul.f32.gmra.mxu0 %v225
    %v1531 = vpop.f32.mrf.mxu0
    %v1532 = vadd.f32 0.0, %v1531
    %1533 = vmatmul.f32.gmra.mxu0 %v228
    %v1534 = vpop.f32.mrf.mxu0
    %v1535 = vadd.f32 0.0, %v1534
    %1536 = vmatmul.f32.gmra.mxu0 %v231
    %v1537 = vpop.f32.mrf.mxu0
    %v1538 = vadd.f32 0.0, %v1537
    %1539 = vmatmul.f32.gmra.mxu0 %v234
    %v1540 = vpop.f32.mrf.mxu0
    %v1541 = vadd.f32 0.0, %v1540
    %1542 = vdwg.mxu0
    %v1543 = vadd.f32 %v1510, %v1532
    %v1544 = vadd.f32 %v1511, %v1535
    %v1545 = vadd.f32 %v1512, %v1538
    %v1546 = vadd.f32 %v1513, %v1541
    %s1547 = scalar_lea.vmem [#allocation2], 352
    %v1548 = vld [vmem:[%s1547] sm:$0xff]
    %v1549 = vld [vmem:[%s1547 + $0x8] sm:$0xff]
    %v1550 = vld [vmem:[%s1547 + $0x10] sm:$0xff]
    %v1551 = vld [vmem:[%s1547 + $0x18] sm:$0xff]
    %1552 = vmatpush.msra.mxu0 0.0
    %1553 = vmatpush.msra.mxu0 0.0
    %1554 = vmatpush.msra.mxu0 0.0
    %1555 = vmatpush.msra.mxu0 0.0
    %1556 = vmatpush.msra.mxu0 0.0
    %1557 = vmatpush.msra.mxu0 0.0
    %1558 = vmatpush.msra.mxu0 0.0
    %1559 = vmatpush.msra.mxu0 0.0
    %1560 = vmatpush.msra.mxu0 0.0
    %1561 = vmatpush.msra.mxu0 0.0
    %1562 = vmatpush.msra.mxu0 0.0
    %1563 = vmatpush.msra.mxu0 0.0
    %1564 = vmatpush.msra.mxu0 %v1551
    %1565 = vmatpush.msra.mxu0 %v1550
    %1566 = vmatpush.msra.mxu0 %v1549
    %1567 = vmatpush.msra.mxu0 %v1548
    %1568 = vmatmul.f32.gmra.mxu0 %v275
    %v1569 = vpop.f32.mrf.mxu0
    %v1570 = vadd.f32 0.0, %v1569
    %1571 = vmatmul.f32.gmra.mxu0 %v278
    %v1572 = vpop.f32.mrf.mxu0
    %v1573 = vadd.f32 0.0, %v1572
    %1574 = vmatmul.f32.gmra.mxu0 %v281
    %v1575 = vpop.f32.mrf.mxu0
    %v1576 = vadd.f32 0.0, %v1575
    %1577 = vmatmul.f32.gmra.mxu0 %v284
    %v1578 = vpop.f32.mrf.mxu0
    %v1579 = vadd.f32 0.0, %v1578
    %1580 = vdwg.mxu0
    %v1581 = vadd.f32 %v1543, %v1570
    %v1582 = vadd.f32 %v1544, %v1573
    %v1583 = vadd.f32 %v1545, %v1576
    %v1584 = vadd.f32 %v1546, %v1579
    %v1585 = vadd.f32 %v1403, %v1581
    %v1586 = vadd.f32 %v1404, %v1582
    %v1587 = vadd.f32 %v1405, %v1583
    %v1588 = vadd.f32 %v1406, %v1584
    %v1589 = vmul.f32 %v1581, %v1581
    %v1590 = vmul.f32 %v1582, %v1582
    %v1591 = vmul.f32 %v1583, %v1583
    %v1592 = vmul.f32 %v1584, %v1584
    %v1593 = vadd.f32 %v1411, %v1589
    %v1594 = vadd.f32 %v1412, %v1590
    %v1595 = vadd.f32 %v1413, %v1591
    %v1596 = vadd.f32 %v1414, %v1592
    %v1597 = vmax.f32 %v1415, %v1581
    %v1598 = vmax.f32 %v1416, %v1582
    %v1599 = vmax.f32 %v1417, %v1583
    %v1600 = vmax.f32 %v1418, %v1584
    %v1601 = vmin.f32 %v1419, %v1581
    %v1602 = vmin.f32 %v1420, %v1582
    %v1603 = vmin.f32 %v1421, %v1583
    %v1604 = vmin.f32 %v1422, %v1584
    %1605 = vmatpush.msra.mxu0 0.0
    %1606 = vmatpush.msra.mxu0 0.0
    %1607 = vmatpush.msra.mxu0 0.0
    %1608 = vmatpush.msra.mxu0 0.0
    %1609 = vmatpush.msra.mxu0 0.0
    %1610 = vmatpush.msra.mxu0 0.0
    %1611 = vmatpush.msra.mxu0 0.0
    %1612 = vmatpush.msra.mxu0 0.0
    %1613 = vmatpush.msra.mxu0 0.0
    %1614 = vmatpush.msra.mxu0 0.0
    %1615 = vmatpush.msra.mxu0 0.0
    %1616 = vmatpush.msra.mxu0 0.0
    %1617 = vmatpush.msra.mxu0 %v1187
    %1618 = vmatpush.msra.mxu0 %v1186
    %1619 = vmatpush.msra.mxu0 %v1185
    %1620 = vmatpush.msra.mxu0 %v1184
    %1621 = vmatmul.f32.gmra.mxu0 %v88
    %v1622 = vpop.f32.mrf.mxu0
    %v1623 = vadd.f32 0.0, %v1622
    %1624 = vmatmul.f32.gmra.mxu0 %v91
    %v1625 = vpop.f32.mrf.mxu0
    %v1626 = vadd.f32 0.0, %v1625
    %1627 = vmatmul.f32.gmra.mxu0 %v94
    %v1628 = vpop.f32.mrf.mxu0
    %v1629 = vadd.f32 0.0, %v1628
    %1630 = vmatmul.f32.gmra.mxu0 %v97
    %v1631 = vpop.f32.mrf.mxu0
    %v1632 = vadd.f32 0.0, %v1631
    %1633 = vdwg.mxu0
    %1634 = vmatpush.msra.mxu0 0.0
    %1635 = vmatpush.msra.mxu0 0.0
    %1636 = vmatpush.msra.mxu0 0.0
    %1637 = vmatpush.msra.mxu0 0.0
    %1638 = vmatpush.msra.mxu0 0.0
    %1639 = vmatpush.msra.mxu0 0.0
    %1640 = vmatpush.msra.mxu0 0.0
    %1641 = vmatpush.msra.mxu0 0.0
    %1642 = vmatpush.msra.mxu0 0.0
    %1643 = vmatpush.msra.mxu0 0.0
    %1644 = vmatpush.msra.mxu0 0.0
    %1645 = vmatpush.msra.mxu0 0.0
    %1646 = vmatpush.msra.mxu0 %v1005
    %1647 = vmatpush.msra.mxu0 %v1004
    %1648 = vmatpush.msra.mxu0 %v1003
    %1649 = vmatpush.msra.mxu0 %v1002
    %1650 = vmatmul.f32.gmra.mxu0 %v129
    %v1651 = vpop.f32.mrf.mxu0
    %v1652 = vadd.f32 %v1623, %v1651
    %1653 = vmatmul.f32.gmra.mxu0 %v132
    %v1654 = vpop.f32.mrf.mxu0
    %v1655 = vadd.f32 %v1626, %v1654
    %1656 = vmatmul.f32.gmra.mxu0 %v135
    %v1657 = vpop.f32.mrf.mxu0
    %v1658 = vadd.f32 %v1629, %v1657
    %1659 = vmatmul.f32.gmra.mxu0 %v138
    %v1660 = vpop.f32.mrf.mxu0
    %v1661 = vadd.f32 %v1632, %v1660
    %1662 = vdwg.mxu0
    %1663 = vmatpush.msra.mxu0 0.0
    %1664 = vmatpush.msra.mxu0 0.0
    %1665 = vmatpush.msra.mxu0 0.0
    %1666 = vmatpush.msra.mxu0 0.0
    %1667 = vmatpush.msra.mxu0 0.0
    %1668 = vmatpush.msra.mxu0 0.0
    %1669 = vmatpush.msra.mxu0 0.0
    %1670 = vmatpush.msra.mxu0 0.0
    %1671 = vmatpush.msra.mxu0 0.0
    %1672 = vmatpush.msra.mxu0 0.0
    %1673 = vmatpush.msra.mxu0 0.0
    %1674 = vmatpush.msra.mxu0 0.0
    %1675 = vmatpush.msra.mxu0 %v1369
    %1676 = vmatpush.msra.mxu0 %v1368
    %1677 = vmatpush.msra.mxu0 %v1367
    %1678 = vmatpush.msra.mxu0 %v1366
    %1679 = vmatmul.f32.gmra.mxu0 %v175
    %v1680 = vpop.f32.mrf.mxu0
    %v1681 = vadd.f32 0.0, %v1680
    %1682 = vmatmul.f32.gmra.mxu0 %v178
    %v1683 = vpop.f32.mrf.mxu0
    %v1684 = vadd.f32 0.0, %v1683
    %1685 = vmatmul.f32.gmra.mxu0 %v181
    %v1686 = vpop.f32.mrf.mxu0
    %v1687 = vadd.f32 0.0, %v1686
    %1688 = vmatmul.f32.gmra.mxu0 %v184
    %v1689 = vpop.f32.mrf.mxu0
    %v1690 = vadd.f32 0.0, %v1689
    %1691 = vdwg.mxu0
    %v1692 = vadd.f32 %v1652, %v1681
    %v1693 = vadd.f32 %v1655, %v1684
    %v1694 = vadd.f32 %v1658, %v1687
    %v1695 = vadd.f32 %v1661, %v1690
    %1696 = vmatpush.msra.mxu0 0.0
    %1697 = vmatpush.msra.mxu0 0.0
    %1698 = vmatpush.msra.mxu0 0.0
    %1699 = vmatpush.msra.mxu0 0.0
    %1700 = vmatpush.msra.mxu0 0.0
    %1701 = vmatpush.msra.mxu0 0.0
    %1702 = vmatpush.msra.mxu0 0.0
    %1703 = vmatpush.msra.mxu0 0.0
    %1704 = vmatpush.msra.mxu0 0.0
    %1705 = vmatpush.msra.mxu0 0.0
    %1706 = vmatpush.msra.mxu0 0.0
    %1707 = vmatpush.msra.mxu0 0.0
    %1708 = vmatpush.msra.mxu0 %v1551
    %1709 = vmatpush.msra.mxu0 %v1550
    %1710 = vmatpush.msra.mxu0 %v1549
    %1711 = vmatpush.msra.mxu0 %v1548
    %1712 = vmatmul.f32.gmra.mxu0 %v225
    %v1713 = vpop.f32.mrf.mxu0
    %v1714 = vadd.f32 0.0, %v1713
    %1715 = vmatmul.f32.gmra.mxu0 %v228
    %v1716 = vpop.f32.mrf.mxu0
    %v1717 = vadd.f32 0.0, %v1716
    %1718 = vmatmul.f32.gmra.mxu0 %v231
    %v1719 = vpop.f32.mrf.mxu0
    %v1720 = vadd.f32 0.0, %v1719
    %1721 = vmatmul.f32.gmra.mxu0 %v234
    %v1722 = vpop.f32.mrf.mxu0
    %v1723 = vadd.f32 0.0, %v1722
    %1724 = vdwg.mxu0
    %v1725 = vadd.f32 %v1692, %v1714
    %v1726 = vadd.f32 %v1693, %v1717
    %v1727 = vadd.f32 %v1694, %v1720
    %v1728 = vadd.f32 %v1695, %v1723
    %s1729 = scalar_lea.vmem [#allocation2], 384
    %v1730 = vld [vmem:[%s1729] sm:$0xff]
    %v1731 = vld [vmem:[%s1729 + $0x8] sm:$0xff]
    %v1732 = vld [vmem:[%s1729 + $0x10] sm:$0xff]
    %v1733 = vld [vmem:[%s1729 + $0x18] sm:$0xff]
    %1734 = vmatpush.msra.mxu0 0.0
    %1735 = vmatpush.msra.mxu0 0.0
    %1736 = vmatpush.msra.mxu0 0.0
    %1737 = vmatpush.msra.mxu0 0.0
    %1738 = vmatpush.msra.mxu0 0.0
    %1739 = vmatpush.msra.mxu0 0.0
    %1740 = vmatpush.msra.mxu0 0.0
    %1741 = vmatpush.msra.mxu0 0.0
    %1742 = vmatpush.msra.mxu0 0.0
    %1743 = vmatpush.msra.mxu0 0.0
    %1744 = vmatpush.msra.mxu0 0.0
    %1745 = vmatpush.msra.mxu0 0.0
    %1746 = vmatpush.msra.mxu0 %v1733
    %1747 = vmatpush.msra.mxu0 %v1732
    %1748 = vmatpush.msra.mxu0 %v1731
    %1749 = vmatpush.msra.mxu0 %v1730
    %1750 = vmatmul.f32.gmra.mxu0 %v275
    %v1751 = vpop.f32.mrf.mxu0
    %v1752 = vadd.f32 0.0, %v1751
    %1753 = vmatmul.f32.gmra.mxu0 %v278
    %v1754 = vpop.f32.mrf.mxu0
    %v1755 = vadd.f32 0.0, %v1754
    %1756 = vmatmul.f32.gmra.mxu0 %v281
    %v1757 = vpop.f32.mrf.mxu0
    %v1758 = vadd.f32 0.0, %v1757
    %1759 = vmatmul.f32.gmra.mxu0 %v284
    %v1760 = vpop.f32.mrf.mxu0
    %v1761 = vadd.f32 0.0, %v1760
    %1762 = vdwg.mxu0
    %v1763 = vadd.f32 %v1725, %v1752
    %v1764 = vadd.f32 %v1726, %v1755
    %v1765 = vadd.f32 %v1727, %v1758
    %v1766 = vadd.f32 %v1728, %v1761
    %v1767 = vadd.f32 %v1585, %v1763
    %v1768 = vadd.f32 %v1586, %v1764
    %v1769 = vadd.f32 %v1587, %v1765
    %v1770 = vadd.f32 %v1588, %v1766
    %v1771 = vmul.f32 %v1763, %v1763
    %v1772 = vmul.f32 %v1764, %v1764
    %v1773 = vmul.f32 %v1765, %v1765
    %v1774 = vmul.f32 %v1766, %v1766
    %v1775 = vadd.f32 %v1593, %v1771
    %v1776 = vadd.f32 %v1594, %v1772
    %v1777 = vadd.f32 %v1595, %v1773
    %v1778 = vadd.f32 %v1596, %v1774
    %v1779 = vmax.f32 %v1597, %v1763
    %v1780 = vmax.f32 %v1598, %v1764
    %v1781 = vmax.f32 %v1599, %v1765
    %v1782 = vmax.f32 %v1600, %v1766
    %v1783 = vmin.f32 %v1601, %v1763
    %v1784 = vmin.f32 %v1602, %v1764
    %v1785 = vmin.f32 %v1603, %v1765
    %v1786 = vmin.f32 %v1604, %v1766
    %1787 = vmatpush.msra.mxu0 0.0
    %1788 = vmatpush.msra.mxu0 0.0
    %1789 = vmatpush.msra.mxu0 0.0
    %1790 = vmatpush.msra.mxu0 0.0
    %1791 = vmatpush.msra.mxu0 0.0
    %1792 = vmatpush.msra.mxu0 0.0
    %1793 = vmatpush.msra.mxu0 0.0
    %1794 = vmatpush.msra.mxu0 0.0
    %1795 = vmatpush.msra.mxu0 0.0
    %1796 = vmatpush.msra.mxu0 0.0
    %1797 = vmatpush.msra.mxu0 0.0
    %1798 = vmatpush.msra.mxu0 0.0
    %1799 = vmatpush.msra.mxu0 %v1369
    %1800 = vmatpush.msra.mxu0 %v1368
    %1801 = vmatpush.msra.mxu0 %v1367
    %1802 = vmatpush.msra.mxu0 %v1366
    %1803 = vmatmul.f32.gmra.mxu0 %v88
    %v1804 = vpop.f32.mrf.mxu0
    %v1805 = vadd.f32 0.0, %v1804
    %1806 = vmatmul.f32.gmra.mxu0 %v91
    %v1807 = vpop.f32.mrf.mxu0
    %v1808 = vadd.f32 0.0, %v1807
    %1809 = vmatmul.f32.gmra.mxu0 %v94
    %v1810 = vpop.f32.mrf.mxu0
    %v1811 = vadd.f32 0.0, %v1810
    %1812 = vmatmul.f32.gmra.mxu0 %v97
    %v1813 = vpop.f32.mrf.mxu0
    %v1814 = vadd.f32 0.0, %v1813
    %1815 = vdwg.mxu0
    %1816 = vmatpush.msra.mxu0 0.0
    %1817 = vmatpush.msra.mxu0 0.0
    %1818 = vmatpush.msra.mxu0 0.0
    %1819 = vmatpush.msra.mxu0 0.0
    %1820 = vmatpush.msra.mxu0 0.0
    %1821 = vmatpush.msra.mxu0 0.0
    %1822 = vmatpush.msra.mxu0 0.0
    %1823 = vmatpush.msra.mxu0 0.0
    %1824 = vmatpush.msra.mxu0 0.0
    %1825 = vmatpush.msra.mxu0 0.0
    %1826 = vmatpush.msra.mxu0 0.0
    %1827 = vmatpush.msra.mxu0 0.0
    %1828 = vmatpush.msra.mxu0 %v1187
    %1829 = vmatpush.msra.mxu0 %v1186
    %1830 = vmatpush.msra.mxu0 %v1185
    %1831 = vmatpush.msra.mxu0 %v1184
    %1832 = vmatmul.f32.gmra.mxu0 %v129
    %v1833 = vpop.f32.mrf.mxu0
    %v1834 = vadd.f32 %v1805, %v1833
    %1835 = vmatmul.f32.gmra.mxu0 %v132
    %v1836 = vpop.f32.mrf.mxu0
    %v1837 = vadd.f32 %v1808, %v1836
    %1838 = vmatmul.f32.gmra.mxu0 %v135
    %v1839 = vpop.f32.mrf.mxu0
    %v1840 = vadd.f32 %v1811, %v1839
    %1841 = vmatmul.f32.gmra.mxu0 %v138
    %v1842 = vpop.f32.mrf.mxu0
    %v1843 = vadd.f32 %v1814, %v1842
    %1844 = vdwg.mxu0
    %1845 = vmatpush.msra.mxu0 0.0
    %1846 = vmatpush.msra.mxu0 0.0
    %1847 = vmatpush.msra.mxu0 0.0
    %1848 = vmatpush.msra.mxu0 0.0
    %1849 = vmatpush.msra.mxu0 0.0
    %1850 = vmatpush.msra.mxu0 0.0
    %1851 = vmatpush.msra.mxu0 0.0
    %1852 = vmatpush.msra.mxu0 0.0
    %1853 = vmatpush.msra.mxu0 0.0
    %1854 = vmatpush.msra.mxu0 0.0
    %1855 = vmatpush.msra.mxu0 0.0
    %1856 = vmatpush.msra.mxu0 0.0
    %1857 = vmatpush.msra.mxu0 %v1551
    %1858 = vmatpush.msra.mxu0 %v1550
    %1859 = vmatpush.msra.mxu0 %v1549
    %1860 = vmatpush.msra.mxu0 %v1548
    %1861 = vmatmul.f32.gmra.mxu0 %v175
    %v1862 = vpop.f32.mrf.mxu0
    %v1863 = vadd.f32 0.0, %v1862
    %1864 = vmatmul.f32.gmra.mxu0 %v178
    %v1865 = vpop.f32.mrf.mxu0
    %v1866 = vadd.f32 0.0, %v1865
    %1867 = vmatmul.f32.gmra.mxu0 %v181
    %v1868 = vpop.f32.mrf.mxu0
    %v1869 = vadd.f32 0.0, %v1868
    %1870 = vmatmul.f32.gmra.mxu0 %v184
    %v1871 = vpop.f32.mrf.mxu0
    %v1872 = vadd.f32 0.0, %v1871
    %1873 = vdwg.mxu0
    %v1874 = vadd.f32 %v1834, %v1863
    %v1875 = vadd.f32 %v1837, %v1866
    %v1876 = vadd.f32 %v1840, %v1869
    %v1877 = vadd.f32 %v1843, %v1872
    %1878 = vmatpush.msra.mxu0 0.0
    %1879 = vmatpush.msra.mxu0 0.0
    %1880 = vmatpush.msra.mxu0 0.0
    %1881 = vmatpush.msra.mxu0 0.0
    %1882 = vmatpush.msra.mxu0 0.0
    %1883 = vmatpush.msra.mxu0 0.0
    %1884 = vmatpush.msra.mxu0 0.0
    %1885 = vmatpush.msra.mxu0 0.0
    %1886 = vmatpush.msra.mxu0 0.0
    %1887 = vmatpush.msra.mxu0 0.0
    %1888 = vmatpush.msra.mxu0 0.0
    %1889 = vmatpush.msra.mxu0 0.0
    %1890 = vmatpush.msra.mxu0 %v1733
    %1891 = vmatpush.msra.mxu0 %v1732
    %1892 = vmatpush.msra.mxu0 %v1731
    %1893 = vmatpush.msra.mxu0 %v1730
    %1894 = vmatmul.f32.gmra.mxu0 %v225
    %v1895 = vpop.f32.mrf.mxu0
    %v1896 = vadd.f32 0.0, %v1895
    %1897 = vmatmul.f32.gmra.mxu0 %v228
    %v1898 = vpop.f32.mrf.mxu0
    %v1899 = vadd.f32 0.0, %v1898
    %1900 = vmatmul.f32.gmra.mxu0 %v231
    %v1901 = vpop.f32.mrf.mxu0
    %v1902 = vadd.f32 0.0, %v1901
    %1903 = vmatmul.f32.gmra.mxu0 %v234
    %v1904 = vpop.f32.mrf.mxu0
    %v1905 = vadd.f32 0.0, %v1904
    %1906 = vdwg.mxu0
    %v1907 = vadd.f32 %v1874, %v1896
    %v1908 = vadd.f32 %v1875, %v1899
    %v1909 = vadd.f32 %v1876, %v1902
    %v1910 = vadd.f32 %v1877, %v1905
    %s1911 = scalar_lea.vmem [#allocation2], 416
    %v1912 = vld [vmem:[%s1911] sm:$0xff]
    %v1913 = vld [vmem:[%s1911 + $0x8] sm:$0xff]
    %v1914 = vld [vmem:[%s1911 + $0x10] sm:$0xff]
    %v1915 = vld [vmem:[%s1911 + $0x18] sm:$0xff]
    %1916 = vmatpush.msra.mxu0 0.0
    %1917 = vmatpush.msra.mxu0 0.0
    %1918 = vmatpush.msra.mxu0 0.0
    %1919 = vmatpush.msra.mxu0 0.0
    %1920 = vmatpush.msra.mxu0 0.0
    %1921 = vmatpush.msra.mxu0 0.0
    %1922 = vmatpush.msra.mxu0 0.0
    %1923 = vmatpush.msra.mxu0 0.0
    %1924 = vmatpush.msra.mxu0 0.0
    %1925 = vmatpush.msra.mxu0 0.0
    %1926 = vmatpush.msra.mxu0 0.0
    %1927 = vmatpush.msra.mxu0 0.0
    %1928 = vmatpush.msra.mxu0 %v1915
    %1929 = vmatpush.msra.mxu0 %v1914
    %1930 = vmatpush.msra.mxu0 %v1913
    %1931 = vmatpush.msra.mxu0 %v1912
    %1932 = vmatmul.f32.gmra.mxu0 %v275
    %v1933 = vpop.f32.mrf.mxu0
    %v1934 = vadd.f32 0.0, %v1933
    %1935 = vmatmul.f32.gmra.mxu0 %v278
    %v1936 = vpop.f32.mrf.mxu0
    %v1937 = vadd.f32 0.0, %v1936
    %1938 = vmatmul.f32.gmra.mxu0 %v281
    %v1939 = vpop.f32.mrf.mxu0
    %v1940 = vadd.f32 0.0, %v1939
    %1941 = vmatmul.f32.gmra.mxu0 %v284
    %v1942 = vpop.f32.mrf.mxu0
    %v1943 = vadd.f32 0.0, %v1942
    %1944 = vdwg.mxu0
    %v1945 = vadd.f32 %v1907, %v1934
    %v1946 = vadd.f32 %v1908, %v1937
    %v1947 = vadd.f32 %v1909, %v1940
    %v1948 = vadd.f32 %v1910, %v1943
    %v1949 = vadd.f32 %v1767, %v1945
    %v1950 = vadd.f32 %v1768, %v1946
    %v1951 = vadd.f32 %v1769, %v1947
    %v1952 = vadd.f32 %v1770, %v1948
    %v1953 = vmul.f32 %v1945, %v1945
    %v1954 = vmul.f32 %v1946, %v1946
    %v1955 = vmul.f32 %v1947, %v1947
    %v1956 = vmul.f32 %v1948, %v1948
    %v1957 = vadd.f32 %v1775, %v1953
    %v1958 = vadd.f32 %v1776, %v1954
    %v1959 = vadd.f32 %v1777, %v1955
    %v1960 = vadd.f32 %v1778, %v1956
    %v1961 = vmax.f32 %v1779, %v1945
    %v1962 = vmax.f32 %v1780, %v1946
    %v1963 = vmax.f32 %v1781, %v1947
    %v1964 = vmax.f32 %v1782, %v1948
    %v1965 = vmin.f32 %v1783, %v1945
    %v1966 = vmin.f32 %v1784, %v1946
    %v1967 = vmin.f32 %v1785, %v1947
    %v1968 = vmin.f32 %v1786, %v1948
    %1969 = vmatpush.msra.mxu0 0.0
    %1970 = vmatpush.msra.mxu0 0.0
    %1971 = vmatpush.msra.mxu0 0.0
    %1972 = vmatpush.msra.mxu0 0.0
    %1973 = vmatpush.msra.mxu0 0.0
    %1974 = vmatpush.msra.mxu0 0.0
    %1975 = vmatpush.msra.mxu0 0.0
    %1976 = vmatpush.msra.mxu0 0.0
    %1977 = vmatpush.msra.mxu0 0.0
    %1978 = vmatpush.msra.mxu0 0.0
    %1979 = vmatpush.msra.mxu0 0.0
    %1980 = vmatpush.msra.mxu0 0.0
    %1981 = vmatpush.msra.mxu0 %v1551
    %1982 = vmatpush.msra.mxu0 %v1550
    %1983 = vmatpush.msra.mxu0 %v1549
    %1984 = vmatpush.msra.mxu0 %v1548
    %1985 = vmatmul.f32.gmra.mxu0 %v88
    %v1986 = vpop.f32.mrf.mxu0
    %v1987 = vadd.f32 0.0, %v1986
    %1988 = vmatmul.f32.gmra.mxu0 %v91
    %v1989 = vpop.f32.mrf.mxu0
    %v1990 = vadd.f32 0.0, %v1989
    %1991 = vmatmul.f32.gmra.mxu0 %v94
    %v1992 = vpop.f32.mrf.mxu0
    %v1993 = vadd.f32 0.0, %v1992
    %1994 = vmatmul.f32.gmra.mxu0 %v97
    %v1995 = vpop.f32.mrf.mxu0
    %v1996 = vadd.f32 0.0, %v1995
    %1997 = vdwg.mxu0
    %1998 = vmatpush.msra.mxu0 0.0
    %1999 = vmatpush.msra.mxu0 0.0
    %2000 = vmatpush.msra.mxu0 0.0
    %2001 = vmatpush.msra.mxu0 0.0
    %2002 = vmatpush.msra.mxu0 0.0
    %2003 = vmatpush.msra.mxu0 0.0
    %2004 = vmatpush.msra.mxu0 0.0
    %2005 = vmatpush.msra.mxu0 0.0
    %2006 = vmatpush.msra.mxu0 0.0
    %2007 = vmatpush.msra.mxu0 0.0
    %2008 = vmatpush.msra.mxu0 0.0
    %2009 = vmatpush.msra.mxu0 0.0
    %2010 = vmatpush.msra.mxu0 %v1369
    %2011 = vmatpush.msra.mxu0 %v1368
    %2012 = vmatpush.msra.mxu0 %v1367
    %2013 = vmatpush.msra.mxu0 %v1366
    %2014 = vmatmul.f32.gmra.mxu0 %v129
    %v2015 = vpop.f32.mrf.mxu0
    %v2016 = vadd.f32 %v1987, %v2015
    %2017 = vmatmul.f32.gmra.mxu0 %v132
    %v2018 = vpop.f32.mrf.mxu0
    %v2019 = vadd.f32 %v1990, %v2018
    %2020 = vmatmul.f32.gmra.mxu0 %v135
    %v2021 = vpop.f32.mrf.mxu0
    %v2022 = vadd.f32 %v1993, %v2021
    %2023 = vmatmul.f32.gmra.mxu0 %v138
    %v2024 = vpop.f32.mrf.mxu0
    %v2025 = vadd.f32 %v1996, %v2024
    %2026 = vdwg.mxu0
    %2027 = vmatpush.msra.mxu0 0.0
    %2028 = vmatpush.msra.mxu0 0.0
    %2029 = vmatpush.msra.mxu0 0.0
    %2030 = vmatpush.msra.mxu0 0.0
    %2031 = vmatpush.msra.mxu0 0.0
    %2032 = vmatpush.msra.mxu0 0.0
    %2033 = vmatpush.msra.mxu0 0.0
    %2034 = vmatpush.msra.mxu0 0.0
    %2035 = vmatpush.msra.mxu0 0.0
    %2036 = vmatpush.msra.mxu0 0.0
    %2037 = vmatpush.msra.mxu0 0.0
    %2038 = vmatpush.msra.mxu0 0.0
    %2039 = vmatpush.msra.mxu0 %v1733
    %2040 = vmatpush.msra.mxu0 %v1732
    %2041 = vmatpush.msra.mxu0 %v1731
    %2042 = vmatpush.msra.mxu0 %v1730
    %2043 = vmatmul.f32.gmra.mxu0 %v175
    %v2044 = vpop.f32.mrf.mxu0
    %v2045 = vadd.f32 0.0, %v2044
    %2046 = vmatmul.f32.gmra.mxu0 %v178
    %v2047 = vpop.f32.mrf.mxu0
    %v2048 = vadd.f32 0.0, %v2047
    %2049 = vmatmul.f32.gmra.mxu0 %v181
    %v2050 = vpop.f32.mrf.mxu0
    %v2051 = vadd.f32 0.0, %v2050
    %2052 = vmatmul.f32.gmra.mxu0 %v184
    %v2053 = vpop.f32.mrf.mxu0
    %v2054 = vadd.f32 0.0, %v2053
    %2055 = vdwg.mxu0
    %v2056 = vadd.f32 %v2016, %v2045
    %v2057 = vadd.f32 %v2019, %v2048
    %v2058 = vadd.f32 %v2022, %v2051
    %v2059 = vadd.f32 %v2025, %v2054
    %2060 = vmatpush.msra.mxu0 0.0
    %2061 = vmatpush.msra.mxu0 0.0
    %2062 = vmatpush.msra.mxu0 0.0
    %2063 = vmatpush.msra.mxu0 0.0
    %2064 = vmatpush.msra.mxu0 0.0
    %2065 = vmatpush.msra.mxu0 0.0
    %2066 = vmatpush.msra.mxu0 0.0
    %2067 = vmatpush.msra.mxu0 0.0
    %2068 = vmatpush.msra.mxu0 0.0
    %2069 = vmatpush.msra.mxu0 0.0
    %2070 = vmatpush.msra.mxu0 0.0
    %2071 = vmatpush.msra.mxu0 0.0
    %2072 = vmatpush.msra.mxu0 %v1915
    %2073 = vmatpush.msra.mxu0 %v1914
    %2074 = vmatpush.msra.mxu0 %v1913
    %2075 = vmatpush.msra.mxu0 %v1912
    %2076 = vmatmul.f32.gmra.mxu0 %v225
    %v2077 = vpop.f32.mrf.mxu0
    %v2078 = vadd.f32 0.0, %v2077
    %2079 = vmatmul.f32.gmra.mxu0 %v228
    %v2080 = vpop.f32.mrf.mxu0
    %v2081 = vadd.f32 0.0, %v2080
    %2082 = vmatmul.f32.gmra.mxu0 %v231
    %v2083 = vpop.f32.mrf.mxu0
    %v2084 = vadd.f32 0.0, %v2083
    %2085 = vmatmul.f32.gmra.mxu0 %v234
    %v2086 = vpop.f32.mrf.mxu0
    %v2087 = vadd.f32 0.0, %v2086
    %2088 = vdwg.mxu0
    %v2089 = vadd.f32 %v2056, %v2078
    %v2090 = vadd.f32 %v2057, %v2081
    %v2091 = vadd.f32 %v2058, %v2084
    %v2092 = vadd.f32 %v2059, %v2087
    %s2093 = scalar_lea.vmem [#allocation2], 448
    %v2094 = vld [vmem:[%s2093] sm:$0xff]
    %v2095 = vld [vmem:[%s2093 + $0x8] sm:$0xff]
    %v2096 = vld [vmem:[%s2093 + $0x10] sm:$0xff]
    %v2097 = vld [vmem:[%s2093 + $0x18] sm:$0xff]
    %2098 = vmatpush.msra.mxu0 0.0
    %2099 = vmatpush.msra.mxu0 0.0
    %2100 = vmatpush.msra.mxu0 0.0
    %2101 = vmatpush.msra.mxu0 0.0
    %2102 = vmatpush.msra.mxu0 0.0
    %2103 = vmatpush.msra.mxu0 0.0
    %2104 = vmatpush.msra.mxu0 0.0
    %2105 = vmatpush.msra.mxu0 0.0
    %2106 = vmatpush.msra.mxu0 0.0
    %2107 = vmatpush.msra.mxu0 0.0
    %2108 = vmatpush.msra.mxu0 0.0
    %2109 = vmatpush.msra.mxu0 0.0
    %2110 = vmatpush.msra.mxu0 %v2097
    %2111 = vmatpush.msra.mxu0 %v2096
    %2112 = vmatpush.msra.mxu0 %v2095
    %2113 = vmatpush.msra.mxu0 %v2094
    %2114 = vmatmul.f32.gmra.mxu0 %v275
    %v2115 = vpop.f32.mrf.mxu0
    %v2116 = vadd.f32 0.0, %v2115
    %2117 = vmatmul.f32.gmra.mxu0 %v278
    %v2118 = vpop.f32.mrf.mxu0
    %v2119 = vadd.f32 0.0, %v2118
    %2120 = vmatmul.f32.gmra.mxu0 %v281
    %v2121 = vpop.f32.mrf.mxu0
    %v2122 = vadd.f32 0.0, %v2121
    %2123 = vmatmul.f32.gmra.mxu0 %v284
    %v2124 = vpop.f32.mrf.mxu0
    %v2125 = vadd.f32 0.0, %v2124
    %2126 = vdwg.mxu0
    %v2127 = vadd.f32 %v2089, %v2116
    %v2128 = vadd.f32 %v2090, %v2119
    %v2129 = vadd.f32 %v2091, %v2122
    %v2130 = vadd.f32 %v2092, %v2125
    %v2131 = vadd.f32 %v1949, %v2127
    %v2132 = vadd.f32 %v1950, %v2128
    %v2133 = vadd.f32 %v1951, %v2129
    %v2134 = vadd.f32 %v1952, %v2130
    %v2135 = vmul.f32 %v2127, %v2127
    %v2136 = vmul.f32 %v2128, %v2128
    %v2137 = vmul.f32 %v2129, %v2129
    %v2138 = vmul.f32 %v2130, %v2130
    %v2139 = vadd.f32 %v1957, %v2135
    %v2140 = vadd.f32 %v1958, %v2136
    %v2141 = vadd.f32 %v1959, %v2137
    %v2142 = vadd.f32 %v1960, %v2138
    %v2143 = vmax.f32 %v1961, %v2127
    %v2144 = vmax.f32 %v1962, %v2128
    %v2145 = vmax.f32 %v1963, %v2129
    %v2146 = vmax.f32 %v1964, %v2130
    %v2147 = vmin.f32 %v1965, %v2127
    %v2148 = vmin.f32 %v1966, %v2128
    %v2149 = vmin.f32 %v1967, %v2129
    %v2150 = vmin.f32 %v1968, %v2130
    %2151 = vmatpush.msra.mxu0 0.0
    %2152 = vmatpush.msra.mxu0 0.0
    %2153 = vmatpush.msra.mxu0 0.0
    %2154 = vmatpush.msra.mxu0 0.0
    %2155 = vmatpush.msra.mxu0 0.0
    %2156 = vmatpush.msra.mxu0 0.0
    %2157 = vmatpush.msra.mxu0 0.0
    %2158 = vmatpush.msra.mxu0 0.0
    %2159 = vmatpush.msra.mxu0 0.0
    %2160 = vmatpush.msra.mxu0 0.0
    %2161 = vmatpush.msra.mxu0 0.0
    %2162 = vmatpush.msra.mxu0 0.0
    %2163 = vmatpush.msra.mxu0 %v1733
    %2164 = vmatpush.msra.mxu0 %v1732
    %2165 = vmatpush.msra.mxu0 %v1731
    %2166 = vmatpush.msra.mxu0 %v1730
    %2167 = vmatmul.f32.gmra.mxu0 %v88
    %v2168 = vpop.f32.mrf.mxu0
    %v2169 = vadd.f32 0.0, %v2168
    %2170 = vmatmul.f32.gmra.mxu0 %v91
    %v2171 = vpop.f32.mrf.mxu0
    %v2172 = vadd.f32 0.0, %v2171
    %2173 = vmatmul.f32.gmra.mxu0 %v94
    %v2174 = vpop.f32.mrf.mxu0
    %v2175 = vadd.f32 0.0, %v2174
    %2176 = vmatmul.f32.gmra.mxu0 %v97
    %v2177 = vpop.f32.mrf.mxu0
    %v2178 = vadd.f32 0.0, %v2177
    %2179 = vdwg.mxu0
    %2180 = vmatpush.msra.mxu0 0.0
    %2181 = vmatpush.msra.mxu0 0.0
    %2182 = vmatpush.msra.mxu0 0.0
    %2183 = vmatpush.msra.mxu0 0.0
    %2184 = vmatpush.msra.mxu0 0.0
    %2185 = vmatpush.msra.mxu0 0.0
    %2186 = vmatpush.msra.mxu0 0.0
    %2187 = vmatpush.msra.mxu0 0.0
    %2188 = vmatpush.msra.mxu0 0.0
    %2189 = vmatpush.msra.mxu0 0.0
    %2190 = vmatpush.msra.mxu0 0.0
    %2191 = vmatpush.msra.mxu0 0.0
    %2192 = vmatpush.msra.mxu0 %v1551
    %2193 = vmatpush.msra.mxu0 %v1550
    %2194 = vmatpush.msra.mxu0 %v1549
    %2195 = vmatpush.msra.mxu0 %v1548
    %2196 = vmatmul.f32.gmra.mxu0 %v129
    %v2197 = vpop.f32.mrf.mxu0
    %v2198 = vadd.f32 %v2169, %v2197
    %2199 = vmatmul.f32.gmra.mxu0 %v132
    %v2200 = vpop.f32.mrf.mxu0
    %v2201 = vadd.f32 %v2172, %v2200
    %2202 = vmatmul.f32.gmra.mxu0 %v135
    %v2203 = vpop.f32.mrf.mxu0
    %v2204 = vadd.f32 %v2175, %v2203
    %2205 = vmatmul.f32.gmra.mxu0 %v138
    %v2206 = vpop.f32.mrf.mxu0
    %v2207 = vadd.f32 %v2178, %v2206
    %2208 = vdwg.mxu0
    %2209 = vmatpush.msra.mxu0 0.0
    %2210 = vmatpush.msra.mxu0 0.0
    %2211 = vmatpush.msra.mxu0 0.0
    %2212 = vmatpush.msra.mxu0 0.0
    %2213 = vmatpush.msra.mxu0 0.0
    %2214 = vmatpush.msra.mxu0 0.0
    %2215 = vmatpush.msra.mxu0 0.0
    %2216 = vmatpush.msra.mxu0 0.0
    %2217 = vmatpush.msra.mxu0 0.0
    %2218 = vmatpush.msra.mxu0 0.0
    %2219 = vmatpush.msra.mxu0 0.0
    %2220 = vmatpush.msra.mxu0 0.0
    %2221 = vmatpush.msra.mxu0 %v1915
    %2222 = vmatpush.msra.mxu0 %v1914
    %2223 = vmatpush.msra.mxu0 %v1913
    %2224 = vmatpush.msra.mxu0 %v1912
    %2225 = vmatmul.f32.gmra.mxu0 %v175
    %v2226 = vpop.f32.mrf.mxu0
    %v2227 = vadd.f32 0.0, %v2226
    %2228 = vmatmul.f32.gmra.mxu0 %v178
    %v2229 = vpop.f32.mrf.mxu0
    %v2230 = vadd.f32 0.0, %v2229
    %2231 = vmatmul.f32.gmra.mxu0 %v181
    %v2232 = vpop.f32.mrf.mxu0
    %v2233 = vadd.f32 0.0, %v2232
    %2234 = vmatmul.f32.gmra.mxu0 %v184
    %v2235 = vpop.f32.mrf.mxu0
    %v2236 = vadd.f32 0.0, %v2235
    %2237 = vdwg.mxu0
    %v2238 = vadd.f32 %v2198, %v2227
    %v2239 = vadd.f32 %v2201, %v2230
    %v2240 = vadd.f32 %v2204, %v2233
    %v2241 = vadd.f32 %v2207, %v2236
    %2242 = vmatpush.msra.mxu0 0.0
    %2243 = vmatpush.msra.mxu0 0.0
    %2244 = vmatpush.msra.mxu0 0.0
    %2245 = vmatpush.msra.mxu0 0.0
    %2246 = vmatpush.msra.mxu0 0.0
    %2247 = vmatpush.msra.mxu0 0.0
    %2248 = vmatpush.msra.mxu0 0.0
    %2249 = vmatpush.msra.mxu0 0.0
    %2250 = vmatpush.msra.mxu0 0.0
    %2251 = vmatpush.msra.mxu0 0.0
    %2252 = vmatpush.msra.mxu0 0.0
    %2253 = vmatpush.msra.mxu0 0.0
    %2254 = vmatpush.msra.mxu0 %v2097
    %2255 = vmatpush.msra.mxu0 %v2096
    %2256 = vmatpush.msra.mxu0 %v2095
    %2257 = vmatpush.msra.mxu0 %v2094
    %2258 = vmatmul.f32.gmra.mxu0 %v225
    %v2259 = vpop.f32.mrf.mxu0
    %v2260 = vadd.f32 0.0, %v2259
    %2261 = vmatmul.f32.gmra.mxu0 %v228
    %v2262 = vpop.f32.mrf.mxu0
    %v2263 = vadd.f32 0.0, %v2262
    %2264 = vmatmul.f32.gmra.mxu0 %v231
    %v2265 = vpop.f32.mrf.mxu0
    %v2266 = vadd.f32 0.0, %v2265
    %2267 = vmatmul.f32.gmra.mxu0 %v234
    %v2268 = vpop.f32.mrf.mxu0
    %v2269 = vadd.f32 0.0, %v2268
    %2270 = vdwg.mxu0
    %v2271 = vadd.f32 %v2238, %v2260
    %v2272 = vadd.f32 %v2239, %v2263
    %v2273 = vadd.f32 %v2240, %v2266
    %v2274 = vadd.f32 %v2241, %v2269
    %s2275 = scalar_lea.vmem [#allocation2], 480
    %v2276 = vld [vmem:[%s2275] sm:$0xff]
    %v2277 = vld [vmem:[%s2275 + $0x8] sm:$0xff]
    %v2278 = vld [vmem:[%s2275 + $0x10] sm:$0xff]
    %v2279 = vld [vmem:[%s2275 + $0x18] sm:$0xff]
    %2280 = vmatpush.msra.mxu0 0.0
    %2281 = vmatpush.msra.mxu0 0.0
    %2282 = vmatpush.msra.mxu0 0.0
    %2283 = vmatpush.msra.mxu0 0.0
    %2284 = vmatpush.msra.mxu0 0.0
    %2285 = vmatpush.msra.mxu0 0.0
    %2286 = vmatpush.msra.mxu0 0.0
    %2287 = vmatpush.msra.mxu0 0.0
    %2288 = vmatpush.msra.mxu0 0.0
    %2289 = vmatpush.msra.mxu0 0.0
    %2290 = vmatpush.msra.mxu0 0.0
    %2291 = vmatpush.msra.mxu0 0.0
    %2292 = vmatpush.msra.mxu0 %v2279
    %2293 = vmatpush.msra.mxu0 %v2278
    %2294 = vmatpush.msra.mxu0 %v2277
    %2295 = vmatpush.msra.mxu0 %v2276
    %2296 = vmatmul.f32.gmra.mxu0 %v275
    %v2297 = vpop.f32.mrf.mxu0
    %v2298 = vadd.f32 0.0, %v2297
    %2299 = vmatmul.f32.gmra.mxu0 %v278
    %v2300 = vpop.f32.mrf.mxu0
    %v2301 = vadd.f32 0.0, %v2300
    %2302 = vmatmul.f32.gmra.mxu0 %v281
    %v2303 = vpop.f32.mrf.mxu0
    %v2304 = vadd.f32 0.0, %v2303
    %2305 = vmatmul.f32.gmra.mxu0 %v284
    %v2306 = vpop.f32.mrf.mxu0
    %v2307 = vadd.f32 0.0, %v2306
    %2308 = vdwg.mxu0
    %v2309 = vadd.f32 %v2271, %v2298
    %v2310 = vadd.f32 %v2272, %v2301
    %v2311 = vadd.f32 %v2273, %v2304
    %v2312 = vadd.f32 %v2274, %v2307
    %v2313 = vadd.f32 %v2131, %v2309
    %v2314 = vadd.f32 %v2132, %v2310
    %v2315 = vadd.f32 %v2133, %v2311
    %v2316 = vadd.f32 %v2134, %v2312
    %v2317 = vmul.f32 %v2309, %v2309
    %v2318 = vmul.f32 %v2310, %v2310
    %v2319 = vmul.f32 %v2311, %v2311
    %v2320 = vmul.f32 %v2312, %v2312
    %v2321 = vadd.f32 %v2139, %v2317
    %v2322 = vadd.f32 %v2140, %v2318
    %v2323 = vadd.f32 %v2141, %v2319
    %v2324 = vadd.f32 %v2142, %v2320
    %v2325 = vmax.f32 %v2143, %v2309
    %v2326 = vmax.f32 %v2144, %v2310
    %v2327 = vmax.f32 %v2145, %v2311
    %v2328 = vmax.f32 %v2146, %v2312
    %v2329 = vmin.f32 %v2147, %v2309
    %v2330 = vmin.f32 %v2148, %v2310
    %v2331 = vmin.f32 %v2149, %v2311
    %v2332 = vmin.f32 %v2150, %v2312
    %2333 = vmatpush.msra.mxu0 0.0
    %2334 = vmatpush.msra.mxu0 0.0
    %2335 = vmatpush.msra.mxu0 0.0
    %2336 = vmatpush.msra.mxu0 0.0
    %2337 = vmatpush.msra.mxu0 0.0
    %2338 = vmatpush.msra.mxu0 0.0
    %2339 = vmatpush.msra.mxu0 0.0
    %2340 = vmatpush.msra.mxu0 0.0
    %2341 = vmatpush.msra.mxu0 0.0
    %2342 = vmatpush.msra.mxu0 0.0
    %2343 = vmatpush.msra.mxu0 0.0
    %2344 = vmatpush.msra.mxu0 0.0
    %2345 = vmatpush.msra.mxu0 %v1915
    %2346 = vmatpush.msra.mxu0 %v1914
    %2347 = vmatpush.msra.mxu0 %v1913
    %2348 = vmatpush.msra.mxu0 %v1912
    %2349 = vmatmul.f32.gmra.mxu0 %v88
    %v2350 = vpop.f32.mrf.mxu0
    %v2351 = vadd.f32 0.0, %v2350
    %2352 = vmatmul.f32.gmra.mxu0 %v91
    %v2353 = vpop.f32.mrf.mxu0
    %v2354 = vadd.f32 0.0, %v2353
    %2355 = vmatmul.f32.gmra.mxu0 %v94
    %v2356 = vpop.f32.mrf.mxu0
    %v2357 = vadd.f32 0.0, %v2356
    %2358 = vmatmul.f32.gmra.mxu0 %v97
    %v2359 = vpop.f32.mrf.mxu0
    %v2360 = vadd.f32 0.0, %v2359
    %2361 = vdwg.mxu0
    %2362 = vmatpush.msra.mxu0 0.0
    %2363 = vmatpush.msra.mxu0 0.0
    %2364 = vmatpush.msra.mxu0 0.0
    %2365 = vmatpush.msra.mxu0 0.0
    %2366 = vmatpush.msra.mxu0 0.0
    %2367 = vmatpush.msra.mxu0 0.0
    %2368 = vmatpush.msra.mxu0 0.0
    %2369 = vmatpush.msra.mxu0 0.0
    %2370 = vmatpush.msra.mxu0 0.0
    %2371 = vmatpush.msra.mxu0 0.0
    %2372 = vmatpush.msra.mxu0 0.0
    %2373 = vmatpush.msra.mxu0 0.0
    %2374 = vmatpush.msra.mxu0 %v1733
    %2375 = vmatpush.msra.mxu0 %v1732
    %2376 = vmatpush.msra.mxu0 %v1731
    %2377 = vmatpush.msra.mxu0 %v1730
    %2378 = vmatmul.f32.gmra.mxu0 %v129
    %v2379 = vpop.f32.mrf.mxu0
    %v2380 = vadd.f32 %v2351, %v2379
    %2381 = vmatmul.f32.gmra.mxu0 %v132
    %v2382 = vpop.f32.mrf.mxu0
    %v2383 = vadd.f32 %v2354, %v2382
    %2384 = vmatmul.f32.gmra.mxu0 %v135
    %v2385 = vpop.f32.mrf.mxu0
    %v2386 = vadd.f32 %v2357, %v2385
    %2387 = vmatmul.f32.gmra.mxu0 %v138
    %v2388 = vpop.f32.mrf.mxu0
    %v2389 = vadd.f32 %v2360, %v2388
    %2390 = vdwg.mxu0
    %2391 = vmatpush.msra.mxu0 0.0
    %2392 = vmatpush.msra.mxu0 0.0
    %2393 = vmatpush.msra.mxu0 0.0
    %2394 = vmatpush.msra.mxu0 0.0
    %2395 = vmatpush.msra.mxu0 0.0
    %2396 = vmatpush.msra.mxu0 0.0
    %2397 = vmatpush.msra.mxu0 0.0
    %2398 = vmatpush.msra.mxu0 0.0
    %2399 = vmatpush.msra.mxu0 0.0
    %2400 = vmatpush.msra.mxu0 0.0
    %2401 = vmatpush.msra.mxu0 0.0
    %2402 = vmatpush.msra.mxu0 0.0
    %2403 = vmatpush.msra.mxu0 %v2097
    %2404 = vmatpush.msra.mxu0 %v2096
    %2405 = vmatpush.msra.mxu0 %v2095
    %2406 = vmatpush.msra.mxu0 %v2094
    %2407 = vmatmul.f32.gmra.mxu0 %v175
    %v2408 = vpop.f32.mrf.mxu0
    %v2409 = vadd.f32 0.0, %v2408
    %2410 = vmatmul.f32.gmra.mxu0 %v178
    %v2411 = vpop.f32.mrf.mxu0
    %v2412 = vadd.f32 0.0, %v2411
    %2413 = vmatmul.f32.gmra.mxu0 %v181
    %v2414 = vpop.f32.mrf.mxu0
    %v2415 = vadd.f32 0.0, %v2414
    %2416 = vmatmul.f32.gmra.mxu0 %v184
    %v2417 = vpop.f32.mrf.mxu0
    %v2418 = vadd.f32 0.0, %v2417
    %2419 = vdwg.mxu0
    %v2420 = vadd.f32 %v2380, %v2409
    %v2421 = vadd.f32 %v2383, %v2412
    %v2422 = vadd.f32 %v2386, %v2415
    %v2423 = vadd.f32 %v2389, %v2418
    %2424 = vmatpush.msra.mxu0 0.0
    %2425 = vmatpush.msra.mxu0 0.0
    %2426 = vmatpush.msra.mxu0 0.0
    %2427 = vmatpush.msra.mxu0 0.0
    %2428 = vmatpush.msra.mxu0 0.0
    %2429 = vmatpush.msra.mxu0 0.0
    %2430 = vmatpush.msra.mxu0 0.0
    %2431 = vmatpush.msra.mxu0 0.0
    %2432 = vmatpush.msra.mxu0 0.0
    %2433 = vmatpush.msra.mxu0 0.0
    %2434 = vmatpush.msra.mxu0 0.0
    %2435 = vmatpush.msra.mxu0 0.0
    %2436 = vmatpush.msra.mxu0 %v2279
    %2437 = vmatpush.msra.mxu0 %v2278
    %2438 = vmatpush.msra.mxu0 %v2277
    %2439 = vmatpush.msra.mxu0 %v2276
    %2440 = vmatmul.f32.gmra.mxu0 %v225
    %v2441 = vpop.f32.mrf.mxu0
    %v2442 = vadd.f32 0.0, %v2441
    %2443 = vmatmul.f32.gmra.mxu0 %v228
    %v2444 = vpop.f32.mrf.mxu0
    %v2445 = vadd.f32 0.0, %v2444
    %2446 = vmatmul.f32.gmra.mxu0 %v231
    %v2447 = vpop.f32.mrf.mxu0
    %v2448 = vadd.f32 0.0, %v2447
    %2449 = vmatmul.f32.gmra.mxu0 %v234
    %v2450 = vpop.f32.mrf.mxu0
    %v2451 = vadd.f32 0.0, %v2450
    %2452 = vdwg.mxu0
    %v2453 = vadd.f32 %v2420, %v2442
    %v2454 = vadd.f32 %v2421, %v2445
    %v2455 = vadd.f32 %v2422, %v2448
    %v2456 = vadd.f32 %v2423, %v2451
    %s2457 = scalar_lea.vmem [#allocation2], 512
    %v2458 = vld [vmem:[%s2457] sm:$0xff]
    %v2459 = vld [vmem:[%s2457 + $0x8] sm:$0xff]
    %v2460 = vld [vmem:[%s2457 + $0x10] sm:$0xff]
    %v2461 = vld [vmem:[%s2457 + $0x18] sm:$0xff]
    %2462 = vmatpush.msra.mxu0 0.0
    %2463 = vmatpush.msra.mxu0 0.0
    %2464 = vmatpush.msra.mxu0 0.0
    %2465 = vmatpush.msra.mxu0 0.0
    %2466 = vmatpush.msra.mxu0 0.0
    %2467 = vmatpush.msra.mxu0 0.0
    %2468 = vmatpush.msra.mxu0 0.0
    %2469 = vmatpush.msra.mxu0 0.0
    %2470 = vmatpush.msra.mxu0 0.0
    %2471 = vmatpush.msra.mxu0 0.0
    %2472 = vmatpush.msra.mxu0 0.0
    %2473 = vmatpush.msra.mxu0 0.0
    %2474 = vmatpush.msra.mxu0 %v2461
    %2475 = vmatpush.msra.mxu0 %v2460
    %2476 = vmatpush.msra.mxu0 %v2459
    %2477 = vmatpush.msra.mxu0 %v2458
    %2478 = vmatmul.f32.gmra.mxu0 %v275
    %v2479 = vpop.f32.mrf.mxu0
    %v2480 = vadd.f32 0.0, %v2479
    %2481 = vmatmul.f32.gmra.mxu0 %v278
    %v2482 = vpop.f32.mrf.mxu0
    %v2483 = vadd.f32 0.0, %v2482
    %2484 = vmatmul.f32.gmra.mxu0 %v281
    %v2485 = vpop.f32.mrf.mxu0
    %v2486 = vadd.f32 0.0, %v2485
    %2487 = vmatmul.f32.gmra.mxu0 %v284
    %v2488 = vpop.f32.mrf.mxu0
    %v2489 = vadd.f32 0.0, %v2488
    %2490 = vdwg.mxu0
    %v2491 = vadd.f32 %v2453, %v2480
    %v2492 = vadd.f32 %v2454, %v2483
    %v2493 = vadd.f32 %v2455, %v2486
    %v2494 = vadd.f32 %v2456, %v2489
    %v2495 = vadd.f32 %v2313, %v2491
    %v2496 = vadd.f32 %v2314, %v2492
    %v2497 = vadd.f32 %v2315, %v2493
    %v2498 = vadd.f32 %v2316, %v2494
    %v2499 = vmul.f32 %v2491, %v2491
    %v2500 = vmul.f32 %v2492, %v2492
    %v2501 = vmul.f32 %v2493, %v2493
    %v2502 = vmul.f32 %v2494, %v2494
    %v2503 = vadd.f32 %v2321, %v2499
    %v2504 = vadd.f32 %v2322, %v2500
    %v2505 = vadd.f32 %v2323, %v2501
    %v2506 = vadd.f32 %v2324, %v2502
    %v2507 = vmax.f32 %v2325, %v2491
    %v2508 = vmax.f32 %v2326, %v2492
    %v2509 = vmax.f32 %v2327, %v2493
    %v2510 = vmax.f32 %v2328, %v2494
    %v2511 = vmin.f32 %v2329, %v2491
    %v2512 = vmin.f32 %v2330, %v2492
    %v2513 = vmin.f32 %v2331, %v2493
    %v2514 = vmin.f32 %v2332, %v2494
    %2515 = vmatpush.msra.mxu0 0.0
    %2516 = vmatpush.msra.mxu0 0.0
    %2517 = vmatpush.msra.mxu0 0.0
    %2518 = vmatpush.msra.mxu0 0.0
    %2519 = vmatpush.msra.mxu0 0.0
    %2520 = vmatpush.msra.mxu0 0.0
    %2521 = vmatpush.msra.mxu0 0.0
    %2522 = vmatpush.msra.mxu0 0.0
    %2523 = vmatpush.msra.mxu0 0.0
    %2524 = vmatpush.msra.mxu0 0.0
    %2525 = vmatpush.msra.mxu0 0.0
    %2526 = vmatpush.msra.mxu0 0.0
    %2527 = vmatpush.msra.mxu0 %v2097
    %2528 = vmatpush.msra.mxu0 %v2096
    %2529 = vmatpush.msra.mxu0 %v2095
    %2530 = vmatpush.msra.mxu0 %v2094
    %2531 = vmatmul.f32.gmra.mxu0 %v88
    %v2532 = vpop.f32.mrf.mxu0
    %v2533 = vadd.f32 0.0, %v2532
    %2534 = vmatmul.f32.gmra.mxu0 %v91
    %v2535 = vpop.f32.mrf.mxu0
    %v2536 = vadd.f32 0.0, %v2535
    %2537 = vmatmul.f32.gmra.mxu0 %v94
    %v2538 = vpop.f32.mrf.mxu0
    %v2539 = vadd.f32 0.0, %v2538
    %2540 = vmatmul.f32.gmra.mxu0 %v97
    %v2541 = vpop.f32.mrf.mxu0
    %v2542 = vadd.f32 0.0, %v2541
    %2543 = vdwg.mxu0
    %2544 = vmatpush.msra.mxu0 0.0
    %2545 = vmatpush.msra.mxu0 0.0
    %2546 = vmatpush.msra.mxu0 0.0
    %2547 = vmatpush.msra.mxu0 0.0
    %2548 = vmatpush.msra.mxu0 0.0
    %2549 = vmatpush.msra.mxu0 0.0
    %2550 = vmatpush.msra.mxu0 0.0
    %2551 = vmatpush.msra.mxu0 0.0
    %2552 = vmatpush.msra.mxu0 0.0
    %2553 = vmatpush.msra.mxu0 0.0
    %2554 = vmatpush.msra.mxu0 0.0
    %2555 = vmatpush.msra.mxu0 0.0
    %2556 = vmatpush.msra.mxu0 %v1915
    %2557 = vmatpush.msra.mxu0 %v1914
    %2558 = vmatpush.msra.mxu0 %v1913
    %2559 = vmatpush.msra.mxu0 %v1912
    %2560 = vmatmul.f32.gmra.mxu0 %v129
    %v2561 = vpop.f32.mrf.mxu0
    %v2562 = vadd.f32 %v2533, %v2561
    %2563 = vmatmul.f32.gmra.mxu0 %v132
    %v2564 = vpop.f32.mrf.mxu0
    %v2565 = vadd.f32 %v2536, %v2564
    %2566 = vmatmul.f32.gmra.mxu0 %v135
    %v2567 = vpop.f32.mrf.mxu0
    %v2568 = vadd.f32 %v2539, %v2567
    %2569 = vmatmul.f32.gmra.mxu0 %v138
    %v2570 = vpop.f32.mrf.mxu0
    %v2571 = vadd.f32 %v2542, %v2570
    %2572 = vdwg.mxu0
    %2573 = vmatpush.msra.mxu0 0.0
    %2574 = vmatpush.msra.mxu0 0.0
    %2575 = vmatpush.msra.mxu0 0.0
    %2576 = vmatpush.msra.mxu0 0.0
    %2577 = vmatpush.msra.mxu0 0.0
    %2578 = vmatpush.msra.mxu0 0.0
    %2579 = vmatpush.msra.mxu0 0.0
    %2580 = vmatpush.msra.mxu0 0.0
    %2581 = vmatpush.msra.mxu0 0.0
    %2582 = vmatpush.msra.mxu0 0.0
    %2583 = vmatpush.msra.mxu0 0.0
    %2584 = vmatpush.msra.mxu0 0.0
    %2585 = vmatpush.msra.mxu0 %v2279
    %2586 = vmatpush.msra.mxu0 %v2278
    %2587 = vmatpush.msra.mxu0 %v2277
    %2588 = vmatpush.msra.mxu0 %v2276
    %2589 = vmatmul.f32.gmra.mxu0 %v175
    %v2590 = vpop.f32.mrf.mxu0
    %v2591 = vadd.f32 0.0, %v2590
    %2592 = vmatmul.f32.gmra.mxu0 %v178
    %v2593 = vpop.f32.mrf.mxu0
    %v2594 = vadd.f32 0.0, %v2593
    %2595 = vmatmul.f32.gmra.mxu0 %v181
    %v2596 = vpop.f32.mrf.mxu0
    %v2597 = vadd.f32 0.0, %v2596
    %2598 = vmatmul.f32.gmra.mxu0 %v184
    %v2599 = vpop.f32.mrf.mxu0
    %v2600 = vadd.f32 0.0, %v2599
    %2601 = vdwg.mxu0
    %v2602 = vadd.f32 %v2562, %v2591
    %v2603 = vadd.f32 %v2565, %v2594
    %v2604 = vadd.f32 %v2568, %v2597
    %v2605 = vadd.f32 %v2571, %v2600
    %2606 = vmatpush.msra.mxu0 0.0
    %2607 = vmatpush.msra.mxu0 0.0
    %2608 = vmatpush.msra.mxu0 0.0
    %2609 = vmatpush.msra.mxu0 0.0
    %2610 = vmatpush.msra.mxu0 0.0
    %2611 = vmatpush.msra.mxu0 0.0
    %2612 = vmatpush.msra.mxu0 0.0
    %2613 = vmatpush.msra.mxu0 0.0
    %2614 = vmatpush.msra.mxu0 0.0
    %2615 = vmatpush.msra.mxu0 0.0
    %2616 = vmatpush.msra.mxu0 0.0
    %2617 = vmatpush.msra.mxu0 0.0
    %2618 = vmatpush.msra.mxu0 %v2461
    %2619 = vmatpush.msra.mxu0 %v2460
    %2620 = vmatpush.msra.mxu0 %v2459
    %2621 = vmatpush.msra.mxu0 %v2458
    %2622 = vmatmul.f32.gmra.mxu0 %v225
    %v2623 = vpop.f32.mrf.mxu0
    %v2624 = vadd.f32 0.0, %v2623
    %2625 = vmatmul.f32.gmra.mxu0 %v228
    %v2626 = vpop.f32.mrf.mxu0
    %v2627 = vadd.f32 0.0, %v2626
    %2628 = vmatmul.f32.gmra.mxu0 %v231
    %v2629 = vpop.f32.mrf.mxu0
    %v2630 = vadd.f32 0.0, %v2629
    %2631 = vmatmul.f32.gmra.mxu0 %v234
    %v2632 = vpop.f32.mrf.mxu0
    %v2633 = vadd.f32 0.0, %v2632
    %2634 = vdwg.mxu0
    %v2635 = vadd.f32 %v2602, %v2624
    %v2636 = vadd.f32 %v2603, %v2627
    %v2637 = vadd.f32 %v2604, %v2630
    %v2638 = vadd.f32 %v2605, %v2633
    %s2639 = scalar_lea.vmem [#allocation2], 544
    %v2640 = vld [vmem:[%s2639] sm:$0xff]
    %v2641 = vld [vmem:[%s2639 + $0x8] sm:$0xff]
    %v2642 = vld [vmem:[%s2639 + $0x10] sm:$0xff]
    %v2643 = vld [vmem:[%s2639 + $0x18] sm:$0xff]
    %2644 = vmatpush.msra.mxu0 0.0
    %2645 = vmatpush.msra.mxu0 0.0
    %2646 = vmatpush.msra.mxu0 0.0
    %2647 = vmatpush.msra.mxu0 0.0
    %2648 = vmatpush.msra.mxu0 0.0
    %2649 = vmatpush.msra.mxu0 0.0
    %2650 = vmatpush.msra.mxu0 0.0
    %2651 = vmatpush.msra.mxu0 0.0
    %2652 = vmatpush.msra.mxu0 0.0
    %2653 = vmatpush.msra.mxu0 0.0
    %2654 = vmatpush.msra.mxu0 0.0
    %2655 = vmatpush.msra.mxu0 0.0
    %2656 = vmatpush.msra.mxu0 %v2643
    %2657 = vmatpush.msra.mxu0 %v2642
    %2658 = vmatpush.msra.mxu0 %v2641
    %2659 = vmatpush.msra.mxu0 %v2640
    %2660 = vmatmul.f32.gmra.mxu0 %v275
    %v2661 = vpop.f32.mrf.mxu0
    %v2662 = vadd.f32 0.0, %v2661
    %2663 = vmatmul.f32.gmra.mxu0 %v278
    %v2664 = vpop.f32.mrf.mxu0
    %v2665 = vadd.f32 0.0, %v2664
    %2666 = vmatmul.f32.gmra.mxu0 %v281
    %v2667 = vpop.f32.mrf.mxu0
    %v2668 = vadd.f32 0.0, %v2667
    %2669 = vmatmul.f32.gmra.mxu0 %v284
    %v2670 = vpop.f32.mrf.mxu0
    %v2671 = vadd.f32 0.0, %v2670
    %2672 = vdwg.mxu0
    %v2673 = vadd.f32 %v2635, %v2662
    %v2674 = vadd.f32 %v2636, %v2665
    %v2675 = vadd.f32 %v2637, %v2668
    %v2676 = vadd.f32 %v2638, %v2671
    %v2677 = vadd.f32 %v2495, %v2673
    %v2678 = vadd.f32 %v2496, %v2674
    %v2679 = vadd.f32 %v2497, %v2675
    %v2680 = vadd.f32 %v2498, %v2676
    %v2681 = vmul.f32 %v2673, %v2673
    %v2682 = vmul.f32 %v2674, %v2674
    %v2683 = vmul.f32 %v2675, %v2675
    %v2684 = vmul.f32 %v2676, %v2676
    %v2685 = vadd.f32 %v2503, %v2681
    %v2686 = vadd.f32 %v2504, %v2682
    %v2687 = vadd.f32 %v2505, %v2683
    %v2688 = vadd.f32 %v2506, %v2684
    %v2689 = vmax.f32 %v2507, %v2673
    %v2690 = vmax.f32 %v2508, %v2674
    %v2691 = vmax.f32 %v2509, %v2675
    %v2692 = vmax.f32 %v2510, %v2676
    %v2693 = vmin.f32 %v2511, %v2673
    %v2694 = vmin.f32 %v2512, %v2674
    %v2695 = vmin.f32 %v2513, %v2675
    %v2696 = vmin.f32 %v2514, %v2676
    %2697 = vmatpush.msra.mxu0 0.0
    %2698 = vmatpush.msra.mxu0 0.0
    %2699 = vmatpush.msra.mxu0 0.0
    %2700 = vmatpush.msra.mxu0 0.0
    %2701 = vmatpush.msra.mxu0 0.0
    %2702 = vmatpush.msra.mxu0 0.0
    %2703 = vmatpush.msra.mxu0 0.0
    %2704 = vmatpush.msra.mxu0 0.0
    %2705 = vmatpush.msra.mxu0 0.0
    %2706 = vmatpush.msra.mxu0 0.0
    %2707 = vmatpush.msra.mxu0 0.0
    %2708 = vmatpush.msra.mxu0 0.0
    %2709 = vmatpush.msra.mxu0 %v2279
    %2710 = vmatpush.msra.mxu0 %v2278
    %2711 = vmatpush.msra.mxu0 %v2277
    %2712 = vmatpush.msra.mxu0 %v2276
    %2713 = vmatmul.f32.gmra.mxu0 %v88
    %v2714 = vpop.f32.mrf.mxu0
    %v2715 = vadd.f32 0.0, %v2714
    %2716 = vmatmul.f32.gmra.mxu0 %v91
    %v2717 = vpop.f32.mrf.mxu0
    %v2718 = vadd.f32 0.0, %v2717
    %2719 = vmatmul.f32.gmra.mxu0 %v94
    %v2720 = vpop.f32.mrf.mxu0
    %v2721 = vadd.f32 0.0, %v2720
    %2722 = vmatmul.f32.gmra.mxu0 %v97
    %v2723 = vpop.f32.mrf.mxu0
    %v2724 = vadd.f32 0.0, %v2723
    %2725 = vdwg.mxu0
    %2726 = vmatpush.msra.mxu0 0.0
    %2727 = vmatpush.msra.mxu0 0.0
    %2728 = vmatpush.msra.mxu0 0.0
    %2729 = vmatpush.msra.mxu0 0.0
    %2730 = vmatpush.msra.mxu0 0.0
    %2731 = vmatpush.msra.mxu0 0.0
    %2732 = vmatpush.msra.mxu0 0.0
    %2733 = vmatpush.msra.mxu0 0.0
    %2734 = vmatpush.msra.mxu0 0.0
    %2735 = vmatpush.msra.mxu0 0.0
    %2736 = vmatpush.msra.mxu0 0.0
    %2737 = vmatpush.msra.mxu0 0.0
    %2738 = vmatpush.msra.mxu0 %v2097
    %2739 = vmatpush.msra.mxu0 %v2096
    %2740 = vmatpush.msra.mxu0 %v2095
    %2741 = vmatpush.msra.mxu0 %v2094
    %2742 = vmatmul.f32.gmra.mxu0 %v129
    %v2743 = vpop.f32.mrf.mxu0
    %v2744 = vadd.f32 %v2715, %v2743
    %2745 = vmatmul.f32.gmra.mxu0 %v132
    %v2746 = vpop.f32.mrf.mxu0
    %v2747 = vadd.f32 %v2718, %v2746
    %2748 = vmatmul.f32.gmra.mxu0 %v135
    %v2749 = vpop.f32.mrf.mxu0
    %v2750 = vadd.f32 %v2721, %v2749
    %2751 = vmatmul.f32.gmra.mxu0 %v138
    %v2752 = vpop.f32.mrf.mxu0
    %v2753 = vadd.f32 %v2724, %v2752
    %2754 = vdwg.mxu0
    %2755 = vmatpush.msra.mxu0 0.0
    %2756 = vmatpush.msra.mxu0 0.0
    %2757 = vmatpush.msra.mxu0 0.0
    %2758 = vmatpush.msra.mxu0 0.0
    %2759 = vmatpush.msra.mxu0 0.0
    %2760 = vmatpush.msra.mxu0 0.0
    %2761 = vmatpush.msra.mxu0 0.0
    %2762 = vmatpush.msra.mxu0 0.0
    %2763 = vmatpush.msra.mxu0 0.0
    %2764 = vmatpush.msra.mxu0 0.0
    %2765 = vmatpush.msra.mxu0 0.0
    %2766 = vmatpush.msra.mxu0 0.0
    %2767 = vmatpush.msra.mxu0 %v2461
    %2768 = vmatpush.msra.mxu0 %v2460
    %2769 = vmatpush.msra.mxu0 %v2459
    %2770 = vmatpush.msra.mxu0 %v2458
    %2771 = vmatmul.f32.gmra.mxu0 %v175
    %v2772 = vpop.f32.mrf.mxu0
    %v2773 = vadd.f32 0.0, %v2772
    %2774 = vmatmul.f32.gmra.mxu0 %v178
    %v2775 = vpop.f32.mrf.mxu0
    %v2776 = vadd.f32 0.0, %v2775
    %2777 = vmatmul.f32.gmra.mxu0 %v181
    %v2778 = vpop.f32.mrf.mxu0
    %v2779 = vadd.f32 0.0, %v2778
    %2780 = vmatmul.f32.gmra.mxu0 %v184
    %v2781 = vpop.f32.mrf.mxu0
    %v2782 = vadd.f32 0.0, %v2781
    %2783 = vdwg.mxu0
    %v2784 = vadd.f32 %v2744, %v2773
    %v2785 = vadd.f32 %v2747, %v2776
    %v2786 = vadd.f32 %v2750, %v2779
    %v2787 = vadd.f32 %v2753, %v2782
    %2788 = vmatpush.msra.mxu0 0.0
    %2789 = vmatpush.msra.mxu0 0.0
    %2790 = vmatpush.msra.mxu0 0.0
    %2791 = vmatpush.msra.mxu0 0.0
    %2792 = vmatpush.msra.mxu0 0.0
    %2793 = vmatpush.msra.mxu0 0.0
    %2794 = vmatpush.msra.mxu0 0.0
    %2795 = vmatpush.msra.mxu0 0.0
    %2796 = vmatpush.msra.mxu0 0.0
    %2797 = vmatpush.msra.mxu0 0.0
    %2798 = vmatpush.msra.mxu0 0.0
    %2799 = vmatpush.msra.mxu0 0.0
    %2800 = vmatpush.msra.mxu0 %v2643
    %2801 = vmatpush.msra.mxu0 %v2642
    %2802 = vmatpush.msra.mxu0 %v2641
    %2803 = vmatpush.msra.mxu0 %v2640
    %2804 = vmatmul.f32.gmra.mxu0 %v225
    %v2805 = vpop.f32.mrf.mxu0
    %v2806 = vadd.f32 0.0, %v2805
    %2807 = vmatmul.f32.gmra.mxu0 %v228
    %v2808 = vpop.f32.mrf.mxu0
    %v2809 = vadd.f32 0.0, %v2808
    %2810 = vmatmul.f32.gmra.mxu0 %v231
    %v2811 = vpop.f32.mrf.mxu0
    %v2812 = vadd.f32 0.0, %v2811
    %2813 = vmatmul.f32.gmra.mxu0 %v234
    %v2814 = vpop.f32.mrf.mxu0
    %v2815 = vadd.f32 0.0, %v2814
    %2816 = vdwg.mxu0
    %v2817 = vadd.f32 %v2784, %v2806
    %v2818 = vadd.f32 %v2785, %v2809
    %v2819 = vadd.f32 %v2786, %v2812
    %v2820 = vadd.f32 %v2787, %v2815
    %s2821 = scalar_lea.vmem [#allocation2], 576
    %v2822 = vld [vmem:[%s2821] sm:$0xff]
    %v2823 = vld [vmem:[%s2821 + $0x8] sm:$0xff]
    %v2824 = vld [vmem:[%s2821 + $0x10] sm:$0xff]
    %v2825 = vld [vmem:[%s2821 + $0x18] sm:$0xff]
    %2826 = vmatpush.msra.mxu0 0.0
    %2827 = vmatpush.msra.mxu0 0.0
    %2828 = vmatpush.msra.mxu0 0.0
    %2829 = vmatpush.msra.mxu0 0.0
    %2830 = vmatpush.msra.mxu0 0.0
    %2831 = vmatpush.msra.mxu0 0.0
    %2832 = vmatpush.msra.mxu0 0.0
    %2833 = vmatpush.msra.mxu0 0.0
    %2834 = vmatpush.msra.mxu0 0.0
    %2835 = vmatpush.msra.mxu0 0.0
    %2836 = vmatpush.msra.mxu0 0.0
    %2837 = vmatpush.msra.mxu0 0.0
    %2838 = vmatpush.msra.mxu0 %v2825
    %2839 = vmatpush.msra.mxu0 %v2824
    %2840 = vmatpush.msra.mxu0 %v2823
    %2841 = vmatpush.msra.mxu0 %v2822
    %2842 = vmatmul.f32.gmra.mxu0 %v275
    %v2843 = vpop.f32.mrf.mxu0
    %v2844 = vadd.f32 0.0, %v2843
    %2845 = vmatmul.f32.gmra.mxu0 %v278
    %v2846 = vpop.f32.mrf.mxu0
    %v2847 = vadd.f32 0.0, %v2846
    %2848 = vmatmul.f32.gmra.mxu0 %v281
    %v2849 = vpop.f32.mrf.mxu0
    %v2850 = vadd.f32 0.0, %v2849
    %2851 = vmatmul.f32.gmra.mxu0 %v284
    %v2852 = vpop.f32.mrf.mxu0
    %v2853 = vadd.f32 0.0, %v2852
    %2854 = vdwg.mxu0
    %v2855 = vadd.f32 %v2817, %v2844
    %v2856 = vadd.f32 %v2818, %v2847
    %v2857 = vadd.f32 %v2819, %v2850
    %v2858 = vadd.f32 %v2820, %v2853
    %v2859 = vadd.f32 %v2677, %v2855
    %v2860 = vadd.f32 %v2678, %v2856
    %v2861 = vadd.f32 %v2679, %v2857
    %v2862 = vadd.f32 %v2680, %v2858
    %v2863 = vmul.f32 %v2855, %v2855
    %v2864 = vmul.f32 %v2856, %v2856
    %v2865 = vmul.f32 %v2857, %v2857
    %v2866 = vmul.f32 %v2858, %v2858
    %v2867 = vadd.f32 %v2685, %v2863
    %v2868 = vadd.f32 %v2686, %v2864
    %v2869 = vadd.f32 %v2687, %v2865
    %v2870 = vadd.f32 %v2688, %v2866
    %v2871 = vmax.f32 %v2689, %v2855
    %v2872 = vmax.f32 %v2690, %v2856
    %v2873 = vmax.f32 %v2691, %v2857
    %v2874 = vmax.f32 %v2692, %v2858
    %v2875 = vmin.f32 %v2693, %v2855
    %v2876 = vmin.f32 %v2694, %v2856
    %v2877 = vmin.f32 %v2695, %v2857
    %v2878 = vmin.f32 %v2696, %v2858
    %2879 = vmatpush.msra.mxu0 0.0
    %2880 = vmatpush.msra.mxu0 0.0
    %2881 = vmatpush.msra.mxu0 0.0
    %2882 = vmatpush.msra.mxu0 0.0
    %2883 = vmatpush.msra.mxu0 0.0
    %2884 = vmatpush.msra.mxu0 0.0
    %2885 = vmatpush.msra.mxu0 0.0
    %2886 = vmatpush.msra.mxu0 0.0
    %2887 = vmatpush.msra.mxu0 0.0
    %2888 = vmatpush.msra.mxu0 0.0
    %2889 = vmatpush.msra.mxu0 0.0
    %2890 = vmatpush.msra.mxu0 0.0
    %2891 = vmatpush.msra.mxu0 %v2461
    %2892 = vmatpush.msra.mxu0 %v2460
    %2893 = vmatpush.msra.mxu0 %v2459
    %2894 = vmatpush.msra.mxu0 %v2458
    %2895 = vmatmul.f32.gmra.mxu0 %v88
    %v2896 = vpop.f32.mrf.mxu0
    %v2897 = vadd.f32 0.0, %v2896
    %2898 = vmatmul.f32.gmra.mxu0 %v91
    %v2899 = vpop.f32.mrf.mxu0
    %v2900 = vadd.f32 0.0, %v2899
    %2901 = vmatmul.f32.gmra.mxu0 %v94
    %v2902 = vpop.f32.mrf.mxu0
    %v2903 = vadd.f32 0.0, %v2902
    %2904 = vmatmul.f32.gmra.mxu0 %v97
    %v2905 = vpop.f32.mrf.mxu0
    %v2906 = vadd.f32 0.0, %v2905
    %2907 = vdwg.mxu0
    %2908 = vmatpush.msra.mxu0 0.0
    %2909 = vmatpush.msra.mxu0 0.0
    %2910 = vmatpush.msra.mxu0 0.0
    %2911 = vmatpush.msra.mxu0 0.0
    %2912 = vmatpush.msra.mxu0 0.0
    %2913 = vmatpush.msra.mxu0 0.0
    %2914 = vmatpush.msra.mxu0 0.0
    %2915 = vmatpush.msra.mxu0 0.0
    %2916 = vmatpush.msra.mxu0 0.0
    %2917 = vmatpush.msra.mxu0 0.0
    %2918 = vmatpush.msra.mxu0 0.0
    %2919 = vmatpush.msra.mxu0 0.0
    %2920 = vmatpush.msra.mxu0 %v2279
    %2921 = vmatpush.msra.mxu0 %v2278
    %2922 = vmatpush.msra.mxu0 %v2277
    %2923 = vmatpush.msra.mxu0 %v2276
    %2924 = vmatmul.f32.gmra.mxu0 %v129
    %v2925 = vpop.f32.mrf.mxu0
    %v2926 = vadd.f32 %v2897, %v2925
    %2927 = vmatmul.f32.gmra.mxu0 %v132
    %v2928 = vpop.f32.mrf.mxu0
    %v2929 = vadd.f32 %v2900, %v2928
    %2930 = vmatmul.f32.gmra.mxu0 %v135
    %v2931 = vpop.f32.mrf.mxu0
    %v2932 = vadd.f32 %v2903, %v2931
    %2933 = vmatmul.f32.gmra.mxu0 %v138
    %v2934 = vpop.f32.mrf.mxu0
    %v2935 = vadd.f32 %v2906, %v2934
    %2936 = vdwg.mxu0
    %2937 = vmatpush.msra.mxu0 0.0
    %2938 = vmatpush.msra.mxu0 0.0
    %2939 = vmatpush.msra.mxu0 0.0
    %2940 = vmatpush.msra.mxu0 0.0
    %2941 = vmatpush.msra.mxu0 0.0
    %2942 = vmatpush.msra.mxu0 0.0
    %2943 = vmatpush.msra.mxu0 0.0
    %2944 = vmatpush.msra.mxu0 0.0
    %2945 = vmatpush.msra.mxu0 0.0
    %2946 = vmatpush.msra.mxu0 0.0
    %2947 = vmatpush.msra.mxu0 0.0
    %2948 = vmatpush.msra.mxu0 0.0
    %2949 = vmatpush.msra.mxu0 %v2643
    %2950 = vmatpush.msra.mxu0 %v2642
    %2951 = vmatpush.msra.mxu0 %v2641
    %2952 = vmatpush.msra.mxu0 %v2640
    %2953 = vmatmul.f32.gmra.mxu0 %v175
    %v2954 = vpop.f32.mrf.mxu0
    %v2955 = vadd.f32 0.0, %v2954
    %2956 = vmatmul.f32.gmra.mxu0 %v178
    %v2957 = vpop.f32.mrf.mxu0
    %v2958 = vadd.f32 0.0, %v2957
    %2959 = vmatmul.f32.gmra.mxu0 %v181
    %v2960 = vpop.f32.mrf.mxu0
    %v2961 = vadd.f32 0.0, %v2960
    %2962 = vmatmul.f32.gmra.mxu0 %v184
    %v2963 = vpop.f32.mrf.mxu0
    %v2964 = vadd.f32 0.0, %v2963
    %2965 = vdwg.mxu0
    %v2966 = vadd.f32 %v2926, %v2955
    %v2967 = vadd.f32 %v2929, %v2958
    %v2968 = vadd.f32 %v2932, %v2961
    %v2969 = vadd.f32 %v2935, %v2964
    %2970 = vmatpush.msra.mxu0 0.0
    %2971 = vmatpush.msra.mxu0 0.0
    %2972 = vmatpush.msra.mxu0 0.0
    %2973 = vmatpush.msra.mxu0 0.0
    %2974 = vmatpush.msra.mxu0 0.0
    %2975 = vmatpush.msra.mxu0 0.0
    %2976 = vmatpush.msra.mxu0 0.0
    %2977 = vmatpush.msra.mxu0 0.0
    %2978 = vmatpush.msra.mxu0 0.0
    %2979 = vmatpush.msra.mxu0 0.0
    %2980 = vmatpush.msra.mxu0 0.0
    %2981 = vmatpush.msra.mxu0 0.0
    %2982 = vmatpush.msra.mxu0 %v2825
    %2983 = vmatpush.msra.mxu0 %v2824
    %2984 = vmatpush.msra.mxu0 %v2823
    %2985 = vmatpush.msra.mxu0 %v2822
    %2986 = vmatmul.f32.gmra.mxu0 %v225
    %v2987 = vpop.f32.mrf.mxu0
    %v2988 = vadd.f32 0.0, %v2987
    %2989 = vmatmul.f32.gmra.mxu0 %v228
    %v2990 = vpop.f32.mrf.mxu0
    %v2991 = vadd.f32 0.0, %v2990
    %2992 = vmatmul.f32.gmra.mxu0 %v231
    %v2993 = vpop.f32.mrf.mxu0
    %v2994 = vadd.f32 0.0, %v2993
    %2995 = vmatmul.f32.gmra.mxu0 %v234
    %v2996 = vpop.f32.mrf.mxu0
    %v2997 = vadd.f32 0.0, %v2996
    %2998 = vdwg.mxu0
    %v2999 = vadd.f32 %v2966, %v2988
    %v3000 = vadd.f32 %v2967, %v2991
    %v3001 = vadd.f32 %v2968, %v2994
    %v3002 = vadd.f32 %v2969, %v2997
    %s3003 = scalar_lea.vmem [#allocation2], 608
    %v3004 = vld [vmem:[%s3003] sm:$0xff]
    %v3005 = vld [vmem:[%s3003 + $0x8] sm:$0xff]
    %v3006 = vld [vmem:[%s3003 + $0x10] sm:$0xff]
    %v3007 = vld [vmem:[%s3003 + $0x18] sm:$0xff]
    %3008 = vmatpush.msra.mxu0 0.0
    %3009 = vmatpush.msra.mxu0 0.0
    %3010 = vmatpush.msra.mxu0 0.0
    %3011 = vmatpush.msra.mxu0 0.0
    %3012 = vmatpush.msra.mxu0 0.0
    %3013 = vmatpush.msra.mxu0 0.0
    %3014 = vmatpush.msra.mxu0 0.0
    %3015 = vmatpush.msra.mxu0 0.0
    %3016 = vmatpush.msra.mxu0 0.0
    %3017 = vmatpush.msra.mxu0 0.0
    %3018 = vmatpush.msra.mxu0 0.0
    %3019 = vmatpush.msra.mxu0 0.0
    %3020 = vmatpush.msra.mxu0 %v3007
    %3021 = vmatpush.msra.mxu0 %v3006
    %3022 = vmatpush.msra.mxu0 %v3005
    %3023 = vmatpush.msra.mxu0 %v3004
    %3024 = vmatmul.f32.gmra.mxu0 %v275
    %v3025 = vpop.f32.mrf.mxu0
    %v3026 = vadd.f32 0.0, %v3025
    %3027 = vmatmul.f32.gmra.mxu0 %v278
    %v3028 = vpop.f32.mrf.mxu0
    %v3029 = vadd.f32 0.0, %v3028
    %3030 = vmatmul.f32.gmra.mxu0 %v281
    %v3031 = vpop.f32.mrf.mxu0
    %v3032 = vadd.f32 0.0, %v3031
    %3033 = vmatmul.f32.gmra.mxu0 %v284
    %v3034 = vpop.f32.mrf.mxu0
    %v3035 = vadd.f32 0.0, %v3034
    %3036 = vdwg.mxu0
    %v3037 = vadd.f32 %v2999, %v3026
    %v3038 = vadd.f32 %v3000, %v3029
    %v3039 = vadd.f32 %v3001, %v3032
    %v3040 = vadd.f32 %v3002, %v3035
    %v3041 = vadd.f32 %v2859, %v3037
    %v3042 = vadd.f32 %v2860, %v3038
    %v3043 = vadd.f32 %v2861, %v3039
    %v3044 = vadd.f32 %v2862, %v3040
    %v3045 = vmul.f32 %v3037, %v3037
    %v3046 = vmul.f32 %v3038, %v3038
    %v3047 = vmul.f32 %v3039, %v3039
    %v3048 = vmul.f32 %v3040, %v3040
    %v3049 = vadd.f32 %v2867, %v3045
    %v3050 = vadd.f32 %v2868, %v3046
    %v3051 = vadd.f32 %v2869, %v3047
    %v3052 = vadd.f32 %v2870, %v3048
    %v3053 = vmax.f32 %v2871, %v3037
    %v3054 = vmax.f32 %v2872, %v3038
    %v3055 = vmax.f32 %v2873, %v3039
    %v3056 = vmax.f32 %v2874, %v3040
    %v3057 = vmin.f32 %v2875, %v3037
    %v3058 = vmin.f32 %v2876, %v3038
    %v3059 = vmin.f32 %v2877, %v3039
    %v3060 = vmin.f32 %v2878, %v3040
    %v3061 = vld [vmem:[%s2] sm:$0xff]
    %v3062 = vld [vmem:[%s2 + $0x8] sm:$0xff]
    %v3063 = vld [vmem:[%s2 + $0x10] sm:$0xff]
    %v3064 = vld [vmem:[%s2 + $0x18] sm:$0xff]
    %v3065 = vld [vmem:[%s3] sm:$0xff]
    %v3066 = vld [vmem:[%s3 + $0x8] sm:$0xff]
    %v3067 = vld [vmem:[%s3 + $0x10] sm:$0xff]
    %v3068 = vld [vmem:[%s3 + $0x18] sm:$0xff]
    %v3069 = vld [vmem:[%s4] sm:$0xff]
    %v3070 = vld [vmem:[%s4 + $0x8] sm:$0xff]
    %v3071 = vld [vmem:[%s4 + $0x10] sm:$0xff]
    %v3072 = vld [vmem:[%s4 + $0x18] sm:$0xff]
    %v3073 = vmul.f32 %v3061, 16.0
    %v3074 = vmul.f32 %v3062, 16.0
    %v3075 = vmul.f32 %v3063, 16.0
    %v3076 = vmul.f32 %v3064, 16.0
    %3078 = vset.pattern.permute.xlu0 0
    %3079 = vperm.xlu0 %3078, %v3073
    %v3080 = vpop.permute.xlu0 %3079
    %3083 = vset.pattern.permute.xlu0 0
    %3084 = vperm.xlu0 %3083, %v3074
    %v3085 = vpop.permute.xlu0 %3084
    %3088 = vset.pattern.permute.xlu0 0
    %3089 = vperm.xlu0 %3088, %v3075
    %v3090 = vpop.permute.xlu0 %3089
    %3093 = vset.pattern.permute.xlu0 0
    %3094 = vperm.xlu0 %3093, %v3076
    %v3095 = vpop.permute.xlu0 %3094
    %v3097 = vadd.f32 %v3041, %v3080
    %v3098 = vadd.f32 %v3042, %v3085
    %v3099 = vadd.f32 %v3043, %v3090
    %v3100 = vadd.f32 %v3044, %v3095
    %v3101 = vmul.f32 %v3061, 2.0
    %v3102 = vmul.f32 %v3062, 2.0
    %v3103 = vmul.f32 %v3063, 2.0
    %v3104 = vmul.f32 %v3064, 2.0
    %3106 = vset.pattern.permute.xlu0 0
    %3107 = vperm.xlu0 %3106, %v3101
    %v3108 = vpop.permute.xlu0 %3107
    %3111 = vset.pattern.permute.xlu0 0
    %3112 = vperm.xlu0 %3111, %v3102
    %v3113 = vpop.permute.xlu0 %3112
    %3116 = vset.pattern.permute.xlu0 0
    %3117 = vperm.xlu0 %3116, %v3103
    %v3118 = vpop.permute.xlu0 %3117
    %3121 = vset.pattern.permute.xlu0 0
    %3122 = vperm.xlu0 %3121, %v3104
    %v3123 = vpop.permute.xlu0 %3122
    %v3125 = vmul.f32 %v3108, %v3041
    %v3126 = vmul.f32 %v3113, %v3042
    %v3127 = vmul.f32 %v3118, %v3043
    %v3128 = vmul.f32 %v3123, %v3044
    %v3129 = vadd.f32 %v3049, %v3125
    %v3130 = vadd.f32 %v3050, %v3126
    %v3131 = vadd.f32 %v3051, %v3127
    %v3132 = vadd.f32 %v3052, %v3128
    %v3133 = vmul.f32 %v3061, %v3061
    %v3134 = vmul.f32 %v3062, %v3062
    %v3135 = vmul.f32 %v3063, %v3063
    %v3136 = vmul.f32 %v3064, %v3064
    %v3137 = vmul.f32 %v3133, 16.0
    %v3138 = vmul.f32 %v3134, 16.0
    %v3139 = vmul.f32 %v3135, 16.0
    %v3140 = vmul.f32 %v3136, 16.0
    %3142 = vset.pattern.permute.xlu0 0
    %3143 = vperm.xlu0 %3142, %v3137
    %v3144 = vpop.permute.xlu0 %3143
    %3147 = vset.pattern.permute.xlu0 0
    %3148 = vperm.xlu0 %3147, %v3138
    %v3149 = vpop.permute.xlu0 %3148
    %3152 = vset.pattern.permute.xlu0 0
    %3153 = vperm.xlu0 %3152, %v3139
    %v3154 = vpop.permute.xlu0 %3153
    %3157 = vset.pattern.permute.xlu0 0
    %3158 = vperm.xlu0 %3157, %v3140
    %v3159 = vpop.permute.xlu0 %3158
    %v3161 = vadd.f32 %v3129, %v3144
    %v3162 = vadd.f32 %v3130, %v3149
    %v3163 = vadd.f32 %v3131, %v3154
    %v3164 = vadd.f32 %v3132, %v3159
    %v3165 = vadd.f32 %v3097, %v3098
    %v3166 = vrot.slane %v3165, 4
    %v3167 = vadd.f32 %v3165, %v3166
    %v3168 = vrot.slane %v3167, 2
    %v3169 = vadd.f32 %v3167, %v3168
    %v3170 = vrot.slane %v3169, 1
    %v3171 = vadd.f32 %v3169, %v3170
    %v3172 = vadd.f32 %v3099, %v3100
    %v3173 = vrot.slane %v3172, 4
    %v3174 = vadd.f32 %v3172, %v3173
    %v3175 = vrot.slane %v3174, 2
    %v3176 = vadd.f32 %v3174, %v3175
    %v3177 = vrot.slane %v3176, 1
    %v3178 = vadd.f32 %v3176, %v3177
    %v3179 = vadd.f32 %v3161, %v3162
    %v3180 = vrot.slane %v3179, 4
    %v3181 = vadd.f32 %v3179, %v3180
    %v3182 = vrot.slane %v3181, 2
    %v3183 = vadd.f32 %v3181, %v3182
    %v3184 = vrot.slane %v3183, 1
    %v3185 = vadd.f32 %v3183, %v3184
    %v3186 = vadd.f32 %v3163, %v3164
    %v3187 = vrot.slane %v3186, 4
    %v3188 = vadd.f32 %v3186, %v3187
    %v3189 = vrot.slane %v3188, 2
    %v3190 = vadd.f32 %v3188, %v3189
    %v3191 = vrot.slane %v3190, 1
    %v3192 = vadd.f32 %v3190, %v3191
    %v3193 = vmul.f32 %v3171, 0.00390625
    %v3194 = vmul.f32 %v3178, 0.00390625
    %v3195 = vmul.f32 %v3185, 0.00390625
    %v3196 = vmul.f32 %v3192, 0.00390625
    %v3197 = vmul.f32 %v3193, %v3193
    %v3198 = vmul.f32 %v3194, %v3194
    %v3199 = vsub.f32 %v3195, %v3197
    %v3200 = vsub.f32 %v3196, %v3198
    %v3201 = vmax.f32 %v3199, 0.0
    %v3202 = vmax.f32 %v3200, 0.0
    %v3203 = vadd.f32 %v3201, 1e-05
    %v3204 = vadd.f32 %v3202, 1e-05
    %v3205 = vrsqrt.pop %v3203
    %v3206 = vmul.f32 %v3205, %v3203
    %v3207 = vmul.f32 %v3206, %v3205
    %v3208 = vmul.f32 0.5, %v3207
    %v3209 = vsub.f32 1.5, %v3208
    %v3210 = vmul.f32 %v3205, %v3209
    %vm3211 = vweird.f32 %v3203
    %vm3212 = vweird.f32 %v3205
    %vm3213 = vmor %vm3211, %vm3212
    %v3214 = vsel %vm3213, %v3205, %v3210
    %v3215 = vrsqrt.pop %v3204
    %v3216 = vmul.f32 %v3215, %v3204
    %v3217 = vmul.f32 %v3216, %v3215
    %v3218 = vmul.f32 0.5, %v3217
    %v3219 = vsub.f32 1.5, %v3218
    %v3220 = vmul.f32 %v3215, %v3219
    %vm3221 = vweird.f32 %v3204
    %vm3222 = vweird.f32 %v3215
    %vm3223 = vmor %vm3221, %vm3222
    %v3224 = vsel %vm3223, %v3215, %v3220
    %3226 = vset.pattern.permute.xlu0 0
    %3227 = vperm.xlu0 %3226, %v3065
    %v3228 = vpop.permute.xlu0 %3227
    %3231 = vset.pattern.permute.xlu0 0
    %3232 = vperm.xlu0 %3231, %v3066
    %v3233 = vpop.permute.xlu0 %3232
    %3236 = vset.pattern.permute.xlu0 0
    %3237 = vperm.xlu0 %3236, %v3067
    %v3238 = vpop.permute.xlu0 %3237
    %3241 = vset.pattern.permute.xlu0 0
    %3242 = vperm.xlu0 %3241, %v3068
    %v3243 = vpop.permute.xlu0 %3242
    %v3245 = vmul.f32 %v3228, %v3214
    %v3246 = vmul.f32 %v3233, %v3214
    %v3247 = vmul.f32 %v3238, %v3224
    %v3248 = vmul.f32 %v3243, %v3224
    %3250 = vset.pattern.permute.xlu0 0
    %3251 = vperm.xlu0 %3250, %v3061
    %v3252 = vpop.permute.xlu0 %3251
    %3255 = vset.pattern.permute.xlu0 0
    %3256 = vperm.xlu0 %3255, %v3062
    %v3257 = vpop.permute.xlu0 %3256
    %3260 = vset.pattern.permute.xlu0 0
    %3261 = vperm.xlu0 %3260, %v3063
    %v3262 = vpop.permute.xlu0 %3261
    %3265 = vset.pattern.permute.xlu0 0
    %3266 = vperm.xlu0 %3265, %v3064
    %v3267 = vpop.permute.xlu0 %3266
    %v3269 = vsub.f32 %v3252, %v3193
    %v3270 = vsub.f32 %v3257, %v3193
    %v3271 = vsub.f32 %v3262, %v3194
    %v3272 = vsub.f32 %v3267, %v3194
    %v3273 = vmul.f32 %v3245, %v3269
    %v3274 = vmul.f32 %v3246, %v3270
    %v3275 = vmul.f32 %v3247, %v3271
    %v3276 = vmul.f32 %v3248, %v3272
    %3278 = vset.pattern.permute.xlu0 0
    %3279 = vperm.xlu0 %3278, %v3069
    %v3280 = vpop.permute.xlu0 %3279
    %3283 = vset.pattern.permute.xlu0 0
    %3284 = vperm.xlu0 %3283, %v3070
    %v3285 = vpop.permute.xlu0 %3284
    %3288 = vset.pattern.permute.xlu0 0
    %3289 = vperm.xlu0 %3288, %v3071
    %v3290 = vpop.permute.xlu0 %3289
    %3293 = vset.pattern.permute.xlu0 0
    %3294 = vperm.xlu0 %3293, %v3072
    %v3295 = vpop.permute.xlu0 %3294
    %v3297 = vadd.f32 %v3273, %v3280
    %v3298 = vadd.f32 %v3274, %v3285
    %v3299 = vadd.f32 %v3275, %v3290
    %v3300 = vadd.f32 %v3276, %v3295
    %vm3301 = vcmp.ge.f32.partialorder %v3245, 0.0
    %vm3302 = vcmp.ge.f32.partialorder %v3246, 0.0
    %vm3303 = vcmp.ge.f32.partialorder %v3247, 0.0
    %vm3304 = vcmp.ge.f32.partialorder %v3248, 0.0
    %v3305 = vmul.f32 %v3245, %v3053
    %v3306 = vmul.f32 %v3246, %v3054
    %v3307 = vmul.f32 %v3247, %v3055
    %v3308 = vmul.f32 %v3248, %v3056
    %v3309 = vadd.f32 %v3305, %v3297
    %v3310 = vadd.f32 %v3306, %v3298
    %v3311 = vadd.f32 %v3307, %v3299
    %v3312 = vadd.f32 %v3308, %v3300
    %v3313 = vmul.f32 %v3245, %v3057
    %v3314 = vmul.f32 %v3246, %v3058
    %v3315 = vmul.f32 %v3247, %v3059
    %v3316 = vmul.f32 %v3248, %v3060
    %v3317 = vadd.f32 %v3313, %v3297
    %v3318 = vadd.f32 %v3314, %v3298
    %v3319 = vadd.f32 %v3315, %v3299
    %v3320 = vadd.f32 %v3316, %v3300
    %v3321 = vsel %vm3301, %v3309, %v3317
    %v3322 = vsel %vm3302, %v3310, %v3318
    %v3323 = vsel %vm3303, %v3311, %v3319
    %v3324 = vsel %vm3304, %v3312, %v3320
    %v3325 = vmax.f32 %v3321, 0.0
    %v3326 = vmax.f32 %v3322, 0.0
    %v3327 = vmax.f32 %v3323, 0.0
    %v3328 = vmax.f32 %v3324, 0.0
    %3329 = vst [vmem:[#allocation7] sm:$0xff] %v3325
    %3330 = vst [vmem:[#allocation7 + $0x8] sm:$0xff] %v3326
    %3331 = vst [vmem:[#allocation7 + $0x10] sm:$0xff] %v3327
    %3332 = vst [vmem:[#allocation7 + $0x18] sm:$0xff] %v3328
    // Predicated region
    $region30: #{tpu_custom_call.1} parent=1 // pred_check
      _
    $region31: #{tpu_custom_call.1} parent=1 // pred_check_branch
      %3334 = sbr.rel (0) target = $region33
    $region32: #{tpu_custom_call.1} parent=1 // pred_region
      %3336 = vsyncadd [#allocation4], 0
      %s3337 = sshll.u32 [#allocation7], 4
      %s3338 = int_to_ptr.vmem [resolvable:$true] %s3337
      %s3339 = sshll.u32 %s5, 4
      %s3340 = int_to_ptr.hbm [resolvable:$true] %s3339
      %3345 = dma.vmem_to_hbm [thread:$0]  %s3338, 512, %s3340, [#allocation4], 128, 128, 8
    $region33: #{tpu_custom_call.1} parent=1 // pred_fallthru
      _
    // Predicated region
    $region34: #{tpu_custom_call.1} parent=1 // pred_check
      _
    $region35: #{tpu_custom_call.1} parent=1 // pred_check_branch
      %3347 = sbr.rel (0) target = $region37
    $region36: #{tpu_custom_call.1} parent=1 // pred_region
      %3349 = dma.done [#allocation4], 512
    $region37: #{tpu_custom_call.1} parent=1 // pred_fallthru
      _
    %3350 = vsyncpa [#allocation3], 1
    %3351 = vsyncpa [#allocation6], 1
    %3352 = vsyncpa [#allocation4], 1

</llo_original>
